<compile_context>
chip_gen: v5e
topology: v5e:2x2
jax: 0.10.0
libtpu: 0.0.40
codegen_flags: <defaults>
</compile_context>

<pallas_src>
import functools

import jax
import jax.numpy as jnp
from jax import lax
from jax.experimental import pallas as pl
from jax.experimental.pallas import tpu as pltpu

# Layer configuration fixed by the PyTorch module.
_K1, _S1, _OC1 = 8, 4, 32
_K2, _S2, _OC2 = 4, 2, 64
_K3, _S3, _OC3 = 3, 1, 64
_HIDDEN = 512
_R1 = _K1 // _S1            # conv1 kernel = 2x2 grid of 4x4 cells after s2d


def _conv_out(n, k, s):
    return (n - k) // s + 1


def _round_up(x, m):
    return (x + m - 1) // m * m


# ------------------------------ fused kernel ------------------------------- #

def _cnn_fused_kernel(p1_ref, w1_ref, b1_ref, w2_ref, b2_ref, w3_ref, b3_ref,
                      fw1_ref, fb1_ref, fw2_ref, fb2_ref,
                      o_ref, a1_ref, a2_ref, *, ow1, oh2, ow2):
    """Whole forward pass for one image; activations never leave VMEM.

    p1_ref : (1, OH1*OW1, K1*K1*C) bf16  conv1 im2col patches, rows ordered
                                         (h, w % 2, w // 2).
    a1_ref : (OH1*OW1, 32)  bf16 scratch conv1 output (same row order).
    a2_ref : (>=OH2*OW2,64) bf16 scratch conv2 output, rows = oh*OW2 + ow.
    o_ref  : (1, 1, N_pad)  f32          final logits (padded to 128 lanes).
    """
    f32 = jnp.float32

    # ---- conv1 + ReLU: a single MXU matmul on the pre-built patches.
    a1 = jnp.dot(p1_ref[0], w1_ref[...], preferred_element_type=f32)
    a1 = jnp.maximum(a1 + b1_ref[...], 0.0)
    a1_ref[...] = a1.astype(a1_ref.dtype)

    # ---- conv2 (k=4, s=2) + ReLU: sum over the 16 kernel offsets.
    # conv1 rows are stored as (h, w_parity, w_half), so for a fixed
    # (offset, output row) the needed inputs are `ow2` *contiguous* rows.
    wh1 = ow1 // 2
    acc2 = [jnp.zeros((ow2, _OC2), f32) for _ in range(oh2)]
    for di in range(_K2):
        for dj in range(_K2):
            w_ij = w2_ref[di * _K2 + dj]                      # (32, 64)
            base = (dj % 2) * wh1 + dj // 2
            for oh in range(oh2):
                r0 = (_S2 * oh + di) * ow1 + base
                xs = a1_ref[r0:r0 + ow2, :]                   # (ow2, 32)
                acc2[oh] = acc2[oh] + jnp.dot(
                    xs, w_ij, preferred_element_type=f32)
    for oh in range(oh2):
        a2 = jnp.maximum(acc2[oh] + b2_ref[...], 0.0)
        a2_ref[oh * ow2:(oh + 1) * ow2, :] = a2.astype(a2_ref.dtype)

    # ---- conv3 (k=3, s=1, 1x1 output) + ReLU: sum over its 9 input taps.
    acc3 = jnp.zeros((1, _OC3), f32)
    for p in range(_K3 * _K3):
        acc3 = acc3 + jnp.dot(a2_ref[p:p + 1, :], w3_ref[p],
                              preferred_element_type=f32)
    h = jnp.maximum(acc3 + b3_ref[...], 0.0).astype(jnp.bfloat16)

    # ---- fc1 -> ReLU -> fc2: the 512-wide hidden activation stays on-chip.
    h = jnp.dot(h, fw1_ref[...], preferred_element_type=f32) + fb1_ref[...]
    h = jnp.maximum(h, 0.0).astype(jnp.bfloat16)
    out = jnp.dot(h, fw2_ref[...], preferred_element_type=f32) + fb2_ref[...]
    o_ref[0] = out.astype(o_ref.dtype)


def _cnn_fused_call(p1, prep, *, ow1, oh2, ow2):
    B, m1, k1 = p1.shape
    n_pad = prep["fw2"].shape[1]
    kernel = functools.partial(_cnn_fused_kernel, ow1=ow1, oh2=oh2, ow2=ow2)
    return pl.pallas_call(
        kernel,
        out_shape=jax.ShapeDtypeStruct((B, 1, n_pad), jnp.float32),
        grid_spec=pltpu.PrefetchScalarGridSpec(
            num_scalar_prefetch=0,
            grid=(B,),                    # extent >= 2 -> v7x megacore can split
            in_specs=[
                pl.BlockSpec((1, m1, k1), lambda b: (b, 0, 0)),
                pl.BlockSpec(prep["w1"].shape, lambda b: (0, 0)),
                pl.BlockSpec(prep["b1"].shape, lambda b: (0, 0)),
                pl.BlockSpec(prep["w2"].shape, lambda b: (0, 0, 0)),
                pl.BlockSpec(prep["b2"].shape, lambda b: (0, 0)),
                pl.BlockSpec(prep["w3"].shape, lambda b: (0, 0, 0)),
                pl.BlockSpec(prep["b3"].shape, lambda b: (0, 0)),
                pl.BlockSpec(prep["fw1"].shape, lambda b: (0, 0)),
                pl.BlockSpec(prep["fb1"].shape, lambda b: (0, 0)),
                pl.BlockSpec(prep["fw2"].shape, lambda b: (0, 0)),
                pl.BlockSpec(prep["fb2"].shape, lambda b: (0, 0)),
            ],
            out_specs=pl.BlockSpec((1, 1, n_pad), lambda b: (b, 0, 0)),
            scratch_shapes=[
                pltpu.VMEM((m1, _OC1), jnp.bfloat16),                    # conv1 out
                pltpu.VMEM((_round_up(oh2 * ow2, 8), _OC2), jnp.bfloat16),  # conv2 out
            ],
        ),
        compiler_params=pltpu.CompilerParams(
            dimension_semantics=("parallel",),
        ),
    )(p1, prep["w1"], prep["b1"], prep["w2"], prep["b2"], prep["w3"],
      prep["b3"], prep["fw1"], prep["fb1"], prep["fw2"], prep["fb2"])


# --------------------------- conv1 patch build ------------------------------ #

def _conv1_patches(x, oh1, ow1):
    """NCHW f32 input -> conv1 im2col patches (B, OH1*OW1, K1*K1*C) bf16.

    Row order is (h, w % 2, w // 2) so every in-kernel conv2 read is a
    contiguous slice; column order is (i, j, a, b, c) with the 8x8 kernel
    offset (ki, kj) = (4*i + a, 4*j + b), matching prepare_params' conv1
    weight layout.  Built with a space-to-depth reshape + a 4-way concat
    (vs. 64-way naive im2col); this is the only XLA work on activations.
    """
    B, C, H, W = x.shape
    xb = x.astype(jnp.bfloat16)                        # cast BEFORE transposing
    xc = xb.reshape(B, C, H // _S1, _S1, W // _S1, _S1)
    xs = jnp.transpose(xc, (0, 2, 4, 3, 5, 1))         # (B, ci, cj, a, b, C)
    xs = xs.reshape(B, H // _S1, W // _S1, _S1 * _S1 * C)
    cols = [xs[:, i:i + oh1, j:j + ow1, :]
            for i in range(_R1) for j in range(_R1)]
    p = jnp.concatenate(cols, axis=-1)                 # (B, OH1, OW1, K)
    k = p.shape[-1]
    p = p.reshape(B, oh1, ow1 // 2, 2, k)              # split w -> (w//2, w%2)
    p = jnp.transpose(p, (0, 1, 3, 2, 4))              # (B, h, w%2, w//2, K)
    return p.reshape(B, oh1 * ow1, k)


# -------------------------------- parameters -------------------------------- #

def init_params(key, input_dim, output_dim):
    """Deterministic synthetic init (uniform +-1/sqrt(fan_in), PyTorch-ish),
    stored in PyTorch layouts: conv (OC, IC, KH, KW), fc (in, out)."""
    C, H, W = input_dim
    oh1, ow1 = _conv_out(H, _K1, _S1), _conv_out(W, _K1, _S1)
    oh2, ow2 = _conv_out(oh1, _K2, _S2), _conv_out(ow1, _K2, _S2)
    oh3, ow3 = _conv_out(oh2, _K3, _S3), _conv_out(ow2, _K3, _S3)
    feat = _OC3 * oh3 * ow3

    def uinit(k, shape, fan_in):
        bound = 1.0 / jnp.sqrt(jnp.float32(fan_in))
        return jax.random.uniform(k, shape, jnp.float32, -bound, bound)

    ks = jax.random.split(key, 10)
    return {
        "conv1_w": uinit(ks[0], (_OC1, C, _K1, _K1), C * _K1 * _K1),
        "conv1_b": uinit(ks[1], (_OC1,), C * _K1 * _K1),
        "conv2_w": uinit(ks[2], (_OC2, _OC1, _K2, _K2), _OC1 * _K2 * _K2),
        "conv2_b": uinit(ks[3], (_OC2,), _OC1 * _K2 * _K2),
        "conv3_w": uinit(ks[4], (_OC3, _OC2, _K3, _K3), _OC2 * _K3 * _K3),
        "conv3_b": uinit(ks[5], (_OC3,), _OC2 * _K3 * _K3),
        "fc1_w": uinit(ks[6], (feat, _HIDDEN), feat),
        "fc1_b": uinit(ks[7], (_HIDDEN,), feat),
        "fc2_w": uinit(ks[8], (_HIDDEN, output_dim), _HIDDEN),
        "fc2_b": uinit(ks[9], (output_dim,), _HIDDEN),
    }


def prepare_params(params, input_dim):
    """One-time conversion of PyTorch-layout weights into the kernel layouts
    (bf16 operands, f32 biases), matching the patch/row orderings above."""
    C, H, W = input_dim
    oh1, ow1 = _conv_out(H, _K1, _S1), _conv_out(W, _K1, _S1)
    oh2, ow2 = _conv_out(oh1, _K2, _S2), _conv_out(ow1, _K2, _S2)
    oh3, ow3 = _conv_out(oh2, _K3, _S3), _conv_out(ow2, _K3, _S3)
    assert (oh3, ow3) == (1, 1), "fused kernel is specialized to 1x1 conv3 out"
    bf16, f32 = jnp.bfloat16, jnp.float32

    # conv1: (OC, C, 8, 8) -> (64*C, 32); rows ordered (i, j, a, b, c).
    w1 = params["conv1_w"].reshape(_OC1, C, _R1, _S1, _R1, _S1)
    w1 = jnp.transpose(w1, (2, 4, 3, 5, 1, 0))
    w1 = w1.reshape(_R1 * _R1 * _S1 * _S1 * C, _OC1).astype(bf16)
    b1 = params["conv1_b"].reshape(1, _OC1).astype(f32)

    # conv2: (OC, IC, 4, 4) -> (16, 32, 64), index = di*4 + dj.
    w2 = jnp.transpose(params["conv2_w"], (2, 3, 1, 0))
    w2 = w2.reshape(_K2 * _K2, _OC1, _OC2).astype(bf16)
    b2 = params["conv2_b"].reshape(1, _OC2).astype(f32)

    # conv3: (OC, IC, 3, 3) -> (9, 64, 64), index = ih*3 + iw.
    w3 = jnp.transpose(params["conv3_w"], (2, 3, 1, 0))
    w3 = w3.reshape(_K3 * _K3, _OC2, _OC3).astype(bf16)
    b3 = params["conv3_b"].reshape(1, _OC3).astype(f32)

    # fc: conv3 output is 1x1, so the PyTorch (C,H,W) flatten is just channels.
    fw1 = params["fc1_w"].astype(bf16)                       # (64, 512)
    fb1 = params["fc1_b"].reshape(1, _HIDDEN).astype(f32)
    out_dim = params["fc2_w"].shape[1]
    n_pad = _round_up(out_dim, 128)
    fw2 = jnp.pad(params["fc2_w"],
                  ((0, 0), (0, n_pad - out_dim))).astype(bf16)
    fb2 = jnp.pad(params["fc2_b"],
                  (0, n_pad - out_dim)).reshape(1, n_pad).astype(f32)

    return dict(w1=w1, b1=b1, w2=w2, b2=b2, w3=w3, b3=b3,
                fw1=fw1, fb1=fb1, fw2=fw2, fb2=fb2)


# -------------------------------- forward pass ------------------------------ #

def cnn_forward(prep, x, *, output_dim):
    """x: (B, C, H, W) float32 (PyTorch layout) -> (B, output_dim) float32."""
    B, C, H, W = x.shape
    oh1, ow1 = _conv_out(H, _K1, _S1), _conv_out(W, _K1, _S1)
    oh2, ow2 = _conv_out(oh1, _K2, _S2), _conv_out(ow1, _K2, _S2)
    oh3, ow3 = _conv_out(oh2, _K3, _S3), _conv_out(ow2, _K3, _S3)
    assert H % _S1 == 0 and W % _S1 == 0, "spatial dims must be multiples of 4"
    assert ow1 % _S2 == 0, "conv1 output width must be even"
    assert (oh3, ow3) == (1, 1), "fused kernel is specialized to 1x1 conv3 out"
    # TODO(synk): generalize to conv3 outputs > 1x1 (e.g. the classic 84x84 DQN
    # frames) by tiling the conv3/fc1 stage over the conv3 output positions.

    p1 = _conv1_patches(x, oh1, ow1)                     # (B, 64, 64*C) bf16
    out = _cnn_fused_call(p1, prep, ow1=ow1, oh2=oh2, ow2=ow2)  # (B, 1, n_pad)
    return out[:, 0, :output_dim]


def cnn_reference_f32(params, x):
    """Full-f32 mirror of the PyTorch module (lax.conv + linear), for parity."""
    def conv(h, w, b, s):
        y = lax.conv_general_dilated(
            h, w, (s, s), "VALID",
            dimension_numbers=("NCHW", "OIHW", "NCHW"))
        return jnp.maximum(y + b.reshape(1, -1, 1, 1), 0.0)

    h = conv(x, params["conv1_w"], params["conv1_b"], _S1)
    h = conv(h, params["conv2_w"], params["conv2_b"], _S2)
    h = conv(h, params["conv3_w"], params["conv3_b"], _S3)
    h = h.reshape(h.shape[0], -1)                        # PyTorch NCHW flatten
    h = jnp.maximum(h @ params["fc1_w"] + params["fc1_b"], 0.0)
    return h @ params["fc2_w"] + params["fc2_b"]


# ------------------------------------ main ----------------------------------- #

if __name__ == "__main__":
    key = jax.random.PRNGKey(0)
    k_params, k_x = jax.random.split(key)

    # Small DQN-style input: 4 stacked 36x36 frames (smallest spatial size that
    # is valid for the 8/4 -> 4/2 -> 3/1 conv stack).
    input_dim = (4, 36, 36)
    output_dim = 6
    batch = 2

    params = init_params(k_params, input_dim, output_dim)
    prep = prepare_params(params, input_dim)
    x = jax.random.normal(k_x, (batch,) + input_dim, dtype=jnp.float32)

    fwd = jax.jit(functools.partial(cnn_forward, output_dim=output_dim))
    out = jax.block_until_ready(fwd(prep, x))
    assert out.shape == (batch, output_dim), out.shape
    assert bool(jnp.all(jnp.isfinite(out)))

    # Fidelity check against a full-f32 reference of the PyTorch module
    # (original f32 weights; tolerance covers the kernel's bf16 operand path).
    ref = jax.block_until_ready(jax.jit(cnn_reference_f32)(params, x))
    max_err = float(jnp.max(jnp.abs(out - ref)))
    assert bool(jnp.allclose(out, ref, atol=1e-2, rtol=5e-2)), max_err

    print("KERNEL_OK")
</pallas_src>

<mosaic_0001>
module attributes {stable_mosaic.version = 11 : i64} {
  func.func @_cnn_fused_kernel(%arg0: i32, %arg1: memref<1x64x256xbf16, #tpu.memory_space<vmem>>, %arg2: memref<256x32xbf16, #tpu.memory_space<vmem>>, %arg3: memref<1x32xf32, #tpu.memory_space<vmem>>, %arg4: memref<16x32x64xbf16, #tpu.memory_space<vmem>>, %arg5: memref<1x64xf32, #tpu.memory_space<vmem>>, %arg6: memref<9x64x64xbf16, #tpu.memory_space<vmem>>, %arg7: memref<1x64xf32, #tpu.memory_space<vmem>>, %arg8: memref<64x512xbf16, #tpu.memory_space<vmem>>, %arg9: memref<1x512xf32, #tpu.memory_space<vmem>>, %arg10: memref<512x128xbf16, #tpu.memory_space<vmem>>, %arg11: memref<1x128xf32, #tpu.memory_space<vmem>>, %arg12: memref<1x1x128xf32, #tpu.memory_space<vmem>>, %arg13: memref<64x32xbf16, #tpu.memory_space<vmem>>, %arg14: memref<16x64xbf16, #tpu.memory_space<vmem>>) attributes {dimension_semantics = [#tpu.dimension_semantics<parallel>], iteration_bounds = array<i64: 2>, scalar_prefetch = 0 : i64, scratch_operands = 2 : i64, tpu.core_type = #tpu.core_type<tc>, window_params = [{transform_indices = @transform_0, window_bounds = array<i64: 1, 64, 256>}, {pipeline_mode = #tpu.pipeline_mode<synchronous>, transform_indices = @transform_1, window_bounds = array<i64: 256, 32>}, {pipeline_mode = #tpu.pipeline_mode<synchronous>, transform_indices = @transform_2, window_bounds = array<i64: 1, 32>}, {pipeline_mode = #tpu.pipeline_mode<synchronous>, transform_indices = @transform_3, window_bounds = array<i64: 16, 32, 64>}, {pipeline_mode = #tpu.pipeline_mode<synchronous>, transform_indices = @transform_4, window_bounds = array<i64: 1, 64>}, {pipeline_mode = #tpu.pipeline_mode<synchronous>, transform_indices = @transform_5, window_bounds = array<i64: 9, 64, 64>}, {pipeline_mode = #tpu.pipeline_mode<synchronous>, transform_indices = @transform_6, window_bounds = array<i64: 1, 64>}, {pipeline_mode = #tpu.pipeline_mode<synchronous>, transform_indices = @transform_7, window_bounds = array<i64: 64, 512>}, {pipeline_mode = #tpu.pipeline_mode<synchronous>, transform_indices = @transform_8, window_bounds = array<i64: 1, 512>}, {pipeline_mode = #tpu.pipeline_mode<synchronous>, transform_indices = @transform_9, window_bounds = array<i64: 512, 128>}, {pipeline_mode = #tpu.pipeline_mode<synchronous>, transform_indices = @transform_10, window_bounds = array<i64: 1, 128>}, {transform_indices = @transform_11, window_bounds = array<i64: 1, 1, 128>}]} {
    %c0 = arith.constant 0 : index
    %c0_0 = arith.constant 0 : index
    %c0_1 = arith.constant 0 : index
    %0 = vector.load %arg1[%c0, %c0_0, %c0_1] : memref<1x64x256xbf16, #tpu.memory_space<vmem>>, vector<1x64x256xbf16>
    %1 = vector.shape_cast %0 : vector<1x64x256xbf16> to vector<64x256xbf16>
    %c0_2 = arith.constant 0 : index
    %c0_3 = arith.constant 0 : index
    %2 = vector.load %arg2[%c0_2, %c0_3] : memref<256x32xbf16, #tpu.memory_space<vmem>>, vector<256x32xbf16>
    %cst = arith.constant dense<0.000000e+00> : vector<64x32xf32>
    %3 = tpu.matmul %1, %2, %cst {dimension_numbers = #tpu.dot_dimension_numbers<[1], [0], [0], [1], [0, 0, 1, 1], [], []>} : vector<64x256xbf16>, vector<256x32xbf16>, vector<64x32xf32> -> vector<64x32xf32>
    %c0_4 = arith.constant 0 : index
    %c0_5 = arith.constant 0 : index
    %4 = vector.load %arg3[%c0_4, %c0_5] : memref<1x32xf32, #tpu.memory_space<vmem>>, vector<1x32xf32>
    %5 = vector.broadcast %4 : vector<1x32xf32> to vector<64x32xf32>
    %6 = arith.addf %3, %5 : vector<64x32xf32>
    %cst_6 = arith.constant 0.000000e+00 : f32
    %7 = vector.broadcast %cst_6 : f32 to vector<64x32xf32>
    %8 = arith.maximumf %6, %7 : vector<64x32xf32>
    %9 = arith.truncf %8 : vector<64x32xf32> to vector<64x32xbf16>
    %c0_7 = arith.constant 0 : index
    %c0_8 = arith.constant 0 : index
    %10 = vector.load %arg13[%c0_7, %c0_8] : memref<64x32xbf16, #tpu.memory_space<vmem>>, vector<64x32xbf16>
    tpu.vector_store %arg13[%c0_7, %c0_8], %9 {strides = array<i32>} : memref<64x32xbf16, #tpu.memory_space<vmem>>, vector<64x32xbf16>,
    %cst_9 = arith.constant 0.000000e+00 : f32
    %11 = vector.broadcast %cst_9 : f32 to vector<3x64xf32>
    %cst_10 = arith.constant 0.000000e+00 : f32
    %12 = vector.broadcast %cst_10 : f32 to vector<3x64xf32>
    %cst_11 = arith.constant 0.000000e+00 : f32
    %13 = vector.broadcast %cst_11 : f32 to vector<3x64xf32>
    %c0_12 = arith.constant 0 : index
    %c0_13 = arith.constant 0 : index
    %c0_14 = arith.constant 0 : index
    %14 = vector.load %arg4[%c0_12, %c0_13, %c0_14] : memref<16x32x64xbf16, #tpu.memory_space<vmem>>, vector<1x32x64xbf16>
    %15 = vector.shape_cast %14 : vector<1x32x64xbf16> to vector<32x64xbf16>
    %c0_15 = arith.constant 0 : index
    %c0_16 = arith.constant 0 : index
    %16 = vector.load %arg13[%c0_15, %c0_16] : memref<64x32xbf16, #tpu.memory_space<vmem>>, vector<3x32xbf16>
    %cst_17 = arith.constant dense<0.000000e+00> : vector<3x64xf32>
    %17 = tpu.matmul %16, %15, %cst_17 {dimension_numbers = #tpu.dot_dimension_numbers<[1], [0], [0], [1], [0, 0, 1, 1], [], []>} : vector<3x32xbf16>, vector<32x64xbf16>, vector<3x64xf32> -> vector<3x64xf32>
    %18 = arith.addf %11, %17 : vector<3x64xf32>
    %c16 = arith.constant 16 : index
    %c0_18 = arith.constant 0 : index
    %19 = vector.load %arg13[%c16, %c0_18] : memref<64x32xbf16, #tpu.memory_space<vmem>>, vector<3x32xbf16>
    %cst_19 = arith.constant dense<0.000000e+00> : vector<3x64xf32>
    %20 = tpu.matmul %19, %15, %cst_19 {dimension_numbers = #tpu.dot_dimension_numbers<[1], [0], [0], [1], [0, 0, 1, 1], [], []>} : vector<3x32xbf16>, vector<32x64xbf16>, vector<3x64xf32> -> vector<3x64xf32>
    %21 = arith.addf %12, %20 : vector<3x64xf32>
    %c32 = arith.constant 32 : index
    %c0_20 = arith.constant 0 : index
    %22 = vector.load %arg13[%c32, %c0_20] : memref<64x32xbf16, #tpu.memory_space<vmem>>, vector<3x32xbf16>
    %cst_21 = arith.constant dense<0.000000e+00> : vector<3x64xf32>
    %23 = tpu.matmul %22, %15, %cst_21 {dimension_numbers = #tpu.dot_dimension_numbers<[1], [0], [0], [1], [0, 0, 1, 1], [], []>} : vector<3x32xbf16>, vector<32x64xbf16>, vector<3x64xf32> -> vector<3x64xf32>
    %24 = arith.addf %13, %23 : vector<3x64xf32>
    %c1 = arith.constant 1 : index
    %c0_22 = arith.constant 0 : index
    %c0_23 = arith.constant 0 : index
    %25 = vector.load %arg4[%c1, %c0_22, %c0_23] : memref<16x32x64xbf16, #tpu.memory_space<vmem>>, vector<1x32x64xbf16>
    %26 = vector.shape_cast %25 : vector<1x32x64xbf16> to vector<32x64xbf16>
    %c4 = arith.constant 4 : index
    %c0_24 = arith.constant 0 : index
    %27 = vector.load %arg13[%c4, %c0_24] : memref<64x32xbf16, #tpu.memory_space<vmem>>, vector<3x32xbf16>
    %cst_25 = arith.constant dense<0.000000e+00> : vector<3x64xf32>
    %28 = tpu.matmul %27, %26, %cst_25 {dimension_numbers = #tpu.dot_dimension_numbers<[1], [0], [0], [1], [0, 0, 1, 1], [], []>} : vector<3x32xbf16>, vector<32x64xbf16>, vector<3x64xf32> -> vector<3x64xf32>
    %29 = arith.addf %18, %28 : vector<3x64xf32>
    %c20 = arith.constant 20 : index
    %c0_26 = arith.constant 0 : index
    %30 = vector.load %arg13[%c20, %c0_26] : memref<64x32xbf16, #tpu.memory_space<vmem>>, vector<3x32xbf16>
    %cst_27 = arith.constant dense<0.000000e+00> : vector<3x64xf32>
    %31 = tpu.matmul %30, %26, %cst_27 {dimension_numbers = #tpu.dot_dimension_numbers<[1], [0], [0], [1], [0, 0, 1, 1], [], []>} : vector<3x32xbf16>, vector<32x64xbf16>, vector<3x64xf32> -> vector<3x64xf32>
    %32 = arith.addf %21, %31 : vector<3x64xf32>
    %c36 = arith.constant 36 : index
    %c0_28 = arith.constant 0 : index
    %33 = vector.load %arg13[%c36, %c0_28] : memref<64x32xbf16, #tpu.memory_space<vmem>>, vector<3x32xbf16>
    %cst_29 = arith.constant dense<0.000000e+00> : vector<3x64xf32>
    %34 = tpu.matmul %33, %26, %cst_29 {dimension_numbers = #tpu.dot_dimension_numbers<[1], [0], [0], [1], [0, 0, 1, 1], [], []>} : vector<3x32xbf16>, vector<32x64xbf16>, vector<3x64xf32> -> vector<3x64xf32>
    %35 = arith.addf %24, %34 : vector<3x64xf32>
    %c2 = arith.constant 2 : index
    %c0_30 = arith.constant 0 : index
    %c0_31 = arith.constant 0 : index
    %36 = vector.load %arg4[%c2, %c0_30, %c0_31] : memref<16x32x64xbf16, #tpu.memory_space<vmem>>, vector<1x32x64xbf16>
    %37 = vector.shape_cast %36 : vector<1x32x64xbf16> to vector<32x64xbf16>
    %c1_32 = arith.constant 1 : index
    %c0_33 = arith.constant 0 : index
    %38 = vector.load %arg13[%c1_32, %c0_33] : memref<64x32xbf16, #tpu.memory_space<vmem>>, vector<3x32xbf16>
    %cst_34 = arith.constant dense<0.000000e+00> : vector<3x64xf32>
    %39 = tpu.matmul %38, %37, %cst_34 {dimension_numbers = #tpu.dot_dimension_numbers<[1], [0], [0], [1], [0, 0, 1, 1], [], []>} : vector<3x32xbf16>, vector<32x64xbf16>, vector<3x64xf32> -> vector<3x64xf32>
    %40 = arith.addf %29, %39 : vector<3x64xf32>
    %c17 = arith.constant 17 : index
    %c0_35 = arith.constant 0 : index
    %41 = vector.load %arg13[%c17, %c0_35] : memref<64x32xbf16, #tpu.memory_space<vmem>>, vector<3x32xbf16>
    %cst_36 = arith.constant dense<0.000000e+00> : vector<3x64xf32>
    %42 = tpu.matmul %41, %37, %cst_36 {dimension_numbers = #tpu.dot_dimension_numbers<[1], [0], [0], [1], [0, 0, 1, 1], [], []>} : vector<3x32xbf16>, vector<32x64xbf16>, vector<3x64xf32> -> vector<3x64xf32>
    %43 = arith.addf %32, %42 : vector<3x64xf32>
    %c33 = arith.constant 33 : index
    %c0_37 = arith.constant 0 : index
    %44 = vector.load %arg13[%c33, %c0_37] : memref<64x32xbf16, #tpu.memory_space<vmem>>, vector<3x32xbf16>
    %cst_38 = arith.constant dense<0.000000e+00> : vector<3x64xf32>
    %45 = tpu.matmul %44, %37, %cst_38 {dimension_numbers = #tpu.dot_dimension_numbers<[1], [0], [0], [1], [0, 0, 1, 1], [], []>} : vector<3x32xbf16>, vector<32x64xbf16>, vector<3x64xf32> -> vector<3x64xf32>
    %46 = arith.addf %35, %45 : vector<3x64xf32>
    %c3 = arith.constant 3 : index
    %c0_39 = arith.constant 0 : index
    %c0_40 = arith.constant 0 : index
    %47 = vector.load %arg4[%c3, %c0_39, %c0_40] : memref<16x32x64xbf16, #tpu.memory_space<vmem>>, vector<1x32x64xbf16>
    %48 = vector.shape_cast %47 : vector<1x32x64xbf16> to vector<32x64xbf16>
    %c5 = arith.constant 5 : index
    %c0_41 = arith.constant 0 : index
    %49 = vector.load %arg13[%c5, %c0_41] : memref<64x32xbf16, #tpu.memory_space<vmem>>, vector<3x32xbf16>
    %cst_42 = arith.constant dense<0.000000e+00> : vector<3x64xf32>
    %50 = tpu.matmul %49, %48, %cst_42 {dimension_numbers = #tpu.dot_dimension_numbers<[1], [0], [0], [1], [0, 0, 1, 1], [], []>} : vector<3x32xbf16>, vector<32x64xbf16>, vector<3x64xf32> -> vector<3x64xf32>
    %51 = arith.addf %40, %50 : vector<3x64xf32>
    %c21 = arith.constant 21 : index
    %c0_43 = arith.constant 0 : index
    %52 = vector.load %arg13[%c21, %c0_43] : memref<64x32xbf16, #tpu.memory_space<vmem>>, vector<3x32xbf16>
    %cst_44 = arith.constant dense<0.000000e+00> : vector<3x64xf32>
    %53 = tpu.matmul %52, %48, %cst_44 {dimension_numbers = #tpu.dot_dimension_numbers<[1], [0], [0], [1], [0, 0, 1, 1], [], []>} : vector<3x32xbf16>, vector<32x64xbf16>, vector<3x64xf32> -> vector<3x64xf32>
    %54 = arith.addf %43, %53 : vector<3x64xf32>
    %c37 = arith.constant 37 : index
    %c0_45 = arith.constant 0 : index
    %55 = vector.load %arg13[%c37, %c0_45] : memref<64x32xbf16, #tpu.memory_space<vmem>>, vector<3x32xbf16>
    %cst_46 = arith.constant dense<0.000000e+00> : vector<3x64xf32>
    %56 = tpu.matmul %55, %48, %cst_46 {dimension_numbers = #tpu.dot_dimension_numbers<[1], [0], [0], [1], [0, 0, 1, 1], [], []>} : vector<3x32xbf16>, vector<32x64xbf16>, vector<3x64xf32> -> vector<3x64xf32>
    %57 = arith.addf %46, %56 : vector<3x64xf32>
    %c4_47 = arith.constant 4 : index
    %c0_48 = arith.constant 0 : index
    %c0_49 = arith.constant 0 : index
    %58 = vector.load %arg4[%c4_47, %c0_48, %c0_49] : memref<16x32x64xbf16, #tpu.memory_space<vmem>>, vector<1x32x64xbf16>
    %59 = vector.shape_cast %58 : vector<1x32x64xbf16> to vector<32x64xbf16>
    %c8 = arith.constant 8 : index
    %c0_50 = arith.constant 0 : index
    %60 = vector.load %arg13[%c8, %c0_50] : memref<64x32xbf16, #tpu.memory_space<vmem>>, vector<3x32xbf16>
    %cst_51 = arith.constant dense<0.000000e+00> : vector<3x64xf32>
    %61 = tpu.matmul %60, %59, %cst_51 {dimension_numbers = #tpu.dot_dimension_numbers<[1], [0], [0], [1], [0, 0, 1, 1], [], []>} : vector<3x32xbf16>, vector<32x64xbf16>, vector<3x64xf32> -> vector<3x64xf32>
    %62 = arith.addf %51, %61 : vector<3x64xf32>
    %c24 = arith.constant 24 : index
    %c0_52 = arith.constant 0 : index
    %63 = vector.load %arg13[%c24, %c0_52] : memref<64x32xbf16, #tpu.memory_space<vmem>>, vector<3x32xbf16>
    %cst_53 = arith.constant dense<0.000000e+00> : vector<3x64xf32>
    %64 = tpu.matmul %63, %59, %cst_53 {dimension_numbers = #tpu.dot_dimension_numbers<[1], [0], [0], [1], [0, 0, 1, 1], [], []>} : vector<3x32xbf16>, vector<32x64xbf16>, vector<3x64xf32> -> vector<3x64xf32>
    %65 = arith.addf %54, %64 : vector<3x64xf32>
    %c40 = arith.constant 40 : index
    %c0_54 = arith.constant 0 : index
    %66 = vector.load %arg13[%c40, %c0_54] : memref<64x32xbf16, #tpu.memory_space<vmem>>, vector<3x32xbf16>
    %cst_55 = arith.constant dense<0.000000e+00> : vector<3x64xf32>
    %67 = tpu.matmul %66, %59, %cst_55 {dimension_numbers = #tpu.dot_dimension_numbers<[1], [0], [0], [1], [0, 0, 1, 1], [], []>} : vector<3x32xbf16>, vector<32x64xbf16>, vector<3x64xf32> -> vector<3x64xf32>
    %68 = arith.addf %57, %67 : vector<3x64xf32>
    %c5_56 = arith.constant 5 : index
    %c0_57 = arith.constant 0 : index
    %c0_58 = arith.constant 0 : index
    %69 = vector.load %arg4[%c5_56, %c0_57, %c0_58] : memref<16x32x64xbf16, #tpu.memory_space<vmem>>, vector<1x32x64xbf16>
    %70 = vector.shape_cast %69 : vector<1x32x64xbf16> to vector<32x64xbf16>
    %c12 = arith.constant 12 : index
    %c0_59 = arith.constant 0 : index
    %71 = vector.load %arg13[%c12, %c0_59] : memref<64x32xbf16, #tpu.memory_space<vmem>>, vector<3x32xbf16>
    %cst_60 = arith.constant dense<0.000000e+00> : vector<3x64xf32>
    %72 = tpu.matmul %71, %70, %cst_60 {dimension_numbers = #tpu.dot_dimension_numbers<[1], [0], [0], [1], [0, 0, 1, 1], [], []>} : vector<3x32xbf16>, vector<32x64xbf16>, vector<3x64xf32> -> vector<3x64xf32>
    %73 = arith.addf %62, %72 : vector<3x64xf32>
    %c28 = arith.constant 28 : index
    %c0_61 = arith.constant 0 : index
    %74 = vector.load %arg13[%c28, %c0_61] : memref<64x32xbf16, #tpu.memory_space<vmem>>, vector<3x32xbf16>
    %cst_62 = arith.constant dense<0.000000e+00> : vector<3x64xf32>
    %75 = tpu.matmul %74, %70, %cst_62 {dimension_numbers = #tpu.dot_dimension_numbers<[1], [0], [0], [1], [0, 0, 1, 1], [], []>} : vector<3x32xbf16>, vector<32x64xbf16>, vector<3x64xf32> -> vector<3x64xf32>
    %76 = arith.addf %65, %75 : vector<3x64xf32>
    %c44 = arith.constant 44 : index
    %c0_63 = arith.constant 0 : index
    %77 = vector.load %arg13[%c44, %c0_63] : memref<64x32xbf16, #tpu.memory_space<vmem>>, vector<3x32xbf16>
    %cst_64 = arith.constant dense<0.000000e+00> : vector<3x64xf32>
    %78 = tpu.matmul %77, %70, %cst_64 {dimension_numbers = #tpu.dot_dimension_numbers<[1], [0], [0], [1], [0, 0, 1, 1], [], []>} : vector<3x32xbf16>, vector<32x64xbf16>, vector<3x64xf32> -> vector<3x64xf32>
    %79 = arith.addf %68, %78 : vector<3x64xf32>
    %c6 = arith.constant 6 : index
    %c0_65 = arith.constant 0 : index
    %c0_66 = arith.constant 0 : index
    %80 = vector.load %arg4[%c6, %c0_65, %c0_66] : memref<16x32x64xbf16, #tpu.memory_space<vmem>>, vector<1x32x64xbf16>
    %81 = vector.shape_cast %80 : vector<1x32x64xbf16> to vector<32x64xbf16>
    %c9 = arith.constant 9 : index
    %c0_67 = arith.constant 0 : index
    %82 = vector.load %arg13[%c9, %c0_67] : memref<64x32xbf16, #tpu.memory_space<vmem>>, vector<3x32xbf16>
    %cst_68 = arith.constant dense<0.000000e+00> : vector<3x64xf32>
    %83 = tpu.matmul %82, %81, %cst_68 {dimension_numbers = #tpu.dot_dimension_numbers<[1], [0], [0], [1], [0, 0, 1, 1], [], []>} : vector<3x32xbf16>, vector<32x64xbf16>, vector<3x64xf32> -> vector<3x64xf32>
    %84 = arith.addf %73, %83 : vector<3x64xf32>
    %c25 = arith.constant 25 : index
    %c0_69 = arith.constant 0 : index
    %85 = vector.load %arg13[%c25, %c0_69] : memref<64x32xbf16, #tpu.memory_space<vmem>>, vector<3x32xbf16>
    %cst_70 = arith.constant dense<0.000000e+00> : vector<3x64xf32>
    %86 = tpu.matmul %85, %81, %cst_70 {dimension_numbers = #tpu.dot_dimension_numbers<[1], [0], [0], [1], [0, 0, 1, 1], [], []>} : vector<3x32xbf16>, vector<32x64xbf16>, vector<3x64xf32> -> vector<3x64xf32>
    %87 = arith.addf %76, %86 : vector<3x64xf32>
    %c41 = arith.constant 41 : index
    %c0_71 = arith.constant 0 : index
    %88 = vector.load %arg13[%c41, %c0_71] : memref<64x32xbf16, #tpu.memory_space<vmem>>, vector<3x32xbf16>
    %cst_72 = arith.constant dense<0.000000e+00> : vector<3x64xf32>
    %89 = tpu.matmul %88, %81, %cst_72 {dimension_numbers = #tpu.dot_dimension_numbers<[1], [0], [0], [1], [0, 0, 1, 1], [], []>} : vector<3x32xbf16>, vector<32x64xbf16>, vector<3x64xf32> -> vector<3x64xf32>
    %90 = arith.addf %79, %89 : vector<3x64xf32>
    %c7 = arith.constant 7 : index
    %c0_73 = arith.constant 0 : index
    %c0_74 = arith.constant 0 : index
    %91 = vector.load %arg4[%c7, %c0_73, %c0_74] : memref<16x32x64xbf16, #tpu.memory_space<vmem>>, vector<1x32x64xbf16>
    %92 = vector.shape_cast %91 : vector<1x32x64xbf16> to vector<32x64xbf16>
    %c13 = arith.constant 13 : index
    %c0_75 = arith.constant 0 : index
    %93 = vector.load %arg13[%c13, %c0_75] : memref<64x32xbf16, #tpu.memory_space<vmem>>, vector<3x32xbf16>
    %cst_76 = arith.constant dense<0.000000e+00> : vector<3x64xf32>
    %94 = tpu.matmul %93, %92, %cst_76 {dimension_numbers = #tpu.dot_dimension_numbers<[1], [0], [0], [1], [0, 0, 1, 1], [], []>} : vector<3x32xbf16>, vector<32x64xbf16>, vector<3x64xf32> -> vector<3x64xf32>
    %95 = arith.addf %84, %94 : vector<3x64xf32>
    %c29 = arith.constant 29 : index
    %c0_77 = arith.constant 0 : index
    %96 = vector.load %arg13[%c29, %c0_77] : memref<64x32xbf16, #tpu.memory_space<vmem>>, vector<3x32xbf16>
    %cst_78 = arith.constant dense<0.000000e+00> : vector<3x64xf32>
    %97 = tpu.matmul %96, %92, %cst_78 {dimension_numbers = #tpu.dot_dimension_numbers<[1], [0], [0], [1], [0, 0, 1, 1], [], []>} : vector<3x32xbf16>, vector<32x64xbf16>, vector<3x64xf32> -> vector<3x64xf32>
    %98 = arith.addf %87, %97 : vector<3x64xf32>
    %c45 = arith.constant 45 : index
    %c0_79 = arith.constant 0 : index
    %99 = vector.load %arg13[%c45, %c0_79] : memref<64x32xbf16, #tpu.memory_space<vmem>>, vector<3x32xbf16>
    %cst_80 = arith.constant dense<0.000000e+00> : vector<3x64xf32>
    %100 = tpu.matmul %99, %92, %cst_80 {dimension_numbers = #tpu.dot_dimension_numbers<[1], [0], [0], [1], [0, 0, 1, 1], [], []>} : vector<3x32xbf16>, vector<32x64xbf16>, vector<3x64xf32> -> vector<3x64xf32>
    %101 = arith.addf %90, %100 : vector<3x64xf32>
    %c8_81 = arith.constant 8 : index
    %c0_82 = arith.constant 0 : index
    %c0_83 = arith.constant 0 : index
    %102 = vector.load %arg4[%c8_81, %c0_82, %c0_83] : memref<16x32x64xbf16, #tpu.memory_space<vmem>>, vector<1x32x64xbf16>
    %103 = vector.shape_cast %102 : vector<1x32x64xbf16> to vector<32x64xbf16>
    %c16_84 = arith.constant 16 : index
    %c0_85 = arith.constant 0 : index
    %104 = vector.load %arg13[%c16_84, %c0_85] : memref<64x32xbf16, #tpu.memory_space<vmem>>, vector<3x32xbf16>
    %cst_86 = arith.constant dense<0.000000e+00> : vector<3x64xf32>
    %105 = tpu.matmul %104, %103, %cst_86 {dimension_numbers = #tpu.dot_dimension_numbers<[1], [0], [0], [1], [0, 0, 1, 1], [], []>} : vector<3x32xbf16>, vector<32x64xbf16>, vector<3x64xf32> -> vector<3x64xf32>
    %106 = arith.addf %95, %105 : vector<3x64xf32>
    %c32_87 = arith.constant 32 : index
    %c0_88 = arith.constant 0 : index
    %107 = vector.load %arg13[%c32_87, %c0_88] : memref<64x32xbf16, #tpu.memory_space<vmem>>, vector<3x32xbf16>
    %cst_89 = arith.constant dense<0.000000e+00> : vector<3x64xf32>
    %108 = tpu.matmul %107, %103, %cst_89 {dimension_numbers = #tpu.dot_dimension_numbers<[1], [0], [0], [1], [0, 0, 1, 1], [], []>} : vector<3x32xbf16>, vector<32x64xbf16>, vector<3x64xf32> -> vector<3x64xf32>
    %109 = arith.addf %98, %108 : vector<3x64xf32>
    %c48 = arith.constant 48 : index
    %c0_90 = arith.constant 0 : index
    %110 = vector.load %arg13[%c48, %c0_90] : memref<64x32xbf16, #tpu.memory_space<vmem>>, vector<3x32xbf16>
    %cst_91 = arith.constant dense<0.000000e+00> : vector<3x64xf32>
    %111 = tpu.matmul %110, %103, %cst_91 {dimension_numbers = #tpu.dot_dimension_numbers<[1], [0], [0], [1], [0, 0, 1, 1], [], []>} : vector<3x32xbf16>, vector<32x64xbf16>, vector<3x64xf32> -> vector<3x64xf32>
    %112 = arith.addf %101, %111 : vector<3x64xf32>
    %c9_92 = arith.constant 9 : index
    %c0_93 = arith.constant 0 : index
    %c0_94 = arith.constant 0 : index
    %113 = vector.load %arg4[%c9_92, %c0_93, %c0_94] : memref<16x32x64xbf16, #tpu.memory_space<vmem>>, vector<1x32x64xbf16>
    %114 = vector.shape_cast %113 : vector<1x32x64xbf16> to vector<32x64xbf16>
    %c20_95 = arith.constant 20 : index
    %c0_96 = arith.constant 0 : index
    %115 = vector.load %arg13[%c20_95, %c0_96] : memref<64x32xbf16, #tpu.memory_space<vmem>>, vector<3x32xbf16>
    %cst_97 = arith.constant dense<0.000000e+00> : vector<3x64xf32>
    %116 = tpu.matmul %115, %114, %cst_97 {dimension_numbers = #tpu.dot_dimension_numbers<[1], [0], [0], [1], [0, 0, 1, 1], [], []>} : vector<3x32xbf16>, vector<32x64xbf16>, vector<3x64xf32> -> vector<3x64xf32>
    %117 = arith.addf %106, %116 : vector<3x64xf32>
    %c36_98 = arith.constant 36 : index
    %c0_99 = arith.constant 0 : index
    %118 = vector.load %arg13[%c36_98, %c0_99] : memref<64x32xbf16, #tpu.memory_space<vmem>>, vector<3x32xbf16>
    %cst_100 = arith.constant dense<0.000000e+00> : vector<3x64xf32>
    %119 = tpu.matmul %118, %114, %cst_100 {dimension_numbers = #tpu.dot_dimension_numbers<[1], [0], [0], [1], [0, 0, 1, 1], [], []>} : vector<3x32xbf16>, vector<32x64xbf16>, vector<3x64xf32> -> vector<3x64xf32>
    %120 = arith.addf %109, %119 : vector<3x64xf32>
    %c52 = arith.constant 52 : index
    %c0_101 = arith.constant 0 : index
    %121 = vector.load %arg13[%c52, %c0_101] : memref<64x32xbf16, #tpu.memory_space<vmem>>, vector<3x32xbf16>
    %cst_102 = arith.constant dense<0.000000e+00> : vector<3x64xf32>
    %122 = tpu.matmul %121, %114, %cst_102 {dimension_numbers = #tpu.dot_dimension_numbers<[1], [0], [0], [1], [0, 0, 1, 1], [], []>} : vector<3x32xbf16>, vector<32x64xbf16>, vector<3x64xf32> -> vector<3x64xf32>
    %123 = arith.addf %112, %122 : vector<3x64xf32>
    %c10 = arith.constant 10 : index
    %c0_103 = arith.constant 0 : index
    %c0_104 = arith.constant 0 : index
    %124 = vector.load %arg4[%c10, %c0_103, %c0_104] : memref<16x32x64xbf16, #tpu.memory_space<vmem>>, vector<1x32x64xbf16>
    %125 = vector.shape_cast %124 : vector<1x32x64xbf16> to vector<32x64xbf16>
    %c17_105 = arith.constant 17 : index
    %c0_106 = arith.constant 0 : index
    %126 = vector.load %arg13[%c17_105, %c0_106] : memref<64x32xbf16, #tpu.memory_space<vmem>>, vector<3x32xbf16>
    %cst_107 = arith.constant dense<0.000000e+00> : vector<3x64xf32>
    %127 = tpu.matmul %126, %125, %cst_107 {dimension_numbers = #tpu.dot_dimension_numbers<[1], [0], [0], [1], [0, 0, 1, 1], [], []>} : vector<3x32xbf16>, vector<32x64xbf16>, vector<3x64xf32> -> vector<3x64xf32>
    %128 = arith.addf %117, %127 : vector<3x64xf32>
    %c33_108 = arith.constant 33 : index
    %c0_109 = arith.constant 0 : index
    %129 = vector.load %arg13[%c33_108, %c0_109] : memref<64x32xbf16, #tpu.memory_space<vmem>>, vector<3x32xbf16>
    %cst_110 = arith.constant dense<0.000000e+00> : vector<3x64xf32>
    %130 = tpu.matmul %129, %125, %cst_110 {dimension_numbers = #tpu.dot_dimension_numbers<[1], [0], [0], [1], [0, 0, 1, 1], [], []>} : vector<3x32xbf16>, vector<32x64xbf16>, vector<3x64xf32> -> vector<3x64xf32>
    %131 = arith.addf %120, %130 : vector<3x64xf32>
    %c49 = arith.constant 49 : index
    %c0_111 = arith.constant 0 : index
    %132 = vector.load %arg13[%c49, %c0_111] : memref<64x32xbf16, #tpu.memory_space<vmem>>, vector<3x32xbf16>
    %cst_112 = arith.constant dense<0.000000e+00> : vector<3x64xf32>
    %133 = tpu.matmul %132, %125, %cst_112 {dimension_numbers = #tpu.dot_dimension_numbers<[1], [0], [0], [1], [0, 0, 1, 1], [], []>} : vector<3x32xbf16>, vector<32x64xbf16>, vector<3x64xf32> -> vector<3x64xf32>
    %134 = arith.addf %123, %133 : vector<3x64xf32>
    %c11 = arith.constant 11 : index
    %c0_113 = arith.constant 0 : index
    %c0_114 = arith.constant 0 : index
    %135 = vector.load %arg4[%c11, %c0_113, %c0_114] : memref<16x32x64xbf16, #tpu.memory_space<vmem>>, vector<1x32x64xbf16>
    %136 = vector.shape_cast %135 : vector<1x32x64xbf16> to vector<32x64xbf16>
    %c21_115 = arith.constant 21 : index
    %c0_116 = arith.constant 0 : index
    %137 = vector.load %arg13[%c21_115, %c0_116] : memref<64x32xbf16, #tpu.memory_space<vmem>>, vector<3x32xbf16>
    %cst_117 = arith.constant dense<0.000000e+00> : vector<3x64xf32>
    %138 = tpu.matmul %137, %136, %cst_117 {dimension_numbers = #tpu.dot_dimension_numbers<[1], [0], [0], [1], [0, 0, 1, 1], [], []>} : vector<3x32xbf16>, vector<32x64xbf16>, vector<3x64xf32> -> vector<3x64xf32>
    %139 = arith.addf %128, %138 : vector<3x64xf32>
    %c37_118 = arith.constant 37 : index
    %c0_119 = arith.constant 0 : index
    %140 = vector.load %arg13[%c37_118, %c0_119] : memref<64x32xbf16, #tpu.memory_space<vmem>>, vector<3x32xbf16>
    %cst_120 = arith.constant dense<0.000000e+00> : vector<3x64xf32>
    %141 = tpu.matmul %140, %136, %cst_120 {dimension_numbers = #tpu.dot_dimension_numbers<[1], [0], [0], [1], [0, 0, 1, 1], [], []>} : vector<3x32xbf16>, vector<32x64xbf16>, vector<3x64xf32> -> vector<3x64xf32>
    %142 = arith.addf %131, %141 : vector<3x64xf32>
    %c53 = arith.constant 53 : index
    %c0_121 = arith.constant 0 : index
    %143 = vector.load %arg13[%c53, %c0_121] : memref<64x32xbf16, #tpu.memory_space<vmem>>, vector<3x32xbf16>
    %cst_122 = arith.constant dense<0.000000e+00> : vector<3x64xf32>
    %144 = tpu.matmul %143, %136, %cst_122 {dimension_numbers = #tpu.dot_dimension_numbers<[1], [0], [0], [1], [0, 0, 1, 1], [], []>} : vector<3x32xbf16>, vector<32x64xbf16>, vector<3x64xf32> -> vector<3x64xf32>
    %145 = arith.addf %134, %144 : vector<3x64xf32>
    %c12_123 = arith.constant 12 : index
    %c0_124 = arith.constant 0 : index
    %c0_125 = arith.constant 0 : index
    %146 = vector.load %arg4[%c12_123, %c0_124, %c0_125] : memref<16x32x64xbf16, #tpu.memory_space<vmem>>, vector<1x32x64xbf16>
    %147 = vector.shape_cast %146 : vector<1x32x64xbf16> to vector<32x64xbf16>
    %c24_126 = arith.constant 24 : index
    %c0_127 = arith.constant 0 : index
    %148 = vector.load %arg13[%c24_126, %c0_127] : memref<64x32xbf16, #tpu.memory_space<vmem>>, vector<3x32xbf16>
    %cst_128 = arith.constant dense<0.000000e+00> : vector<3x64xf32>
    %149 = tpu.matmul %148, %147, %cst_128 {dimension_numbers = #tpu.dot_dimension_numbers<[1], [0], [0], [1], [0, 0, 1, 1], [], []>} : vector<3x32xbf16>, vector<32x64xbf16>, vector<3x64xf32> -> vector<3x64xf32>
    %150 = arith.addf %139, %149 : vector<3x64xf32>
    %c40_129 = arith.constant 40 : index
    %c0_130 = arith.constant 0 : index
    %151 = vector.load %arg13[%c40_129, %c0_130] : memref<64x32xbf16, #tpu.memory_space<vmem>>, vector<3x32xbf16>
    %cst_131 = arith.constant dense<0.000000e+00> : vector<3x64xf32>
    %152 = tpu.matmul %151, %147, %cst_131 {dimension_numbers = #tpu.dot_dimension_numbers<[1], [0], [0], [1], [0, 0, 1, 1], [], []>} : vector<3x32xbf16>, vector<32x64xbf16>, vector<3x64xf32> -> vector<3x64xf32>
    %153 = arith.addf %142, %152 : vector<3x64xf32>
    %c56 = arith.constant 56 : index
    %c0_132 = arith.constant 0 : index
    %154 = vector.load %arg13[%c56, %c0_132] : memref<64x32xbf16, #tpu.memory_space<vmem>>, vector<3x32xbf16>
    %cst_133 = arith.constant dense<0.000000e+00> : vector<3x64xf32>
    %155 = tpu.matmul %154, %147, %cst_133 {dimension_numbers = #tpu.dot_dimension_numbers<[1], [0], [0], [1], [0, 0, 1, 1], [], []>} : vector<3x32xbf16>, vector<32x64xbf16>, vector<3x64xf32> -> vector<3x64xf32>
    %156 = arith.addf %145, %155 : vector<3x64xf32>
    %c13_134 = arith.constant 13 : index
    %c0_135 = arith.constant 0 : index
    %c0_136 = arith.constant 0 : index
    %157 = vector.load %arg4[%c13_134, %c0_135, %c0_136] : memref<16x32x64xbf16, #tpu.memory_space<vmem>>, vector<1x32x64xbf16>
    %158 = vector.shape_cast %157 : vector<1x32x64xbf16> to vector<32x64xbf16>
    %c28_137 = arith.constant 28 : index
    %c0_138 = arith.constant 0 : index
    %159 = vector.load %arg13[%c28_137, %c0_138] : memref<64x32xbf16, #tpu.memory_space<vmem>>, vector<3x32xbf16>
    %cst_139 = arith.constant dense<0.000000e+00> : vector<3x64xf32>
    %160 = tpu.matmul %159, %158, %cst_139 {dimension_numbers = #tpu.dot_dimension_numbers<[1], [0], [0], [1], [0, 0, 1, 1], [], []>} : vector<3x32xbf16>, vector<32x64xbf16>, vector<3x64xf32> -> vector<3x64xf32>
    %161 = arith.addf %150, %160 : vector<3x64xf32>
    %c44_140 = arith.constant 44 : index
    %c0_141 = arith.constant 0 : index
    %162 = vector.load %arg13[%c44_140, %c0_141] : memref<64x32xbf16, #tpu.memory_space<vmem>>, vector<3x32xbf16>
    %cst_142 = arith.constant dense<0.000000e+00> : vector<3x64xf32>
    %163 = tpu.matmul %162, %158, %cst_142 {dimension_numbers = #tpu.dot_dimension_numbers<[1], [0], [0], [1], [0, 0, 1, 1], [], []>} : vector<3x32xbf16>, vector<32x64xbf16>, vector<3x64xf32> -> vector<3x64xf32>
    %164 = arith.addf %153, %163 : vector<3x64xf32>
    %c60 = arith.constant 60 : index
    %c0_143 = arith.constant 0 : index
    %165 = vector.load %arg13[%c60, %c0_143] : memref<64x32xbf16, #tpu.memory_space<vmem>>, vector<3x32xbf16>
    %cst_144 = arith.constant dense<0.000000e+00> : vector<3x64xf32>
    %166 = tpu.matmul %165, %158, %cst_144 {dimension_numbers = #tpu.dot_dimension_numbers<[1], [0], [0], [1], [0, 0, 1, 1], [], []>} : vector<3x32xbf16>, vector<32x64xbf16>, vector<3x64xf32> -> vector<3x64xf32>
    %167 = arith.addf %156, %166 : vector<3x64xf32>
    %c14 = arith.constant 14 : index
    %c0_145 = arith.constant 0 : index
    %c0_146 = arith.constant 0 : index
    %168 = vector.load %arg4[%c14, %c0_145, %c0_146] : memref<16x32x64xbf16, #tpu.memory_space<vmem>>, vector<1x32x64xbf16>
    %169 = vector.shape_cast %168 : vector<1x32x64xbf16> to vector<32x64xbf16>
    %c25_147 = arith.constant 25 : index
    %c0_148 = arith.constant 0 : index
    %170 = vector.load %arg13[%c25_147, %c0_148] : memref<64x32xbf16, #tpu.memory_space<vmem>>, vector<3x32xbf16>
    %cst_149 = arith.constant dense<0.000000e+00> : vector<3x64xf32>
    %171 = tpu.matmul %170, %169, %cst_149 {dimension_numbers = #tpu.dot_dimension_numbers<[1], [0], [0], [1], [0, 0, 1, 1], [], []>} : vector<3x32xbf16>, vector<32x64xbf16>, vector<3x64xf32> -> vector<3x64xf32>
    %172 = arith.addf %161, %171 : vector<3x64xf32>
    %c41_150 = arith.constant 41 : index
    %c0_151 = arith.constant 0 : index
    %173 = vector.load %arg13[%c41_150, %c0_151] : memref<64x32xbf16, #tpu.memory_space<vmem>>, vector<3x32xbf16>
    %cst_152 = arith.constant dense<0.000000e+00> : vector<3x64xf32>
    %174 = tpu.matmul %173, %169, %cst_152 {dimension_numbers = #tpu.dot_dimension_numbers<[1], [0], [0], [1], [0, 0, 1, 1], [], []>} : vector<3x32xbf16>, vector<32x64xbf16>, vector<3x64xf32> -> vector<3x64xf32>
    %175 = arith.addf %164, %174 : vector<3x64xf32>
    %c57 = arith.constant 57 : index
    %c0_153 = arith.constant 0 : index
    %176 = vector.load %arg13[%c57, %c0_153] : memref<64x32xbf16, #tpu.memory_space<vmem>>, vector<3x32xbf16>
    %cst_154 = arith.constant dense<0.000000e+00> : vector<3x64xf32>
    %177 = tpu.matmul %176, %169, %cst_154 {dimension_numbers = #tpu.dot_dimension_numbers<[1], [0], [0], [1], [0, 0, 1, 1], [], []>} : vector<3x32xbf16>, vector<32x64xbf16>, vector<3x64xf32> -> vector<3x64xf32>
    %178 = arith.addf %167, %177 : vector<3x64xf32>
    %c15 = arith.constant 15 : index
    %c0_155 = arith.constant 0 : index
    %c0_156 = arith.constant 0 : index
    %179 = vector.load %arg4[%c15, %c0_155, %c0_156] : memref<16x32x64xbf16, #tpu.memory_space<vmem>>, vector<1x32x64xbf16>
    %180 = vector.shape_cast %179 : vector<1x32x64xbf16> to vector<32x64xbf16>
    %c29_157 = arith.constant 29 : index
    %c0_158 = arith.constant 0 : index
    %181 = vector.load %arg13[%c29_157, %c0_158] : memref<64x32xbf16, #tpu.memory_space<vmem>>, vector<3x32xbf16>
    %cst_159 = arith.constant dense<0.000000e+00> : vector<3x64xf32>
    %182 = tpu.matmul %181, %180, %cst_159 {dimension_numbers = #tpu.dot_dimension_numbers<[1], [0], [0], [1], [0, 0, 1, 1], [], []>} : vector<3x32xbf16>, vector<32x64xbf16>, vector<3x64xf32> -> vector<3x64xf32>
    %183 = arith.addf %172, %182 : vector<3x64xf32>
    %c45_160 = arith.constant 45 : index
    %c0_161 = arith.constant 0 : index
    %184 = vector.load %arg13[%c45_160, %c0_161] : memref<64x32xbf16, #tpu.memory_space<vmem>>, vector<3x32xbf16>
    %cst_162 = arith.constant dense<0.000000e+00> : vector<3x64xf32>
    %185 = tpu.matmul %184, %180, %cst_162 {dimension_numbers = #tpu.dot_dimension_numbers<[1], [0], [0], [1], [0, 0, 1, 1], [], []>} : vector<3x32xbf16>, vector<32x64xbf16>, vector<3x64xf32> -> vector<3x64xf32>
    %186 = arith.addf %175, %185 : vector<3x64xf32>
    %c61 = arith.constant 61 : index
    %c0_163 = arith.constant 0 : index
    %187 = vector.load %arg13[%c61, %c0_163] : memref<64x32xbf16, #tpu.memory_space<vmem>>, vector<3x32xbf16>
    %cst_164 = arith.constant dense<0.000000e+00> : vector<3x64xf32>
    %188 = tpu.matmul %187, %180, %cst_164 {dimension_numbers = #tpu.dot_dimension_numbers<[1], [0], [0], [1], [0, 0, 1, 1], [], []>} : vector<3x32xbf16>, vector<32x64xbf16>, vector<3x64xf32> -> vector<3x64xf32>
    %189 = arith.addf %178, %188 : vector<3x64xf32>
    %c0_165 = arith.constant 0 : index
    %c0_166 = arith.constant 0 : index
    %190 = vector.load %arg5[%c0_165, %c0_166] : memref<1x64xf32, #tpu.memory_space<vmem>>, vector<1x64xf32>
    %191 = vector.broadcast %190 : vector<1x64xf32> to vector<3x64xf32>
    %192 = arith.addf %183, %191 : vector<3x64xf32>
    %cst_167 = arith.constant 0.000000e+00 : f32
    %193 = vector.broadcast %cst_167 : f32 to vector<3x64xf32>
    %194 = arith.maximumf %192, %193 : vector<3x64xf32>
    %195 = arith.truncf %194 : vector<3x64xf32> to vector<3x64xbf16>
    %c0_168 = arith.constant 0 : index
    %c0_169 = arith.constant 0 : index
    %196 = vector.load %arg14[%c0_168, %c0_169] : memref<16x64xbf16, #tpu.memory_space<vmem>>, vector<3x64xbf16>
    tpu.vector_store %arg14[%c0_168, %c0_169], %195 {strides = array<i32>} : memref<16x64xbf16, #tpu.memory_space<vmem>>, vector<3x64xbf16>,
    %c0_170 = arith.constant 0 : index
    %c0_171 = arith.constant 0 : index
    %197 = vector.load %arg5[%c0_170, %c0_171] : memref<1x64xf32, #tpu.memory_space<vmem>>, vector<1x64xf32>
    %198 = vector.broadcast %197 : vector<1x64xf32> to vector<3x64xf32>
    %199 = arith.addf %186, %198 : vector<3x64xf32>
    %cst_172 = arith.constant 0.000000e+00 : f32
    %200 = vector.broadcast %cst_172 : f32 to vector<3x64xf32>
    %201 = arith.maximumf %199, %200 : vector<3x64xf32>
    %202 = arith.truncf %201 : vector<3x64xf32> to vector<3x64xbf16>
    %c3_173 = arith.constant 3 : index
    %c0_174 = arith.constant 0 : index
    %203 = vector.load %arg14[%c3_173, %c0_174] : memref<16x64xbf16, #tpu.memory_space<vmem>>, vector<3x64xbf16>
    tpu.vector_store %arg14[%c3_173, %c0_174], %202 {strides = array<i32>} : memref<16x64xbf16, #tpu.memory_space<vmem>>, vector<3x64xbf16>,
    %c0_175 = arith.constant 0 : index
    %c0_176 = arith.constant 0 : index
    %204 = vector.load %arg5[%c0_175, %c0_176] : memref<1x64xf32, #tpu.memory_space<vmem>>, vector<1x64xf32>
    %205 = vector.broadcast %204 : vector<1x64xf32> to vector<3x64xf32>
    %206 = arith.addf %189, %205 : vector<3x64xf32>
    %cst_177 = arith.constant 0.000000e+00 : f32
    %207 = vector.broadcast %cst_177 : f32 to vector<3x64xf32>
    %208 = arith.maximumf %206, %207 : vector<3x64xf32>
    %209 = arith.truncf %208 : vector<3x64xf32> to vector<3x64xbf16>
    %c6_178 = arith.constant 6 : index
    %c0_179 = arith.constant 0 : index
    %210 = vector.load %arg14[%c6_178, %c0_179] : memref<16x64xbf16, #tpu.memory_space<vmem>>, vector<3x64xbf16>
    tpu.vector_store %arg14[%c6_178, %c0_179], %209 {strides = array<i32>} : memref<16x64xbf16, #tpu.memory_space<vmem>>, vector<3x64xbf16>,
    %cst_180 = arith.constant 0.000000e+00 : f32
    %211 = vector.broadcast %cst_180 : f32 to vector<1x64xf32>
    %c0_181 = arith.constant 0 : index
    %c0_182 = arith.constant 0 : index
    %212 = vector.load %arg14[%c0_181, %c0_182] : memref<16x64xbf16, #tpu.memory_space<vmem>>, vector<1x64xbf16>
    %c0_183 = arith.constant 0 : index
    %c0_184 = arith.constant 0 : index
    %c0_185 = arith.constant 0 : index
    %213 = vector.load %arg6[%c0_183, %c0_184, %c0_185] : memref<9x64x64xbf16, #tpu.memory_space<vmem>>, vector<1x64x64xbf16>
    %214 = vector.shape_cast %213 : vector<1x64x64xbf16> to vector<64x64xbf16>
    %cst_186 = arith.constant dense<0.000000e+00> : vector<1x64xf32>
    %215 = tpu.matmul %212, %214, %cst_186 {dimension_numbers = #tpu.dot_dimension_numbers<[1], [0], [0], [1], [0, 0, 1, 1], [], []>} : vector<1x64xbf16>, vector<64x64xbf16>, vector<1x64xf32> -> vector<1x64xf32>
    %216 = arith.addf %211, %215 : vector<1x64xf32>
    %c1_187 = arith.constant 1 : index
    %c0_188 = arith.constant 0 : index
    %217 = vector.load %arg14[%c1_187, %c0_188] : memref<16x64xbf16, #tpu.memory_space<vmem>>, vector<1x64xbf16>
    %c1_189 = arith.constant 1 : index
    %c0_190 = arith.constant 0 : index
    %c0_191 = arith.constant 0 : index
    %218 = vector.load %arg6[%c1_189, %c0_190, %c0_191] : memref<9x64x64xbf16, #tpu.memory_space<vmem>>, vector<1x64x64xbf16>
    %219 = vector.shape_cast %218 : vector<1x64x64xbf16> to vector<64x64xbf16>
    %cst_192 = arith.constant dense<0.000000e+00> : vector<1x64xf32>
    %220 = tpu.matmul %217, %219, %cst_192 {dimension_numbers = #tpu.dot_dimension_numbers<[1], [0], [0], [1], [0, 0, 1, 1], [], []>} : vector<1x64xbf16>, vector<64x64xbf16>, vector<1x64xf32> -> vector<1x64xf32>
    %221 = arith.addf %216, %220 : vector<1x64xf32>
    %c2_193 = arith.constant 2 : index
    %c0_194 = arith.constant 0 : index
    %222 = vector.load %arg14[%c2_193, %c0_194] : memref<16x64xbf16, #tpu.memory_space<vmem>>, vector<1x64xbf16>
    %c2_195 = arith.constant 2 : index
    %c0_196 = arith.constant 0 : index
    %c0_197 = arith.constant 0 : index
    %223 = vector.load %arg6[%c2_195, %c0_196, %c0_197] : memref<9x64x64xbf16, #tpu.memory_space<vmem>>, vector<1x64x64xbf16>
    %224 = vector.shape_cast %223 : vector<1x64x64xbf16> to vector<64x64xbf16>
    %cst_198 = arith.constant dense<0.000000e+00> : vector<1x64xf32>
    %225 = tpu.matmul %222, %224, %cst_198 {dimension_numbers = #tpu.dot_dimension_numbers<[1], [0], [0], [1], [0, 0, 1, 1], [], []>} : vector<1x64xbf16>, vector<64x64xbf16>, vector<1x64xf32> -> vector<1x64xf32>
    %226 = arith.addf %221, %225 : vector<1x64xf32>
    %c3_199 = arith.constant 3 : index
    %c0_200 = arith.constant 0 : index
    %227 = vector.load %arg14[%c3_199, %c0_200] : memref<16x64xbf16, #tpu.memory_space<vmem>>, vector<1x64xbf16>
    %c3_201 = arith.constant 3 : index
    %c0_202 = arith.constant 0 : index
    %c0_203 = arith.constant 0 : index
    %228 = vector.load %arg6[%c3_201, %c0_202, %c0_203] : memref<9x64x64xbf16, #tpu.memory_space<vmem>>, vector<1x64x64xbf16>
    %229 = vector.shape_cast %228 : vector<1x64x64xbf16> to vector<64x64xbf16>
    %cst_204 = arith.constant dense<0.000000e+00> : vector<1x64xf32>
    %230 = tpu.matmul %227, %229, %cst_204 {dimension_numbers = #tpu.dot_dimension_numbers<[1], [0], [0], [1], [0, 0, 1, 1], [], []>} : vector<1x64xbf16>, vector<64x64xbf16>, vector<1x64xf32> -> vector<1x64xf32>
    %231 = arith.addf %226, %230 : vector<1x64xf32>
    %c4_205 = arith.constant 4 : index
    %c0_206 = arith.constant 0 : index
    %232 = vector.load %arg14[%c4_205, %c0_206] : memref<16x64xbf16, #tpu.memory_space<vmem>>, vector<1x64xbf16>
    %c4_207 = arith.constant 4 : index
    %c0_208 = arith.constant 0 : index
    %c0_209 = arith.constant 0 : index
    %233 = vector.load %arg6[%c4_207, %c0_208, %c0_209] : memref<9x64x64xbf16, #tpu.memory_space<vmem>>, vector<1x64x64xbf16>
    %234 = vector.shape_cast %233 : vector<1x64x64xbf16> to vector<64x64xbf16>
    %cst_210 = arith.constant dense<0.000000e+00> : vector<1x64xf32>
    %235 = tpu.matmul %232, %234, %cst_210 {dimension_numbers = #tpu.dot_dimension_numbers<[1], [0], [0], [1], [0, 0, 1, 1], [], []>} : vector<1x64xbf16>, vector<64x64xbf16>, vector<1x64xf32> -> vector<1x64xf32>
    %236 = arith.addf %231, %235 : vector<1x64xf32>
    %c5_211 = arith.constant 5 : index
    %c0_212 = arith.constant 0 : index
    %237 = vector.load %arg14[%c5_211, %c0_212] : memref<16x64xbf16, #tpu.memory_space<vmem>>, vector<1x64xbf16>
    %c5_213 = arith.constant 5 : index
    %c0_214 = arith.constant 0 : index
    %c0_215 = arith.constant 0 : index
    %238 = vector.load %arg6[%c5_213, %c0_214, %c0_215] : memref<9x64x64xbf16, #tpu.memory_space<vmem>>, vector<1x64x64xbf16>
    %239 = vector.shape_cast %238 : vector<1x64x64xbf16> to vector<64x64xbf16>
    %cst_216 = arith.constant dense<0.000000e+00> : vector<1x64xf32>
    %240 = tpu.matmul %237, %239, %cst_216 {dimension_numbers = #tpu.dot_dimension_numbers<[1], [0], [0], [1], [0, 0, 1, 1], [], []>} : vector<1x64xbf16>, vector<64x64xbf16>, vector<1x64xf32> -> vector<1x64xf32>
    %241 = arith.addf %236, %240 : vector<1x64xf32>
    %c6_217 = arith.constant 6 : index
    %c0_218 = arith.constant 0 : index
    %242 = vector.load %arg14[%c6_217, %c0_218] : memref<16x64xbf16, #tpu.memory_space<vmem>>, vector<1x64xbf16>
    %c6_219 = arith.constant 6 : index
    %c0_220 = arith.constant 0 : index
    %c0_221 = arith.constant 0 : index
    %243 = vector.load %arg6[%c6_219, %c0_220, %c0_221] : memref<9x64x64xbf16, #tpu.memory_space<vmem>>, vector<1x64x64xbf16>
    %244 = vector.shape_cast %243 : vector<1x64x64xbf16> to vector<64x64xbf16>
    %cst_222 = arith.constant dense<0.000000e+00> : vector<1x64xf32>
    %245 = tpu.matmul %242, %244, %cst_222 {dimension_numbers = #tpu.dot_dimension_numbers<[1], [0], [0], [1], [0, 0, 1, 1], [], []>} : vector<1x64xbf16>, vector<64x64xbf16>, vector<1x64xf32> -> vector<1x64xf32>
    %246 = arith.addf %241, %245 : vector<1x64xf32>
    %c7_223 = arith.constant 7 : index
    %c0_224 = arith.constant 0 : index
    %247 = vector.load %arg14[%c7_223, %c0_224] : memref<16x64xbf16, #tpu.memory_space<vmem>>, vector<1x64xbf16>
    %c7_225 = arith.constant 7 : index
    %c0_226 = arith.constant 0 : index
    %c0_227 = arith.constant 0 : index
    %248 = vector.load %arg6[%c7_225, %c0_226, %c0_227] : memref<9x64x64xbf16, #tpu.memory_space<vmem>>, vector<1x64x64xbf16>
    %249 = vector.shape_cast %248 : vector<1x64x64xbf16> to vector<64x64xbf16>
    %cst_228 = arith.constant dense<0.000000e+00> : vector<1x64xf32>
    %250 = tpu.matmul %247, %249, %cst_228 {dimension_numbers = #tpu.dot_dimension_numbers<[1], [0], [0], [1], [0, 0, 1, 1], [], []>} : vector<1x64xbf16>, vector<64x64xbf16>, vector<1x64xf32> -> vector<1x64xf32>
    %251 = arith.addf %246, %250 : vector<1x64xf32>
    %c8_229 = arith.constant 8 : index
    %c0_230 = arith.constant 0 : index
    %252 = vector.load %arg14[%c8_229, %c0_230] : memref<16x64xbf16, #tpu.memory_space<vmem>>, vector<1x64xbf16>
    %c8_231 = arith.constant 8 : index
    %c0_232 = arith.constant 0 : index
    %c0_233 = arith.constant 0 : index
    %253 = vector.load %arg6[%c8_231, %c0_232, %c0_233] : memref<9x64x64xbf16, #tpu.memory_space<vmem>>, vector<1x64x64xbf16>
    %254 = vector.shape_cast %253 : vector<1x64x64xbf16> to vector<64x64xbf16>
    %cst_234 = arith.constant dense<0.000000e+00> : vector<1x64xf32>
    %255 = tpu.matmul %252, %254, %cst_234 {dimension_numbers = #tpu.dot_dimension_numbers<[1], [0], [0], [1], [0, 0, 1, 1], [], []>} : vector<1x64xbf16>, vector<64x64xbf16>, vector<1x64xf32> -> vector<1x64xf32>
    %256 = arith.addf %251, %255 : vector<1x64xf32>
    %c0_235 = arith.constant 0 : index
    %c0_236 = arith.constant 0 : index
    %257 = vector.load %arg7[%c0_235, %c0_236] : memref<1x64xf32, #tpu.memory_space<vmem>>, vector<1x64xf32>
    %258 = arith.addf %256, %257 : vector<1x64xf32>
    %cst_237 = arith.constant 0.000000e+00 : f32
    %259 = vector.broadcast %cst_237 : f32 to vector<1x64xf32>
    %260 = arith.maximumf %258, %259 : vector<1x64xf32>
    %261 = arith.truncf %260 : vector<1x64xf32> to vector<1x64xbf16>
    %c0_238 = arith.constant 0 : index
    %c0_239 = arith.constant 0 : index
    %262 = vector.load %arg8[%c0_238, %c0_239] : memref<64x512xbf16, #tpu.memory_space<vmem>>, vector<64x512xbf16>
    %cst_240 = arith.constant dense<0.000000e+00> : vector<1x512xf32>
    %263 = tpu.matmul %261, %262, %cst_240 {dimension_numbers = #tpu.dot_dimension_numbers<[1], [0], [0], [1], [0, 0, 1, 1], [], []>} : vector<1x64xbf16>, vector<64x512xbf16>, vector<1x512xf32> -> vector<1x512xf32>
    %c0_241 = arith.constant 0 : index
    %c0_242 = arith.constant 0 : index
    %264 = vector.load %arg9[%c0_241, %c0_242] : memref<1x512xf32, #tpu.memory_space<vmem>>, vector<1x512xf32>
    %265 = arith.addf %263, %264 : vector<1x512xf32>
    %cst_243 = arith.constant 0.000000e+00 : f32
    %266 = vector.broadcast %cst_243 : f32 to vector<1x512xf32>
    %267 = arith.maximumf %265, %266 : vector<1x512xf32>
    %268 = arith.truncf %267 : vector<1x512xf32> to vector<1x512xbf16>
    %c0_244 = arith.constant 0 : index
    %c0_245 = arith.constant 0 : index
    %269 = vector.load %arg10[%c0_244, %c0_245] : memref<512x128xbf16, #tpu.memory_space<vmem>>, vector<512x128xbf16>
    %cst_246 = arith.constant dense<0.000000e+00> : vector<1x128xf32>
    %270 = tpu.matmul %268, %269, %cst_246 {dimension_numbers = #tpu.dot_dimension_numbers<[1], [0], [0], [1], [0, 0, 1, 1], [], []>} : vector<1x512xbf16>, vector<512x128xbf16>, vector<1x128xf32> -> vector<1x128xf32>
    %c0_247 = arith.constant 0 : index
    %c0_248 = arith.constant 0 : index
    %271 = vector.load %arg11[%c0_247, %c0_248] : memref<1x128xf32, #tpu.memory_space<vmem>>, vector<1x128xf32>
    %272 = arith.addf %270, %271 : vector<1x128xf32>
    %c0_249 = arith.constant 0 : index
    %c0_250 = arith.constant 0 : index
    %c0_251 = arith.constant 0 : index
    %273 = vector.load %arg12[%c0_249, %c0_250, %c0_251] : memref<1x1x128xf32, #tpu.memory_space<vmem>>, vector<1x1x128xf32>
    %274 = vector.shape_cast %273 : vector<1x1x128xf32> to vector<1x128xf32>
    %275 = vector.shape_cast %272 : vector<1x128xf32> to vector<1x1x128xf32>
    tpu.vector_store %arg12[%c0_249, %c0_250, %c0_251], %275 {strides = array<i32>} : memref<1x1x128xf32, #tpu.memory_space<vmem>>, vector<1x1x128xf32>,
    return
  }
  func.func @transform_0(%arg0: i32) -> (i32, i32, i32) {
    %c0_i32 = arith.constant 0 : i32
    %c0_i32_0 = arith.constant 0 : i32
    %c0_i32_1 = arith.constant 0 : i32
    return %arg0, %c0_i32, %c0_i32_0 : i32, i32, i32
  }
  func.func @transform_1(%arg0: i32) -> (i32, i32) {
    %c0_i32 = arith.constant 0 : i32
    %c0_i32_0 = arith.constant 0 : i32
    %c0_i32_1 = arith.constant 0 : i32
    return %c0_i32, %c0_i32_0 : i32, i32
  }
  func.func @transform_2(%arg0: i32) -> (i32, i32) {
    %c0_i32 = arith.constant 0 : i32
    %c0_i32_0 = arith.constant 0 : i32
    %c0_i32_1 = arith.constant 0 : i32
    return %c0_i32, %c0_i32_0 : i32, i32
  }
  func.func @transform_3(%arg0: i32) -> (i32, i32, i32) {
    %c0_i32 = arith.constant 0 : i32
    %c0_i32_0 = arith.constant 0 : i32
    %c0_i32_1 = arith.constant 0 : i32
    %c0_i32_2 = arith.constant 0 : i32
    return %c0_i32, %c0_i32_0, %c0_i32_1 : i32, i32, i32
  }
  func.func @transform_4(%arg0: i32) -> (i32, i32) {
    %c0_i32 = arith.constant 0 : i32
    %c0_i32_0 = arith.constant 0 : i32
    %c0_i32_1 = arith.constant 0 : i32
    return %c0_i32, %c0_i32_0 : i32, i32
  }
  func.func @transform_5(%arg0: i32) -> (i32, i32, i32) {
    %c0_i32 = arith.constant 0 : i32
    %c0_i32_0 = arith.constant 0 : i32
    %c0_i32_1 = arith.constant 0 : i32
    %c0_i32_2 = arith.constant 0 : i32
    return %c0_i32, %c0_i32_0, %c0_i32_1 : i32, i32, i32
  }
  func.func @transform_6(%arg0: i32) -> (i32, i32) {
    %c0_i32 = arith.constant 0 : i32
    %c0_i32_0 = arith.constant 0 : i32
    %c0_i32_1 = arith.constant 0 : i32
    return %c0_i32, %c0_i32_0 : i32, i32
  }
  func.func @transform_7(%arg0: i32) -> (i32, i32) {
    %c0_i32 = arith.constant 0 : i32
    %c0_i32_0 = arith.constant 0 : i32
    %c0_i32_1 = arith.constant 0 : i32
    return %c0_i32, %c0_i32_0 : i32, i32
  }
  func.func @transform_8(%arg0: i32) -> (i32, i32) {
    %c0_i32 = arith.constant 0 : i32
    %c0_i32_0 = arith.constant 0 : i32
    %c0_i32_1 = arith.constant 0 : i32
    return %c0_i32, %c0_i32_0 : i32, i32
  }
  func.func @transform_9(%arg0: i32) -> (i32, i32) {
    %c0_i32 = arith.constant 0 : i32
    %c0_i32_0 = arith.constant 0 : i32
    %c0_i32_1 = arith.constant 0 : i32
    return %c0_i32, %c0_i32_0 : i32, i32
  }
  func.func @transform_10(%arg0: i32) -> (i32, i32) {
    %c0_i32 = arith.constant 0 : i32
    %c0_i32_0 = arith.constant 0 : i32
    %c0_i32_1 = arith.constant 0 : i32
    return %c0_i32, %c0_i32_0 : i32, i32
  }
  func.func @transform_11(%arg0: i32) -> (i32, i32, i32) {
    %c0_i32 = arith.constant 0 : i32
    %c0_i32_0 = arith.constant 0 : i32
    %c0_i32_1 = arith.constant 0 : i32
    return %arg0, %c0_i32, %c0_i32_0 : i32, i32, i32
  }
}

</mosaic_0001>

<llo_original>
// kernel: cnn_forward.1
$region0: #{cnn_forward.1}
  #allocation0 [shape = 'u32[]', space=smem, size = 0x4, offset = 0x4, fixed_abs, tag = 'smem constant byte address 0x4 - core index']
  #allocation1 [shape = 'u32[72,128]{1,0:T(1,128)}', space=vmem, size = 0x9000, scoped, tag = 'internal scratch']
  #allocation2 [shape = 'bf16[64,32]{1,0:T(8,128)(2,1)}', space=vmem, size = 0x4000, scoped, tag = 'scratch operand']
  #allocation3 [shape = 'bf16[16,64]{1,0:T(8,128)(2,1)}', space=vmem, size = 0x1000, scoped, tag = 'scratch operand']
  %s0 = inlined_call_operand.vmem [shape: bf16[2,64,256], index: 0, kind: input, shape index: {}]
  %s1 = inlined_call_operand.vmem [shape: bf16[256,32], index: 1, kind: input, shape index: {}]
  %s2 = inlined_call_operand.vmem [shape: f32[1,32], index: 2, kind: input, shape index: {}]
  %s3 = inlined_call_operand.vmem [shape: bf16[16,32,64], index: 3, kind: input, shape index: {}]
  %s4 = inlined_call_operand.vmem [shape: f32[1,64], index: 4, kind: input, shape index: {}]
  %s5 = inlined_call_operand.vmem [shape: bf16[9,64,64], index: 5, kind: input, shape index: {}]
  %s6 = inlined_call_operand.vmem [shape: f32[1,64], index: 6, kind: input, shape index: {}]
  %s7 = inlined_call_operand.vmem [shape: bf16[64,512], index: 7, kind: input, shape index: {}]
  %s8 = inlined_call_operand.vmem [shape: f32[1,512], index: 8, kind: input, shape index: {}]
  %s9 = inlined_call_operand.vmem [shape: bf16[512,128], index: 9, kind: input, shape index: {}]
  %s10 = inlined_call_operand.vmem [shape: f32[1,128], index: 10, kind: input, shape index: {}]
  %s11 = inlined_call_operand.hbm [shape: f32[2,1,128], index: 11, kind: output, shape index: {}]
  %s12 = sld [smem:[#allocation0]]
  $region77: #{cnn_forward.1} parent=0
    _
  %s14 = ssub.s32 1, %s12
  %s15 = scalar_select 0, %s14, %s12
  $region1: #{cnn_forward.1} parent=0
    #allocation4 [shape = 'u8[1024]{0}', space=vmem, size = 0x400, scoped, tag = 'output window, operand 0']
    #allocation5 [shape = 's32[2]{0}', space=sflag, size = 0x8, scoped, tag = 'scoped memory for cnn_forward.1']
    %16 = vsyncpa [#allocation5], 0
    %s17 = scalar_lea.sflag [#allocation5], 1
    %18 = vsyncpa %s17, 0
    loop: start=0, step=1, limit=4
    $region2: #{cnn_forward.1} parent=1 // loop_pre_header
      _
    $region3: #{cnn_forward.1} parent=1 // loop_header
      %s20 = sphi 0, %s24
      %p21 = scmp.ge.s32.totalorder %s20, 4
      %s30 = sphi 0, %s32
      %s33 = sphi 0, %s30
      %s34 = sphi 0, %s33
      %s50 = sphi 0, %s34
      %s54 = sphi 0, %s54
      %s56 = sphi 0, %s54
      %s57 = sphi 0, %s56
      %s71 = sphi 0, %s57
      %s75 = sphi 0, %s75
      %s77 = sphi 0, %s75
      %s78 = sphi 0, %s77
      %s92 = sphi 0, %s78
      %s96 = sphi 0, %s96
      %s98 = sphi 0, %s96
      %s99 = sphi 0, %s98
      %s113 = sphi 0, %s99
      %s117 = sphi 0, %s117
      %s119 = sphi 0, %s117
      %s120 = sphi 0, %s119
      %s134 = sphi 0, %s120
      %s138 = sphi 0, %s138
      %s140 = sphi 0, %s138
      %s141 = sphi 0, %s140
      %s155 = sphi 0, %s141
      %s159 = sphi 0, %s159
      %s161 = sphi 0, %s159
      %s162 = sphi 0, %s161
      %s176 = sphi 0, %s162
      %s180 = sphi 0, %s180
      %s182 = sphi 0, %s180
      %s183 = sphi 0, %s182
      %s197 = sphi 0, %s183
      %s201 = sphi 0, %s201
      %s203 = sphi 0, %s201
      %s204 = sphi 0, %s203
      %s218 = sphi 0, %s204
      %s222 = sphi 0, %s222
      %s224 = sphi 0, %s222
      %s225 = sphi 0, %s224
      %s239 = sphi 0, %s225
      %s243 = sphi 0, %s243
      %s245 = sphi 0, %s243
      %s246 = sphi 0, %s245
      %s260 = sphi 0, %s246
      %s266 = sphi 0, %s268
      %s269 = sphi 0, %s266
      %s270 = sphi 0, %s269
      %s286 = sphi 0, %s270
    $region4: #{cnn_forward.1} parent=1 // loop_header_branch
      %23 = sbr.rel (%p21) target = $region8
    $region5: #{cnn_forward.1} parent=1 // loop_body
      %s25 = ssub.s32 %s20, 1
      %s26 = ssub.s32 %s20, 2
      %s27 = sadd.s32 %s20, 1
      %s28 = ssub.s32 %s20, %s27
      %p29 = scmp.eq.s32.totalorder %s28, 0
      %s31 = sadd.s32 %s30, 1
      %s32 = scalar_select %p29, %s30, %s31
      %p35 = pneg %p29
      %p36 = scmp.eq.s32.totalorder %s20, 1
      %p37 = por %p35, %p36
      %p38 = scmp.ne.s32.totalorder %s30, %s33
      %p39 = scmp.eq.s32.totalorder %s20, 0
      %p40 = por %p38, %p39
      %p41 = scmp.ne.s32.totalorder %s30, %s33
      %p42 = scmp.eq.s32.totalorder %s25, 1
      %p43 = por %p41, %p42
      %p44 = scmp.ne.s32.totalorder %s33, %s34
      %p45 = scmp.eq.s32.totalorder %s25, 0
      %p46 = por %p44, %p45
      %p47 = scmp.ne.s32.totalorder %s33, %s34
      %p48 = scmp.eq.s32.totalorder %s26, 1
      %p49 = por %p47, %p48
      %p51 = scmp.ne.s32.totalorder %s34, %s50
      %p52 = scmp.eq.s32.totalorder %s26, 0
      %p53 = por %p51, %p52
      %s55 = sadd.s32 %s54, 1
      %p58 = scmp.eq.s32.totalorder %s20, 1
      %p59 = scmp.ne.s32.totalorder %s54, %s56
      %p60 = scmp.eq.s32.totalorder %s20, 0
      %p61 = por %p59, %p60
      %p62 = scmp.ne.s32.totalorder %s54, %s56
      %p63 = scmp.eq.s32.totalorder %s25, 1
      %p64 = por %p62, %p63
      %p65 = scmp.ne.s32.totalorder %s56, %s57
      %p66 = scmp.eq.s32.totalorder %s25, 0
      %p67 = por %p65, %p66
      %p68 = scmp.ne.s32.totalorder %s56, %s57
      %p69 = scmp.eq.s32.totalorder %s26, 1
      %p70 = por %p68, %p69
      %p72 = scmp.ne.s32.totalorder %s57, %s71
      %p73 = scmp.eq.s32.totalorder %s26, 0
      %p74 = por %p72, %p73
      %s76 = sadd.s32 %s75, 1
      %p79 = scmp.eq.s32.totalorder %s20, 1
      %p80 = scmp.ne.s32.totalorder %s75, %s77
      %p81 = scmp.eq.s32.totalorder %s20, 0
      %p82 = por %p80, %p81
      %p83 = scmp.ne.s32.totalorder %s75, %s77
      %p84 = scmp.eq.s32.totalorder %s25, 1
      %p85 = por %p83, %p84
      %p86 = scmp.ne.s32.totalorder %s77, %s78
      %p87 = scmp.eq.s32.totalorder %s25, 0
      %p88 = por %p86, %p87
      %p89 = scmp.ne.s32.totalorder %s77, %s78
      %p90 = scmp.eq.s32.totalorder %s26, 1
      %p91 = por %p89, %p90
      %p93 = scmp.ne.s32.totalorder %s78, %s92
      %p94 = scmp.eq.s32.totalorder %s26, 0
      %p95 = por %p93, %p94
      %s97 = sadd.s32 %s96, 1
      %p100 = scmp.eq.s32.totalorder %s20, 1
      %p101 = scmp.ne.s32.totalorder %s96, %s98
      %p102 = scmp.eq.s32.totalorder %s20, 0
      %p103 = por %p101, %p102
      %p104 = scmp.ne.s32.totalorder %s96, %s98
      %p105 = scmp.eq.s32.totalorder %s25, 1
      %p106 = por %p104, %p105
      %p107 = scmp.ne.s32.totalorder %s98, %s99
      %p108 = scmp.eq.s32.totalorder %s25, 0
      %p109 = por %p107, %p108
      %p110 = scmp.ne.s32.totalorder %s98, %s99
      %p111 = scmp.eq.s32.totalorder %s26, 1
      %p112 = por %p110, %p111
      %p114 = scmp.ne.s32.totalorder %s99, %s113
      %p115 = scmp.eq.s32.totalorder %s26, 0
      %p116 = por %p114, %p115
      %s118 = sadd.s32 %s117, 1
      %p121 = scmp.eq.s32.totalorder %s20, 1
      %p122 = scmp.ne.s32.totalorder %s117, %s119
      %p123 = scmp.eq.s32.totalorder %s20, 0
      %p124 = por %p122, %p123
      %p125 = scmp.ne.s32.totalorder %s117, %s119
      %p126 = scmp.eq.s32.totalorder %s25, 1
      %p127 = por %p125, %p126
      %p128 = scmp.ne.s32.totalorder %s119, %s120
      %p129 = scmp.eq.s32.totalorder %s25, 0
      %p130 = por %p128, %p129
      %p131 = scmp.ne.s32.totalorder %s119, %s120
      %p132 = scmp.eq.s32.totalorder %s26, 1
      %p133 = por %p131, %p132
      %p135 = scmp.ne.s32.totalorder %s120, %s134
      %p136 = scmp.eq.s32.totalorder %s26, 0
      %p137 = por %p135, %p136
      %s139 = sadd.s32 %s138, 1
      %p142 = scmp.eq.s32.totalorder %s20, 1
      %p143 = scmp.ne.s32.totalorder %s138, %s140
      %p144 = scmp.eq.s32.totalorder %s20, 0
      %p145 = por %p143, %p144
      %p146 = scmp.ne.s32.totalorder %s138, %s140
      %p147 = scmp.eq.s32.totalorder %s25, 1
      %p148 = por %p146, %p147
      %p149 = scmp.ne.s32.totalorder %s140, %s141
      %p150 = scmp.eq.s32.totalorder %s25, 0
      %p151 = por %p149, %p150
      %p152 = scmp.ne.s32.totalorder %s140, %s141
      %p153 = scmp.eq.s32.totalorder %s26, 1
      %p154 = por %p152, %p153
      %p156 = scmp.ne.s32.totalorder %s141, %s155
      %p157 = scmp.eq.s32.totalorder %s26, 0
      %p158 = por %p156, %p157
      %s160 = sadd.s32 %s159, 1
      %p163 = scmp.eq.s32.totalorder %s20, 1
      %p164 = scmp.ne.s32.totalorder %s159, %s161
      %p165 = scmp.eq.s32.totalorder %s20, 0
      %p166 = por %p164, %p165
      %p167 = scmp.ne.s32.totalorder %s159, %s161
      %p168 = scmp.eq.s32.totalorder %s25, 1
      %p169 = por %p167, %p168
      %p170 = scmp.ne.s32.totalorder %s161, %s162
      %p171 = scmp.eq.s32.totalorder %s25, 0
      %p172 = por %p170, %p171
      %p173 = scmp.ne.s32.totalorder %s161, %s162
      %p174 = scmp.eq.s32.totalorder %s26, 1
      %p175 = por %p173, %p174
      %p177 = scmp.ne.s32.totalorder %s162, %s176
      %p178 = scmp.eq.s32.totalorder %s26, 0
      %p179 = por %p177, %p178
      %s181 = sadd.s32 %s180, 1
      %p184 = scmp.eq.s32.totalorder %s20, 1
      %p185 = scmp.ne.s32.totalorder %s180, %s182
      %p186 = scmp.eq.s32.totalorder %s20, 0
      %p187 = por %p185, %p186
      %p188 = scmp.ne.s32.totalorder %s180, %s182
      %p189 = scmp.eq.s32.totalorder %s25, 1
      %p190 = por %p188, %p189
      %p191 = scmp.ne.s32.totalorder %s182, %s183
      %p192 = scmp.eq.s32.totalorder %s25, 0
      %p193 = por %p191, %p192
      %p194 = scmp.ne.s32.totalorder %s182, %s183
      %p195 = scmp.eq.s32.totalorder %s26, 1
      %p196 = por %p194, %p195
      %p198 = scmp.ne.s32.totalorder %s183, %s197
      %p199 = scmp.eq.s32.totalorder %s26, 0
      %p200 = por %p198, %p199
      %s202 = sadd.s32 %s201, 1
      %p205 = scmp.eq.s32.totalorder %s20, 1
      %p206 = scmp.ne.s32.totalorder %s201, %s203
      %p207 = scmp.eq.s32.totalorder %s20, 0
      %p208 = por %p206, %p207
      %p209 = scmp.ne.s32.totalorder %s201, %s203
      %p210 = scmp.eq.s32.totalorder %s25, 1
      %p211 = por %p209, %p210
      %p212 = scmp.ne.s32.totalorder %s203, %s204
      %p213 = scmp.eq.s32.totalorder %s25, 0
      %p214 = por %p212, %p213
      %p215 = scmp.ne.s32.totalorder %s203, %s204
      %p216 = scmp.eq.s32.totalorder %s26, 1
      %p217 = por %p215, %p216
      %p219 = scmp.ne.s32.totalorder %s204, %s218
      %p220 = scmp.eq.s32.totalorder %s26, 0
      %p221 = por %p219, %p220
      %s223 = sadd.s32 %s222, 1
      %p226 = scmp.eq.s32.totalorder %s20, 1
      %p227 = scmp.ne.s32.totalorder %s222, %s224
      %p228 = scmp.eq.s32.totalorder %s20, 0
      %p229 = por %p227, %p228
      %p230 = scmp.ne.s32.totalorder %s222, %s224
      %p231 = scmp.eq.s32.totalorder %s25, 1
      %p232 = por %p230, %p231
      %p233 = scmp.ne.s32.totalorder %s224, %s225
      %p234 = scmp.eq.s32.totalorder %s25, 0
      %p235 = por %p233, %p234
      %p236 = scmp.ne.s32.totalorder %s224, %s225
      %p237 = scmp.eq.s32.totalorder %s26, 1
      %p238 = por %p236, %p237
      %p240 = scmp.ne.s32.totalorder %s225, %s239
      %p241 = scmp.eq.s32.totalorder %s26, 0
      %p242 = por %p240, %p241
      %s244 = sadd.s32 %s243, 1
      %p247 = scmp.eq.s32.totalorder %s20, 1
      %p248 = scmp.ne.s32.totalorder %s243, %s245
      %p249 = scmp.eq.s32.totalorder %s20, 0
      %p250 = por %p248, %p249
      %p251 = scmp.ne.s32.totalorder %s243, %s245
      %p252 = scmp.eq.s32.totalorder %s25, 1
      %p253 = por %p251, %p252
      %p254 = scmp.ne.s32.totalorder %s245, %s246
      %p255 = scmp.eq.s32.totalorder %s25, 0
      %p256 = por %p254, %p255
      %p257 = scmp.ne.s32.totalorder %s245, %s246
      %p258 = scmp.eq.s32.totalorder %s26, 1
      %p259 = por %p257, %p258
      %p261 = scmp.ne.s32.totalorder %s246, %s260
      %p262 = scmp.eq.s32.totalorder %s26, 0
      %p263 = por %p261, %p262
      %s264 = ssub.s32 %s20, %s27
      %p265 = scmp.eq.s32.totalorder %s264, 0
      %s267 = sadd.s32 %s266, 1
      %s268 = scalar_select %p265, %s266, %s267
      %p271 = pneg %p265
      %p272 = scmp.eq.s32.totalorder %s20, 1
      %p273 = por %p271, %p272
      %p274 = scmp.ne.s32.totalorder %s266, %s269
      %p275 = scmp.eq.s32.totalorder %s20, 0
      %p276 = por %p274, %p275
      %p277 = scmp.ne.s32.totalorder %s266, %s269
      %p278 = scmp.eq.s32.totalorder %s25, 1
      %p279 = por %p277, %p278
      %p280 = scmp.ne.s32.totalorder %s269, %s270
      %p281 = scmp.eq.s32.totalorder %s25, 0
      %p282 = por %p280, %p281
      %p283 = scmp.ne.s32.totalorder %s269, %s270
      %p284 = scmp.eq.s32.totalorder %s26, 1
      %p285 = por %p283, %p284
      %p287 = scmp.ne.s32.totalorder %s270, %s286
      %p288 = scmp.eq.s32.totalorder %s26, 0
      %p289 = por %p287, %p288
      %p290 = scmp.le.s32.totalorder 1, %s20
      %p291 = scmp.lt.s32.totalorder %s20, 3
      %p292 = pnand %p290, %p291
      %p293 = pneg %p292
      // Predicated region
      $region9: #{cnn_forward.1} parent=5 // pred_check
        _
      $region10: #{cnn_forward.1} parent=5 // pred_check_branch
        %295 = sbr.rel (%p292) target = $region12
      $region11: #{cnn_forward.1} parent=5 // pred_region
        %s296 = ssub.s32 %s20, 1
        // Predicated region
        $region13: #{cnn_forward.1} parent=11 // pred_check
          %p297 = pneg %p67
        $region14: #{cnn_forward.1} parent=11 // pred_check_branch
          %299 = sbr.rel (%p297) target = $region16
        $region15: #{cnn_forward.1} parent=11 // pred_region
          _
        $region16: #{cnn_forward.1} parent=11 // pred_fallthru
          _
        // Predicated region
        $region17: #{cnn_forward.1} parent=11 // pred_check
          %p300 = pneg %p88
        $region18: #{cnn_forward.1} parent=11 // pred_check_branch
          %302 = sbr.rel (%p300) target = $region20
        $region19: #{cnn_forward.1} parent=11 // pred_region
          _
        $region20: #{cnn_forward.1} parent=11 // pred_fallthru
          _
        // Predicated region
        $region21: #{cnn_forward.1} parent=11 // pred_check
          %p303 = pneg %p109
        $region22: #{cnn_forward.1} parent=11 // pred_check_branch
          %305 = sbr.rel (%p303) target = $region24
        $region23: #{cnn_forward.1} parent=11 // pred_region
          _
        $region24: #{cnn_forward.1} parent=11 // pred_fallthru
          _
        // Predicated region
        $region25: #{cnn_forward.1} parent=11 // pred_check
          %p306 = pneg %p130
        $region26: #{cnn_forward.1} parent=11 // pred_check_branch
          %308 = sbr.rel (%p306) target = $region28
        $region27: #{cnn_forward.1} parent=11 // pred_region
          _
        $region28: #{cnn_forward.1} parent=11 // pred_fallthru
          _
        // Predicated region
        $region29: #{cnn_forward.1} parent=11 // pred_check
          %p309 = pneg %p151
        $region30: #{cnn_forward.1} parent=11 // pred_check_branch
          %311 = sbr.rel (%p309) target = $region32
        $region31: #{cnn_forward.1} parent=11 // pred_region
          _
        $region32: #{cnn_forward.1} parent=11 // pred_fallthru
          _
        // Predicated region
        $region33: #{cnn_forward.1} parent=11 // pred_check
          %p312 = pneg %p172
        $region34: #{cnn_forward.1} parent=11 // pred_check_branch
          %314 = sbr.rel (%p312) target = $region36
        $region35: #{cnn_forward.1} parent=11 // pred_region
          _
        $region36: #{cnn_forward.1} parent=11 // pred_fallthru
          _
        // Predicated region
        $region37: #{cnn_forward.1} parent=11 // pred_check
          %p315 = pneg %p193
        $region38: #{cnn_forward.1} parent=11 // pred_check_branch
          %317 = sbr.rel (%p315) target = $region40
        $region39: #{cnn_forward.1} parent=11 // pred_region
          _
        $region40: #{cnn_forward.1} parent=11 // pred_fallthru
          _
        // Predicated region
        $region41: #{cnn_forward.1} parent=11 // pred_check
          %p318 = pneg %p214
        $region42: #{cnn_forward.1} parent=11 // pred_check_branch
          %320 = sbr.rel (%p318) target = $region44
        $region43: #{cnn_forward.1} parent=11 // pred_region
          _
        $region44: #{cnn_forward.1} parent=11 // pred_fallthru
          _
        // Predicated region
        $region45: #{cnn_forward.1} parent=11 // pred_check
          %p321 = pneg %p235
        $region46: #{cnn_forward.1} parent=11 // pred_check_branch
          %323 = sbr.rel (%p321) target = $region48
        $region47: #{cnn_forward.1} parent=11 // pred_region
          _
        $region48: #{cnn_forward.1} parent=11 // pred_fallthru
          _
        // Predicated region
        $region49: #{cnn_forward.1} parent=11 // pred_check
          %p324 = pneg %p256
        $region50: #{cnn_forward.1} parent=11 // pred_check_branch
          %326 = sbr.rel (%p324) target = $region52
        $region51: #{cnn_forward.1} parent=11 // pred_region
          _
        $region52: #{cnn_forward.1} parent=11 // pred_fallthru
          _
      $region12: #{cnn_forward.1} parent=5 // pred_fallthru
        _
      %p327 = scmp.lt.s32.totalorder %s20, 2
      // Predicated region
      $region53: #{cnn_forward.1} parent=5 // pred_check
        %p328 = pneg %p327
      $region54: #{cnn_forward.1} parent=5 // pred_check_branch
        %330 = sbr.rel (%p328) target = $region56
      $region55: #{cnn_forward.1} parent=5 // pred_region
        // Predicated region
        $region57: #{cnn_forward.1} parent=55 // pred_check
          %p331 = pneg %p40
        $region58: #{cnn_forward.1} parent=55 // pred_check_branch
          %333 = sbr.rel (%p331) target = $region60
        $region59: #{cnn_forward.1} parent=55 // pred_region
          %p334 = scmp.lt.s32.totalorder %s20, 1
          %s335 = scalar_select %p334, %s20, 1
          %s336 = smul.addr %s335, 16
          %s337 = smul.addr %s336, 4
          %s338 = scalar_lea.vmem %s0, %s337
        $region60: #{cnn_forward.1} parent=55 // pred_fallthru
          _
      $region56: #{cnn_forward.1} parent=5 // pred_fallthru
        _
      %p339 = scmp.le.s32.totalorder 1, %s20
      %p340 = scmp.lt.s32.totalorder %s20, 3
      %p341 = pnand %p339, %p340
      %p342 = pneg %p341
      // Predicated region
      $region61: #{cnn_forward.1} parent=5 // pred_check
        _
      $region62: #{cnn_forward.1} parent=5 // pred_check_branch
        %344 = sbr.rel (%p341) target = $region64
      $region63: #{cnn_forward.1} parent=5 // pred_region
        %s345 = ssub.s32 %s20, 1
        %p346 = scmp.lt.s32.totalorder %s25, 1
        %s347 = scalar_select %p346, %s25, 1
        %s348 = smul.addr %s347, 16
        %s349 = smul.addr %s348, 4
        %s350 = scalar_lea.vmem %s0, %s349
        %p351 = pneg %p46
        %p352 = pneg %p43
        %p353 = pneg %p67
        %p354 = pneg %p64
        %p355 = pneg %p88
        %p356 = pneg %p85
        %p357 = pneg %p109
        %p358 = pneg %p106
        %p359 = pneg %p130
        %p360 = pneg %p127
        %p361 = pneg %p151
        %p362 = pneg %p148
        %p363 = pneg %p172
        %p364 = pneg %p169
        %p365 = pneg %p193
        %p366 = pneg %p190
        %p367 = pneg %p214
        %p368 = pneg %p211
        %p369 = pneg %p235
        %p370 = pneg %p232
        %p371 = pneg %p256
        %p372 = pneg %p253
        %p373 = pneg %p282
        %p374 = pneg %p279
        %s375 = sand.u32 %s269, 1
        %s376 = scalar_lea.sflag [#allocation5], %s375
        %s377 = sand.u32 %s269, 1
        %s378 = scalar_lea.vmem [#allocation4], %s377
        %p379 = scmp.lt.s32.totalorder %s25, 1
        %s380 = scalar_select %p379, %s25, 1
        %s381 = smul.addr %s380, 16
        %s382 = smul.addr %s381, 4
        %s383 = scalar_lea.vmem %s0, %s382
        %v385 = vld [vmem:[%s383] sm:$0xff]
        %v386 = vld [vmem:[%s383 + $0x8] sm:$0xff]
        %v387 = vld [vmem:[%s383 + $0x10] sm:$0xff]
        %v388 = vld [vmem:[%s383 + $0x18] sm:$0xff]
        %v389 = vld [vmem:[%s383 + $0x20] sm:$0xff]
        %v390 = vld [vmem:[%s383 + $0x28] sm:$0xff]
        %v391 = vld [vmem:[%s383 + $0x30] sm:$0xff]
        %v392 = vld [vmem:[%s383 + $0x38] sm:$0xff]
        %v393 = vld [vmem:[%s1] sm:$0xf]
        %v394 = vld [vmem:[%s1 + $0x4] sm:$0xf]
        %v395 = vld [vmem:[%s1 + $0x8] sm:$0xf]
        %v396 = vld [vmem:[%s1 + $0xc] sm:$0xf]
        %v397 = vld [vmem:[%s1 + $0x10] sm:$0xf]
        %v398 = vld [vmem:[%s1 + $0x14] sm:$0xf]
        %v399 = vld [vmem:[%s1 + $0x18] sm:$0xf]
        %v400 = vld [vmem:[%s1 + $0x1c] sm:$0xf]
        %v401 = vld [vmem:[%s1 + $0x20] sm:$0xf]
        %v402 = vld [vmem:[%s1 + $0x24] sm:$0xf]
        %v403 = vld [vmem:[%s1 + $0x28] sm:$0xf]
        %v404 = vld [vmem:[%s1 + $0x2c] sm:$0xf]
        %v405 = vld [vmem:[%s1 + $0x30] sm:$0xf]
        %v406 = vld [vmem:[%s1 + $0x34] sm:$0xf]
        %v407 = vld [vmem:[%s1 + $0x38] sm:$0xf]
        %v408 = vld [vmem:[%s1 + $0x3c] sm:$0xf]
        %v409 = vld [vmem:[%s1 + $0x40] sm:$0xf]
        %v410 = vld [vmem:[%s1 + $0x44] sm:$0xf]
        %v411 = vld [vmem:[%s1 + $0x48] sm:$0xf]
        %v412 = vld [vmem:[%s1 + $0x4c] sm:$0xf]
        %v413 = vld [vmem:[%s1 + $0x50] sm:$0xf]
        %v414 = vld [vmem:[%s1 + $0x54] sm:$0xf]
        %v415 = vld [vmem:[%s1 + $0x58] sm:$0xf]
        %v416 = vld [vmem:[%s1 + $0x5c] sm:$0xf]
        %v417 = vld [vmem:[%s1 + $0x60] sm:$0xf]
        %v418 = vld [vmem:[%s1 + $0x64] sm:$0xf]
        %v419 = vld [vmem:[%s1 + $0x68] sm:$0xf]
        %v420 = vld [vmem:[%s1 + $0x6c] sm:$0xf]
        %v421 = vld [vmem:[%s1 + $0x70] sm:$0xf]
        %v422 = vld [vmem:[%s1 + $0x74] sm:$0xf]
        %v423 = vld [vmem:[%s1 + $0x78] sm:$0xf]
        %v424 = vld [vmem:[%s1 + $0x7c] sm:$0xf]
        %v425 = vld [vmem:[%s2] sm:$0x1]
        %v427 = vperm.slane %v425, 0
        %v437 = vunpack.c.l.b16 %v385
        %v438 = vunpack.c.h.b16 %v385
        %v439 = vunpack.c.l.b16 %v386
        %v440 = vunpack.c.h.b16 %v386
        %v441 = vunpack.c.l.b16 %v387
        %v442 = vunpack.c.h.b16 %v387
        %v443 = vunpack.c.l.b16 %v388
        %v444 = vunpack.c.h.b16 %v388
        %v445 = vunpack.c.l.b16 %v389
        %v446 = vunpack.c.h.b16 %v389
        %v447 = vunpack.c.l.b16 %v390
        %v448 = vunpack.c.h.b16 %v390
        %v449 = vunpack.c.l.b16 %v391
        %v450 = vunpack.c.h.b16 %v391
        %v451 = vunpack.c.l.b16 %v392
        %v452 = vunpack.c.h.b16 %v392
        %v453 = vpack.c.b16 %v439, %v437
        %v454 = vpack.c.b16 %v440, %v438
        %v455 = vpack.c.b16 %v443, %v441
        %v456 = vpack.c.b16 %v444, %v442
        %v457 = vpack.c.b16 %v447, %v445
        %v458 = vpack.c.b16 %v448, %v446
        %v459 = vpack.c.b16 %v451, %v449
        %v460 = vpack.c.b16 %v452, %v450
        %v501 = vunpack.c.l.b16 %v393
        %v502 = vunpack.c.l.b16 %v394
        %v503 = vunpack.c.l.b16 %v395
        %v504 = vunpack.c.l.b16 %v396
        %v505 = vunpack.c.l.b16 %v397
        %v506 = vunpack.c.l.b16 %v398
        %v507 = vunpack.c.l.b16 %v399
        %v508 = vunpack.c.l.b16 %v400
        %v509 = vunpack.c.l.b16 %v401
        %v510 = vunpack.c.l.b16 %v402
        %v511 = vunpack.c.l.b16 %v403
        %v512 = vunpack.c.l.b16 %v404
        %v513 = vunpack.c.l.b16 %v405
        %v514 = vunpack.c.l.b16 %v406
        %v515 = vunpack.c.l.b16 %v407
        %v516 = vunpack.c.l.b16 %v408
        %v517 = vunpack.c.l.b16 %v409
        %v518 = vunpack.c.l.b16 %v410
        %v519 = vunpack.c.l.b16 %v411
        %v520 = vunpack.c.l.b16 %v412
        %v521 = vunpack.c.l.b16 %v413
        %v522 = vunpack.c.l.b16 %v414
        %v523 = vunpack.c.l.b16 %v415
        %v524 = vunpack.c.l.b16 %v416
        %v525 = vunpack.c.l.b16 %v417
        %v526 = vunpack.c.l.b16 %v418
        %v527 = vunpack.c.l.b16 %v419
        %v528 = vunpack.c.l.b16 %v420
        %v529 = vunpack.c.l.b16 %v421
        %v530 = vunpack.c.l.b16 %v422
        %v531 = vunpack.c.l.b16 %v423
        %v532 = vunpack.c.l.b16 %v424
        %v533 = vpack.c.b16 %v502, %v501
        %v534 = vpack.c.b16 %v504, %v503
        %v535 = vpack.c.b16 %v506, %v505
        %v536 = vpack.c.b16 %v508, %v507
        %v537 = vpack.c.b16 %v510, %v509
        %v538 = vpack.c.b16 %v512, %v511
        %v539 = vpack.c.b16 %v514, %v513
        %v540 = vpack.c.b16 %v516, %v515
        %v541 = vpack.c.b16 %v518, %v517
        %v542 = vpack.c.b16 %v520, %v519
        %v543 = vpack.c.b16 %v522, %v521
        %v544 = vpack.c.b16 %v524, %v523
        %v545 = vpack.c.b16 %v526, %v525
        %v546 = vpack.c.b16 %v528, %v527
        %v547 = vpack.c.b16 %v530, %v529
        %v548 = vpack.c.b16 %v532, %v531
        %565 = vmatpush.bf16.msra.mxu0 %v540
        %566 = vmatpush.bf16.msra.mxu0 %v539
        %567 = vmatpush.bf16.msra.mxu0 %v538
        %568 = vmatpush.bf16.msra.mxu0 %v537
        %569 = vmatpush.bf16.msra.mxu0 %v536
        %570 = vmatpush.bf16.msra.mxu0 %v535
        %571 = vmatpush.bf16.msra.mxu0 %v534
        %572 = vmatpush.bf16.msra.mxu0 %v533
        %573 = vmatmul.bf16.gmra.mxu0 %v453
        %v574 = vpop.f32.mrf.mxu0
        %v575 = vadd.f32 %v427, %v574
        %v576 = vpop.f32.mrf.mxu0
        %v577 = vadd.f32 %v427, %v576
        %578 = vmatmul.bf16.gmra.mxu0 %v455
        %v579 = vpop.f32.mrf.mxu0
        %v580 = vadd.f32 %v427, %v579
        %v581 = vpop.f32.mrf.mxu0
        %v582 = vadd.f32 %v427, %v581
        %583 = vmatmul.bf16.gmra.mxu0 %v457
        %v584 = vpop.f32.mrf.mxu0
        %v585 = vadd.f32 %v427, %v584
        %v586 = vpop.f32.mrf.mxu0
        %v587 = vadd.f32 %v427, %v586
        %588 = vmatmul.bf16.gmra.mxu0 %v459
        %v589 = vpop.f32.mrf.mxu0
        %v590 = vadd.f32 %v427, %v589
        %v591 = vpop.f32.mrf.mxu0
        %v592 = vadd.f32 %v427, %v591
        %593 = vdwg.mxu0
        %594 = vmatpush.bf16.msra.mxu0 %v548
        %595 = vmatpush.bf16.msra.mxu0 %v547
        %596 = vmatpush.bf16.msra.mxu0 %v546
        %597 = vmatpush.bf16.msra.mxu0 %v545
        %598 = vmatpush.bf16.msra.mxu0 %v544
        %599 = vmatpush.bf16.msra.mxu0 %v543
        %600 = vmatpush.bf16.msra.mxu0 %v542
        %601 = vmatpush.bf16.msra.mxu0 %v541
        %602 = vmatmul.bf16.gmra.mxu0 %v454
        %v603 = vpop.f32.mrf.mxu0
        %v604 = vadd.f32 %v575, %v603
        %v605 = vpop.f32.mrf.mxu0
        %v606 = vadd.f32 %v577, %v605
        %607 = vmatmul.bf16.gmra.mxu0 %v456
        %v608 = vpop.f32.mrf.mxu0
        %v609 = vadd.f32 %v580, %v608
        %v610 = vpop.f32.mrf.mxu0
        %v611 = vadd.f32 %v582, %v610
        %612 = vmatmul.bf16.gmra.mxu0 %v458
        %v613 = vpop.f32.mrf.mxu0
        %v614 = vadd.f32 %v585, %v613
        %v615 = vpop.f32.mrf.mxu0
        %v616 = vadd.f32 %v587, %v615
        %617 = vmatmul.bf16.gmra.mxu0 %v460
        %v618 = vpop.f32.mrf.mxu0
        %v619 = vadd.f32 %v590, %v618
        %v620 = vpop.f32.mrf.mxu0
        %v621 = vadd.f32 %v592, %v620
        %622 = vdwg.mxu0
        %v623 = vmax.f32 %v604, 0.0
        %v624 = vmax.f32 %v606, 0.0
        %v625 = vmax.f32 %v609, 0.0
        %v626 = vmax.f32 %v611, 0.0
        %v627 = vmax.f32 %v614, 0.0
        %v628 = vmax.f32 %v616, 0.0
        %v629 = vmax.f32 %v619, 0.0
        %v630 = vmax.f32 %v621, 0.0
        %v631 = vpack.c.bf16 %v623, %v623
        %v632 = vpack.c.bf16 %v624, %v624
        %v633 = vpack.c.bf16 %v625, %v625
        %v634 = vpack.c.bf16 %v626, %v626
        %v635 = vpack.c.bf16 %v627, %v627
        %v636 = vpack.c.bf16 %v628, %v628
        %v637 = vpack.c.bf16 %v629, %v629
        %v638 = vpack.c.bf16 %v630, %v630
        %vm639 = vcmask 257024
        %640 = vst.msk [vmem:[#allocation2] sm:$0xf] %vm639, %v631
        %641 = vst.msk [vmem:[#allocation2 + $0x4] sm:$0xf] %vm639, %v632
        %642 = vst.msk [vmem:[#allocation2 + $0x8] sm:$0xf] %vm639, %v633
        %643 = vst.msk [vmem:[#allocation2 + $0xc] sm:$0xf] %vm639, %v634
        %644 = vst.msk [vmem:[#allocation2 + $0x10] sm:$0xf] %vm639, %v635
        %645 = vst.msk [vmem:[#allocation2 + $0x14] sm:$0xf] %vm639, %v636
        %646 = vst.msk [vmem:[#allocation2 + $0x18] sm:$0xf] %vm639, %v637
        %647 = vst.msk [vmem:[#allocation2 + $0x1c] sm:$0xf] %vm639, %v638
        %v648 = vld [vmem:[%s3] sm:$0xf]
        %v649 = vld [vmem:[%s3 + $0x4] sm:$0xf]
        %v650 = vld [vmem:[%s3 + $0x8] sm:$0xf]
        %v651 = vld [vmem:[%s3 + $0xc] sm:$0xf]
        %v652 = vld [vmem:[#allocation2] sm:$0x3]
        %v653 = vld [vmem:[#allocation2 + $0x8] sm:$0x3]
        %v654 = vld [vmem:[#allocation2 + $0x10] sm:$0x3]
        %s655 = scalar_lea.vmem %s3, 16
        %v656 = vld [vmem:[%s655] sm:$0xf]
        %v657 = vld [vmem:[%s655 + $0x4] sm:$0xf]
        %v658 = vld [vmem:[%s655 + $0x8] sm:$0xf]
        %v659 = vld [vmem:[%s655 + $0xc] sm:$0xf]
        %v660 = vld [vmem:[#allocation2] sm:$0xc]
        %v662 = vunpack.c.l.b16 %v660
        %v663 = vpack.c.b16 %v662, %v662
        %v664 = vrot.slane %v663, 2
        %v669 = vunpack.c.l.b16 %v656
        %v670 = vunpack.c.l.b16 %v657
        %v671 = vunpack.c.l.b16 %v658
        %v672 = vunpack.c.l.b16 %v659
        %v673 = vpack.c.b16 %v670, %v669
        %v674 = vpack.c.b16 %v672, %v671
        %vm677 = vcmask 261120
        %v679 = vsel %vm677, %v664, 0
        %681 = vmatpush.bf16.msra.mxu0 0
        %682 = vmatpush.bf16.msra.mxu0 0
        %683 = vmatpush.bf16.msra.mxu0 0
        %684 = vmatpush.bf16.msra.mxu0 0
        %685 = vmatpush.bf16.msra.mxu0 0
        %686 = vmatpush.bf16.msra.mxu0 0
        %687 = vmatpush.bf16.msra.mxu0 %v674
        %688 = vmatpush.bf16.msra.mxu0 %v673
        %689 = vmatmul.bf16.gmra.mxu0 %v679
        %v690 = vpop.f32.mrf.mxu0
        %v691 = vadd.f32 0.0, %v690
        %v692 = vpop.f32.mrf.mxu0
        %693 = vdwg.mxu0
        %v698 = vunpack.c.l.b16 %v648
        %v699 = vunpack.c.l.b16 %v649
        %v700 = vunpack.c.l.b16 %v650
        %v701 = vunpack.c.l.b16 %v651
        %v702 = vpack.c.b16 %v699, %v698
        %v703 = vpack.c.b16 %v701, %v700
        %v707 = vsel %vm677, %v652, 0
        %709 = vmatpush.bf16.msra.mxu0 0
        %710 = vmatpush.bf16.msra.mxu0 0
        %711 = vmatpush.bf16.msra.mxu0 0
        %712 = vmatpush.bf16.msra.mxu0 0
        %713 = vmatpush.bf16.msra.mxu0 0
        %714 = vmatpush.bf16.msra.mxu0 0
        %715 = vmatpush.bf16.msra.mxu0 %v703
        %716 = vmatpush.bf16.msra.mxu0 %v702
        %717 = vmatmul.bf16.gmra.mxu0 %v707
        %v718 = vpop.f32.mrf.mxu0
        %v719 = vadd.f32 %v691, %v718
        %v720 = vpop.f32.mrf.mxu0
        %721 = vdwg.mxu0
        %v722 = vld [vmem:[#allocation2 + $0x8] sm:$0xc]
        %v724 = vunpack.c.l.b16 %v722
        %v725 = vpack.c.b16 %v724, %v724
        %v726 = vrot.slane %v725, 2
        %v728 = vsel %vm677, %v726, 0
        %730 = vmatpush.bf16.msra.mxu0 0
        %731 = vmatpush.bf16.msra.mxu0 0
        %732 = vmatpush.bf16.msra.mxu0 0
        %733 = vmatpush.bf16.msra.mxu0 0
        %734 = vmatpush.bf16.msra.mxu0 0
        %735 = vmatpush.bf16.msra.mxu0 0
        %736 = vmatpush.bf16.msra.mxu0 %v674
        %737 = vmatpush.bf16.msra.mxu0 %v673
        %738 = vmatmul.bf16.gmra.mxu0 %v728
        %v739 = vpop.f32.mrf.mxu0
        %v740 = vadd.f32 0.0, %v739
        %v741 = vpop.f32.mrf.mxu0
        %742 = vdwg.mxu0
        %v744 = vsel %vm677, %v653, 0
        %746 = vmatpush.bf16.msra.mxu0 0
        %747 = vmatpush.bf16.msra.mxu0 0
        %748 = vmatpush.bf16.msra.mxu0 0
        %749 = vmatpush.bf16.msra.mxu0 0
        %750 = vmatpush.bf16.msra.mxu0 0
        %751 = vmatpush.bf16.msra.mxu0 0
        %752 = vmatpush.bf16.msra.mxu0 %v703
        %753 = vmatpush.bf16.msra.mxu0 %v702
        %754 = vmatmul.bf16.gmra.mxu0 %v744
        %v755 = vpop.f32.mrf.mxu0
        %v756 = vadd.f32 %v740, %v755
        %v757 = vpop.f32.mrf.mxu0
        %758 = vdwg.mxu0
        %v759 = vld [vmem:[#allocation2 + $0x10] sm:$0xc]
        %v761 = vunpack.c.l.b16 %v759
        %v762 = vpack.c.b16 %v761, %v761
        %v763 = vrot.slane %v762, 2
        %v765 = vsel %vm677, %v763, 0
        %767 = vmatpush.bf16.msra.mxu0 0
        %768 = vmatpush.bf16.msra.mxu0 0
        %769 = vmatpush.bf16.msra.mxu0 0
        %770 = vmatpush.bf16.msra.mxu0 0
        %771 = vmatpush.bf16.msra.mxu0 0
        %772 = vmatpush.bf16.msra.mxu0 0
        %773 = vmatpush.bf16.msra.mxu0 %v674
        %774 = vmatpush.bf16.msra.mxu0 %v673
        %775 = vmatmul.bf16.gmra.mxu0 %v765
        %v776 = vpop.f32.mrf.mxu0
        %v777 = vadd.f32 0.0, %v776
        %v778 = vpop.f32.mrf.mxu0
        %779 = vdwg.mxu0
        %v781 = vsel %vm677, %v654, 0
        %783 = vmatpush.bf16.msra.mxu0 0
        %784 = vmatpush.bf16.msra.mxu0 0
        %785 = vmatpush.bf16.msra.mxu0 0
        %786 = vmatpush.bf16.msra.mxu0 0
        %787 = vmatpush.bf16.msra.mxu0 0
        %788 = vmatpush.bf16.msra.mxu0 0
        %789 = vmatpush.bf16.msra.mxu0 %v703
        %790 = vmatpush.bf16.msra.mxu0 %v702
        %791 = vmatmul.bf16.gmra.mxu0 %v781
        %v792 = vpop.f32.mrf.mxu0
        %v793 = vadd.f32 %v777, %v792
        %v794 = vpop.f32.mrf.mxu0
        %795 = vdwg.mxu0
        %s796 = scalar_lea.vmem %s3, 32
        %v797 = vld [vmem:[%s796] sm:$0xf]
        %v798 = vld [vmem:[%s796 + $0x4] sm:$0xf]
        %v799 = vld [vmem:[%s796 + $0x8] sm:$0xf]
        %v800 = vld [vmem:[%s796 + $0xc] sm:$0xf]
        %v802 = vunpack.c.l.b16 %v652
        %v803 = vpack.c.b16 %v802, %v802
        %v805 = vshrl.u32 %v803, 16
        %v807 = vshll.u32 %v803, 16
        %v809 = vrot.slane %v807, 1
        %v810 = vor.u32 %v805, %v809
        %v815 = vunpack.c.l.b16 %v797
        %v816 = vunpack.c.l.b16 %v798
        %v817 = vunpack.c.l.b16 %v799
        %v818 = vunpack.c.l.b16 %v800
        %v819 = vpack.c.b16 %v816, %v815
        %v820 = vpack.c.b16 %v818, %v817
        %v824 = vsel %vm677, %v810, 0
        %826 = vmatpush.bf16.msra.mxu0 0
        %827 = vmatpush.bf16.msra.mxu0 0
        %828 = vmatpush.bf16.msra.mxu0 0
        %829 = vmatpush.bf16.msra.mxu0 0
        %830 = vmatpush.bf16.msra.mxu0 0
        %831 = vmatpush.bf16.msra.mxu0 0
        %832 = vmatpush.bf16.msra.mxu0 %v820
        %833 = vmatpush.bf16.msra.mxu0 %v819
        %834 = vmatmul.bf16.gmra.mxu0 %v824
        %v835 = vpop.f32.mrf.mxu0
        %v836 = vadd.f32 0.0, %v835
        %v837 = vpop.f32.mrf.mxu0
        %838 = vdwg.mxu0
        %v839 = vadd.f32 %v719, %v836
        %v841 = vunpack.c.l.b16 %v653
        %v842 = vpack.c.b16 %v841, %v841
        %v844 = vshrl.u32 %v842, 16
        %v846 = vshll.u32 %v842, 16
        %v848 = vrot.slane %v846, 1
        %v849 = vor.u32 %v844, %v848
        %v851 = vsel %vm677, %v849, 0
        %853 = vmatpush.bf16.msra.mxu0 0
        %854 = vmatpush.bf16.msra.mxu0 0
        %855 = vmatpush.bf16.msra.mxu0 0
        %856 = vmatpush.bf16.msra.mxu0 0
        %857 = vmatpush.bf16.msra.mxu0 0
        %858 = vmatpush.bf16.msra.mxu0 0
        %859 = vmatpush.bf16.msra.mxu0 %v820
        %860 = vmatpush.bf16.msra.mxu0 %v819
        %861 = vmatmul.bf16.gmra.mxu0 %v851
        %v862 = vpop.f32.mrf.mxu0
        %v863 = vadd.f32 0.0, %v862
        %v864 = vpop.f32.mrf.mxu0
        %865 = vdwg.mxu0
        %v866 = vadd.f32 %v756, %v863
        %v868 = vunpack.c.l.b16 %v654
        %v869 = vpack.c.b16 %v868, %v868
        %v871 = vshrl.u32 %v869, 16
        %v873 = vshll.u32 %v869, 16
        %v875 = vrot.slane %v873, 1
        %v876 = vor.u32 %v871, %v875
        %v878 = vsel %vm677, %v876, 0
        %880 = vmatpush.bf16.msra.mxu0 0
        %881 = vmatpush.bf16.msra.mxu0 0
        %882 = vmatpush.bf16.msra.mxu0 0
        %883 = vmatpush.bf16.msra.mxu0 0
        %884 = vmatpush.bf16.msra.mxu0 0
        %885 = vmatpush.bf16.msra.mxu0 0
        %886 = vmatpush.bf16.msra.mxu0 %v820
        %887 = vmatpush.bf16.msra.mxu0 %v819
        %888 = vmatmul.bf16.gmra.mxu0 %v878
        %v889 = vpop.f32.mrf.mxu0
        %v890 = vadd.f32 0.0, %v889
        %v891 = vpop.f32.mrf.mxu0
        %892 = vdwg.mxu0
        %v893 = vadd.f32 %v793, %v890
        %s894 = scalar_lea.vmem %s3, 48
        %v895 = vld [vmem:[%s894] sm:$0xf]
        %v896 = vld [vmem:[%s894 + $0x4] sm:$0xf]
        %v897 = vld [vmem:[%s894 + $0x8] sm:$0xf]
        %v898 = vld [vmem:[%s894 + $0xc] sm:$0xf]
        %v900 = vshrl.u32 %v663, 16
        %v902 = vrot.slane %v900, 2
        %v903 = vshll.u32 %v663, 16
        %v905 = vrot.slane %v903, 3
        %v906 = vor.u32 %v902, %v905
        %v911 = vunpack.c.l.b16 %v895
        %v912 = vunpack.c.l.b16 %v896
        %v913 = vunpack.c.l.b16 %v897
        %v914 = vunpack.c.l.b16 %v898
        %v915 = vpack.c.b16 %v912, %v911
        %v916 = vpack.c.b16 %v914, %v913
        %v920 = vsel %vm677, %v906, 0
        %922 = vmatpush.bf16.msra.mxu0 0
        %923 = vmatpush.bf16.msra.mxu0 0
        %924 = vmatpush.bf16.msra.mxu0 0
        %925 = vmatpush.bf16.msra.mxu0 0
        %926 = vmatpush.bf16.msra.mxu0 0
        %927 = vmatpush.bf16.msra.mxu0 0
        %928 = vmatpush.bf16.msra.mxu0 %v916
        %929 = vmatpush.bf16.msra.mxu0 %v915
        %930 = vmatmul.bf16.gmra.mxu0 %v920
        %v931 = vpop.f32.mrf.mxu0
        %v932 = vadd.f32 0.0, %v931
        %v933 = vpop.f32.mrf.mxu0
        %934 = vdwg.mxu0
        %v935 = vadd.f32 %v839, %v932
        %v937 = vshrl.u32 %v725, 16
        %v939 = vrot.slane %v937, 2
        %v940 = vshll.u32 %v725, 16
        %v942 = vrot.slane %v940, 3
        %v943 = vor.u32 %v939, %v942
        %v945 = vsel %vm677, %v943, 0
        %947 = vmatpush.bf16.msra.mxu0 0
        %948 = vmatpush.bf16.msra.mxu0 0
        %949 = vmatpush.bf16.msra.mxu0 0
        %950 = vmatpush.bf16.msra.mxu0 0
        %951 = vmatpush.bf16.msra.mxu0 0
        %952 = vmatpush.bf16.msra.mxu0 0
        %953 = vmatpush.bf16.msra.mxu0 %v916
        %954 = vmatpush.bf16.msra.mxu0 %v915
        %955 = vmatmul.bf16.gmra.mxu0 %v945
        %v956 = vpop.f32.mrf.mxu0
        %v957 = vadd.f32 0.0, %v956
        %v958 = vpop.f32.mrf.mxu0
        %959 = vdwg.mxu0
        %v960 = vadd.f32 %v866, %v957
        %v962 = vshrl.u32 %v762, 16
        %v964 = vrot.slane %v962, 2
        %v965 = vshll.u32 %v762, 16
        %v967 = vrot.slane %v965, 3
        %v968 = vor.u32 %v964, %v967
        %v970 = vsel %vm677, %v968, 0
        %972 = vmatpush.bf16.msra.mxu0 0
        %973 = vmatpush.bf16.msra.mxu0 0
        %974 = vmatpush.bf16.msra.mxu0 0
        %975 = vmatpush.bf16.msra.mxu0 0
        %976 = vmatpush.bf16.msra.mxu0 0
        %977 = vmatpush.bf16.msra.mxu0 0
        %978 = vmatpush.bf16.msra.mxu0 %v916
        %979 = vmatpush.bf16.msra.mxu0 %v915
        %980 = vmatmul.bf16.gmra.mxu0 %v970
        %v981 = vpop.f32.mrf.mxu0
        %v982 = vadd.f32 0.0, %v981
        %v983 = vpop.f32.mrf.mxu0
        %984 = vdwg.mxu0
        %v985 = vadd.f32 %v893, %v982
        %s986 = scalar_lea.vmem %s3, 64
        %v987 = vld [vmem:[%s986] sm:$0xf]
        %v988 = vld [vmem:[%s986 + $0x4] sm:$0xf]
        %v989 = vld [vmem:[%s986 + $0x8] sm:$0xf]
        %v990 = vld [vmem:[%s986 + $0xc] sm:$0xf]
        %v991 = vld [vmem:[#allocation2 + $0x4] sm:$0x3]
        %v996 = vunpack.c.l.b16 %v987
        %v997 = vunpack.c.l.b16 %v988
        %v998 = vunpack.c.l.b16 %v989
        %v999 = vunpack.c.l.b16 %v990
        %v1000 = vpack.c.b16 %v997, %v996
        %v1001 = vpack.c.b16 %v999, %v998
        %v1005 = vsel %vm677, %v991, 0
        %1007 = vmatpush.bf16.msra.mxu0 0
        %1008 = vmatpush.bf16.msra.mxu0 0
        %1009 = vmatpush.bf16.msra.mxu0 0
        %1010 = vmatpush.bf16.msra.mxu0 0
        %1011 = vmatpush.bf16.msra.mxu0 0
        %1012 = vmatpush.bf16.msra.mxu0 0
        %1013 = vmatpush.bf16.msra.mxu0 %v1001
        %1014 = vmatpush.bf16.msra.mxu0 %v1000
        %1015 = vmatmul.bf16.gmra.mxu0 %v1005
        %v1016 = vpop.f32.mrf.mxu0
        %v1017 = vadd.f32 0.0, %v1016
        %v1018 = vpop.f32.mrf.mxu0
        %1019 = vdwg.mxu0
        %v1020 = vadd.f32 %v935, %v1017
        %v1021 = vld [vmem:[#allocation2 + $0xc] sm:$0x3]
        %v1023 = vsel %vm677, %v1021, 0
        %1025 = vmatpush.bf16.msra.mxu0 0
        %1026 = vmatpush.bf16.msra.mxu0 0
        %1027 = vmatpush.bf16.msra.mxu0 0
        %1028 = vmatpush.bf16.msra.mxu0 0
        %1029 = vmatpush.bf16.msra.mxu0 0
        %1030 = vmatpush.bf16.msra.mxu0 0
        %1031 = vmatpush.bf16.msra.mxu0 %v1001
        %1032 = vmatpush.bf16.msra.mxu0 %v1000
        %1033 = vmatmul.bf16.gmra.mxu0 %v1023
        %v1034 = vpop.f32.mrf.mxu0
        %v1035 = vadd.f32 0.0, %v1034
        %v1036 = vpop.f32.mrf.mxu0
        %1037 = vdwg.mxu0
        %v1038 = vadd.f32 %v960, %v1035
        %v1039 = vld [vmem:[#allocation2 + $0x14] sm:$0x3]
        %v1041 = vsel %vm677, %v1039, 0
        %1043 = vmatpush.bf16.msra.mxu0 0
        %1044 = vmatpush.bf16.msra.mxu0 0
        %1045 = vmatpush.bf16.msra.mxu0 0
        %1046 = vmatpush.bf16.msra.mxu0 0
        %1047 = vmatpush.bf16.msra.mxu0 0
        %1048 = vmatpush.bf16.msra.mxu0 0
        %1049 = vmatpush.bf16.msra.mxu0 %v1001
        %1050 = vmatpush.bf16.msra.mxu0 %v1000
        %1051 = vmatmul.bf16.gmra.mxu0 %v1041
        %v1052 = vpop.f32.mrf.mxu0
        %v1053 = vadd.f32 0.0, %v1052
        %v1054 = vpop.f32.mrf.mxu0
        %1055 = vdwg.mxu0
        %v1056 = vadd.f32 %v985, %v1053
        %s1057 = scalar_lea.vmem %s3, 80
        %v1058 = vld [vmem:[%s1057] sm:$0xf]
        %v1059 = vld [vmem:[%s1057 + $0x4] sm:$0xf]
        %v1060 = vld [vmem:[%s1057 + $0x8] sm:$0xf]
        %v1061 = vld [vmem:[%s1057 + $0xc] sm:$0xf]
        %v1062 = vld [vmem:[#allocation2 + $0x4] sm:$0xc]
        %v1064 = vunpack.c.l.b16 %v1062
        %v1065 = vpack.c.b16 %v1064, %v1064
        %v1066 = vrot.slane %v1065, 2
        %v1071 = vunpack.c.l.b16 %v1058
        %v1072 = vunpack.c.l.b16 %v1059
        %v1073 = vunpack.c.l.b16 %v1060
        %v1074 = vunpack.c.l.b16 %v1061
        %v1075 = vpack.c.b16 %v1072, %v1071
        %v1076 = vpack.c.b16 %v1074, %v1073
        %v1080 = vsel %vm677, %v1066, 0
        %1082 = vmatpush.bf16.msra.mxu0 0
        %1083 = vmatpush.bf16.msra.mxu0 0
        %1084 = vmatpush.bf16.msra.mxu0 0
        %1085 = vmatpush.bf16.msra.mxu0 0
        %1086 = vmatpush.bf16.msra.mxu0 0
        %1087 = vmatpush.bf16.msra.mxu0 0
        %1088 = vmatpush.bf16.msra.mxu0 %v1076
        %1089 = vmatpush.bf16.msra.mxu0 %v1075
        %1090 = vmatmul.bf16.gmra.mxu0 %v1080
        %v1091 = vpop.f32.mrf.mxu0
        %v1092 = vadd.f32 0.0, %v1091
        %v1093 = vpop.f32.mrf.mxu0
        %1094 = vdwg.mxu0
        %v1095 = vadd.f32 %v1020, %v1092
        %v1096 = vld [vmem:[#allocation2 + $0xc] sm:$0xc]
        %v1098 = vunpack.c.l.b16 %v1096
        %v1099 = vpack.c.b16 %v1098, %v1098
        %v1100 = vrot.slane %v1099, 2
        %v1102 = vsel %vm677, %v1100, 0
        %1104 = vmatpush.bf16.msra.mxu0 0
        %1105 = vmatpush.bf16.msra.mxu0 0
        %1106 = vmatpush.bf16.msra.mxu0 0
        %1107 = vmatpush.bf16.msra.mxu0 0
        %1108 = vmatpush.bf16.msra.mxu0 0
        %1109 = vmatpush.bf16.msra.mxu0 0
        %1110 = vmatpush.bf16.msra.mxu0 %v1076
        %1111 = vmatpush.bf16.msra.mxu0 %v1075
        %1112 = vmatmul.bf16.gmra.mxu0 %v1102
        %v1113 = vpop.f32.mrf.mxu0
        %v1114 = vadd.f32 0.0, %v1113
        %v1115 = vpop.f32.mrf.mxu0
        %1116 = vdwg.mxu0
        %v1117 = vadd.f32 %v1038, %v1114
        %v1118 = vld [vmem:[#allocation2 + $0x14] sm:$0xc]
        %v1120 = vunpack.c.l.b16 %v1118
        %v1121 = vpack.c.b16 %v1120, %v1120
        %v1122 = vrot.slane %v1121, 2
        %v1124 = vsel %vm677, %v1122, 0
        %1126 = vmatpush.bf16.msra.mxu0 0
        %1127 = vmatpush.bf16.msra.mxu0 0
        %1128 = vmatpush.bf16.msra.mxu0 0
        %1129 = vmatpush.bf16.msra.mxu0 0
        %1130 = vmatpush.bf16.msra.mxu0 0
        %1131 = vmatpush.bf16.msra.mxu0 0
        %1132 = vmatpush.bf16.msra.mxu0 %v1076
        %1133 = vmatpush.bf16.msra.mxu0 %v1075
        %1134 = vmatmul.bf16.gmra.mxu0 %v1124
        %v1135 = vpop.f32.mrf.mxu0
        %v1136 = vadd.f32 0.0, %v1135
        %v1137 = vpop.f32.mrf.mxu0
        %1138 = vdwg.mxu0
        %v1139 = vadd.f32 %v1056, %v1136
        %s1140 = scalar_lea.vmem %s3, 96
        %v1141 = vld [vmem:[%s1140] sm:$0xf]
        %v1142 = vld [vmem:[%s1140 + $0x4] sm:$0xf]
        %v1143 = vld [vmem:[%s1140 + $0x8] sm:$0xf]
        %v1144 = vld [vmem:[%s1140 + $0xc] sm:$0xf]
        %v1146 = vunpack.c.l.b16 %v991
        %v1147 = vpack.c.b16 %v1146, %v1146
        %v1149 = vshrl.u32 %v1147, 16
        %v1151 = vshll.u32 %v1147, 16
        %v1153 = vrot.slane %v1151, 1
        %v1154 = vor.u32 %v1149, %v1153
        %v1159 = vunpack.c.l.b16 %v1141
        %v1160 = vunpack.c.l.b16 %v1142
        %v1161 = vunpack.c.l.b16 %v1143
        %v1162 = vunpack.c.l.b16 %v1144
        %v1163 = vpack.c.b16 %v1160, %v1159
        %v1164 = vpack.c.b16 %v1162, %v1161
        %v1168 = vsel %vm677, %v1154, 0
        %1170 = vmatpush.bf16.msra.mxu0 0
        %1171 = vmatpush.bf16.msra.mxu0 0
        %1172 = vmatpush.bf16.msra.mxu0 0
        %1173 = vmatpush.bf16.msra.mxu0 0
        %1174 = vmatpush.bf16.msra.mxu0 0
        %1175 = vmatpush.bf16.msra.mxu0 0
        %1176 = vmatpush.bf16.msra.mxu0 %v1164
        %1177 = vmatpush.bf16.msra.mxu0 %v1163
        %1178 = vmatmul.bf16.gmra.mxu0 %v1168
        %v1179 = vpop.f32.mrf.mxu0
        %v1180 = vadd.f32 0.0, %v1179
        %v1181 = vpop.f32.mrf.mxu0
        %1182 = vdwg.mxu0
        %v1183 = vadd.f32 %v1095, %v1180
        %v1185 = vunpack.c.l.b16 %v1021
        %v1186 = vpack.c.b16 %v1185, %v1185
        %v1188 = vshrl.u32 %v1186, 16
        %v1190 = vshll.u32 %v1186, 16
        %v1192 = vrot.slane %v1190, 1
        %v1193 = vor.u32 %v1188, %v1192
        %v1195 = vsel %vm677, %v1193, 0
        %1197 = vmatpush.bf16.msra.mxu0 0
        %1198 = vmatpush.bf16.msra.mxu0 0
        %1199 = vmatpush.bf16.msra.mxu0 0
        %1200 = vmatpush.bf16.msra.mxu0 0
        %1201 = vmatpush.bf16.msra.mxu0 0
        %1202 = vmatpush.bf16.msra.mxu0 0
        %1203 = vmatpush.bf16.msra.mxu0 %v1164
        %1204 = vmatpush.bf16.msra.mxu0 %v1163
        %1205 = vmatmul.bf16.gmra.mxu0 %v1195
        %v1206 = vpop.f32.mrf.mxu0
        %v1207 = vadd.f32 0.0, %v1206
        %v1208 = vpop.f32.mrf.mxu0
        %1209 = vdwg.mxu0
        %v1210 = vadd.f32 %v1117, %v1207
        %v1212 = vunpack.c.l.b16 %v1039
        %v1213 = vpack.c.b16 %v1212, %v1212
        %v1215 = vshrl.u32 %v1213, 16
        %v1217 = vshll.u32 %v1213, 16
        %v1219 = vrot.slane %v1217, 1
        %v1220 = vor.u32 %v1215, %v1219
        %v1222 = vsel %vm677, %v1220, 0
        %1224 = vmatpush.bf16.msra.mxu0 0
        %1225 = vmatpush.bf16.msra.mxu0 0
        %1226 = vmatpush.bf16.msra.mxu0 0
        %1227 = vmatpush.bf16.msra.mxu0 0
        %1228 = vmatpush.bf16.msra.mxu0 0
        %1229 = vmatpush.bf16.msra.mxu0 0
        %1230 = vmatpush.bf16.msra.mxu0 %v1164
        %1231 = vmatpush.bf16.msra.mxu0 %v1163
        %1232 = vmatmul.bf16.gmra.mxu0 %v1222
        %v1233 = vpop.f32.mrf.mxu0
        %v1234 = vadd.f32 0.0, %v1233
        %v1235 = vpop.f32.mrf.mxu0
        %1236 = vdwg.mxu0
        %v1237 = vadd.f32 %v1139, %v1234
        %s1238 = scalar_lea.vmem %s3, 112
        %v1239 = vld [vmem:[%s1238] sm:$0xf]
        %v1240 = vld [vmem:[%s1238 + $0x4] sm:$0xf]
        %v1241 = vld [vmem:[%s1238 + $0x8] sm:$0xf]
        %v1242 = vld [vmem:[%s1238 + $0xc] sm:$0xf]
        %v1244 = vshrl.u32 %v1065, 16
        %v1246 = vrot.slane %v1244, 2
        %v1247 = vshll.u32 %v1065, 16
        %v1249 = vrot.slane %v1247, 3
        %v1250 = vor.u32 %v1246, %v1249
        %v1255 = vunpack.c.l.b16 %v1239
        %v1256 = vunpack.c.l.b16 %v1240
        %v1257 = vunpack.c.l.b16 %v1241
        %v1258 = vunpack.c.l.b16 %v1242
        %v1259 = vpack.c.b16 %v1256, %v1255
        %v1260 = vpack.c.b16 %v1258, %v1257
        %v1264 = vsel %vm677, %v1250, 0
        %1266 = vmatpush.bf16.msra.mxu0 0
        %1267 = vmatpush.bf16.msra.mxu0 0
        %1268 = vmatpush.bf16.msra.mxu0 0
        %1269 = vmatpush.bf16.msra.mxu0 0
        %1270 = vmatpush.bf16.msra.mxu0 0
        %1271 = vmatpush.bf16.msra.mxu0 0
        %1272 = vmatpush.bf16.msra.mxu0 %v1260
        %1273 = vmatpush.bf16.msra.mxu0 %v1259
        %1274 = vmatmul.bf16.gmra.mxu0 %v1264
        %v1275 = vpop.f32.mrf.mxu0
        %v1276 = vadd.f32 0.0, %v1275
        %v1277 = vpop.f32.mrf.mxu0
        %1278 = vdwg.mxu0
        %v1279 = vadd.f32 %v1183, %v1276
        %v1281 = vshrl.u32 %v1099, 16
        %v1283 = vrot.slane %v1281, 2
        %v1284 = vshll.u32 %v1099, 16
        %v1286 = vrot.slane %v1284, 3
        %v1287 = vor.u32 %v1283, %v1286
        %v1289 = vsel %vm677, %v1287, 0
        %1291 = vmatpush.bf16.msra.mxu0 0
        %1292 = vmatpush.bf16.msra.mxu0 0
        %1293 = vmatpush.bf16.msra.mxu0 0
        %1294 = vmatpush.bf16.msra.mxu0 0
        %1295 = vmatpush.bf16.msra.mxu0 0
        %1296 = vmatpush.bf16.msra.mxu0 0
        %1297 = vmatpush.bf16.msra.mxu0 %v1260
        %1298 = vmatpush.bf16.msra.mxu0 %v1259
        %1299 = vmatmul.bf16.gmra.mxu0 %v1289
        %v1300 = vpop.f32.mrf.mxu0
        %v1301 = vadd.f32 0.0, %v1300
        %v1302 = vpop.f32.mrf.mxu0
        %1303 = vdwg.mxu0
        %v1304 = vadd.f32 %v1210, %v1301
        %v1306 = vshrl.u32 %v1121, 16
        %v1308 = vrot.slane %v1306, 2
        %v1309 = vshll.u32 %v1121, 16
        %v1311 = vrot.slane %v1309, 3
        %v1312 = vor.u32 %v1308, %v1311
        %v1314 = vsel %vm677, %v1312, 0
        %1316 = vmatpush.bf16.msra.mxu0 0
        %1317 = vmatpush.bf16.msra.mxu0 0
        %1318 = vmatpush.bf16.msra.mxu0 0
        %1319 = vmatpush.bf16.msra.mxu0 0
        %1320 = vmatpush.bf16.msra.mxu0 0
        %1321 = vmatpush.bf16.msra.mxu0 0
        %1322 = vmatpush.bf16.msra.mxu0 %v1260
        %1323 = vmatpush.bf16.msra.mxu0 %v1259
        %1324 = vmatmul.bf16.gmra.mxu0 %v1314
        %v1325 = vpop.f32.mrf.mxu0
        %v1326 = vadd.f32 0.0, %v1325
        %v1327 = vpop.f32.mrf.mxu0
        %1328 = vdwg.mxu0
        %v1329 = vadd.f32 %v1237, %v1326
        %s1330 = scalar_lea.vmem %s3, 128
        %v1331 = vld [vmem:[%s1330] sm:$0xf]
        %v1332 = vld [vmem:[%s1330 + $0x4] sm:$0xf]
        %v1333 = vld [vmem:[%s1330 + $0x8] sm:$0xf]
        %v1334 = vld [vmem:[%s1330 + $0xc] sm:$0xf]
        %v1339 = vunpack.c.l.b16 %v1331
        %v1340 = vunpack.c.l.b16 %v1332
        %v1341 = vunpack.c.l.b16 %v1333
        %v1342 = vunpack.c.l.b16 %v1334
        %v1343 = vpack.c.b16 %v1340, %v1339
        %v1344 = vpack.c.b16 %v1342, %v1341
        %1347 = vmatpush.bf16.msra.mxu0 0
        %1348 = vmatpush.bf16.msra.mxu0 0
        %1349 = vmatpush.bf16.msra.mxu0 0
        %1350 = vmatpush.bf16.msra.mxu0 0
        %1351 = vmatpush.bf16.msra.mxu0 0
        %1352 = vmatpush.bf16.msra.mxu0 0
        %1353 = vmatpush.bf16.msra.mxu0 %v1344
        %1354 = vmatpush.bf16.msra.mxu0 %v1343
        %1355 = vmatmul.bf16.gmra.mxu0 %v744
        %v1356 = vpop.f32.mrf.mxu0
        %v1357 = vadd.f32 0.0, %v1356
        %v1358 = vpop.f32.mrf.mxu0
        %1359 = vdwg.mxu0
        %v1360 = vadd.f32 %v1279, %v1357
        %1361 = vmatpush.bf16.msra.mxu0 0
        %1362 = vmatpush.bf16.msra.mxu0 0
        %1363 = vmatpush.bf16.msra.mxu0 0
        %1364 = vmatpush.bf16.msra.mxu0 0
        %1365 = vmatpush.bf16.msra.mxu0 0
        %1366 = vmatpush.bf16.msra.mxu0 0
        %1367 = vmatpush.bf16.msra.mxu0 %v1344
        %1368 = vmatpush.bf16.msra.mxu0 %v1343
        %1369 = vmatmul.bf16.gmra.mxu0 %v781
        %v1370 = vpop.f32.mrf.mxu0
        %v1371 = vadd.f32 0.0, %v1370
        %v1372 = vpop.f32.mrf.mxu0
        %1373 = vdwg.mxu0
        %v1374 = vadd.f32 %v1304, %v1371
        %v1375 = vld [vmem:[#allocation2 + $0x18] sm:$0x3]
        %v1377 = vsel %vm677, %v1375, 0
        %1379 = vmatpush.bf16.msra.mxu0 0
        %1380 = vmatpush.bf16.msra.mxu0 0
        %1381 = vmatpush.bf16.msra.mxu0 0
        %1382 = vmatpush.bf16.msra.mxu0 0
        %1383 = vmatpush.bf16.msra.mxu0 0
        %1384 = vmatpush.bf16.msra.mxu0 0
        %1385 = vmatpush.bf16.msra.mxu0 %v1344
        %1386 = vmatpush.bf16.msra.mxu0 %v1343
        %1387 = vmatmul.bf16.gmra.mxu0 %v1377
        %v1388 = vpop.f32.mrf.mxu0
        %v1389 = vadd.f32 0.0, %v1388
        %v1390 = vpop.f32.mrf.mxu0
        %1391 = vdwg.mxu0
        %v1392 = vadd.f32 %v1329, %v1389
        %s1393 = scalar_lea.vmem %s3, 144
        %v1394 = vld [vmem:[%s1393] sm:$0xf]
        %v1395 = vld [vmem:[%s1393 + $0x4] sm:$0xf]
        %v1396 = vld [vmem:[%s1393 + $0x8] sm:$0xf]
        %v1397 = vld [vmem:[%s1393 + $0xc] sm:$0xf]
        %v1402 = vunpack.c.l.b16 %v1394
        %v1403 = vunpack.c.l.b16 %v1395
        %v1404 = vunpack.c.l.b16 %v1396
        %v1405 = vunpack.c.l.b16 %v1397
        %v1406 = vpack.c.b16 %v1403, %v1402
        %v1407 = vpack.c.b16 %v1405, %v1404
        %1410 = vmatpush.bf16.msra.mxu0 0
        %1411 = vmatpush.bf16.msra.mxu0 0
        %1412 = vmatpush.bf16.msra.mxu0 0
        %1413 = vmatpush.bf16.msra.mxu0 0
        %1414 = vmatpush.bf16.msra.mxu0 0
        %1415 = vmatpush.bf16.msra.mxu0 0
        %1416 = vmatpush.bf16.msra.mxu0 %v1407
        %1417 = vmatpush.bf16.msra.mxu0 %v1406
        %1418 = vmatmul.bf16.gmra.mxu0 %v728
        %v1419 = vpop.f32.mrf.mxu0
        %v1420 = vadd.f32 0.0, %v1419
        %v1421 = vpop.f32.mrf.mxu0
        %1422 = vdwg.mxu0
        %v1423 = vadd.f32 %v1360, %v1420
        %1424 = vmatpush.bf16.msra.mxu0 0
        %1425 = vmatpush.bf16.msra.mxu0 0
        %1426 = vmatpush.bf16.msra.mxu0 0
        %1427 = vmatpush.bf16.msra.mxu0 0
        %1428 = vmatpush.bf16.msra.mxu0 0
        %1429 = vmatpush.bf16.msra.mxu0 0
        %1430 = vmatpush.bf16.msra.mxu0 %v1407
        %1431 = vmatpush.bf16.msra.mxu0 %v1406
        %1432 = vmatmul.bf16.gmra.mxu0 %v765
        %v1433 = vpop.f32.mrf.mxu0
        %v1434 = vadd.f32 0.0, %v1433
        %v1435 = vpop.f32.mrf.mxu0
        %1436 = vdwg.mxu0
        %v1437 = vadd.f32 %v1374, %v1434
        %v1438 = vld [vmem:[#allocation2 + $0x18] sm:$0xc]
        %v1440 = vunpack.c.l.b16 %v1438
        %v1441 = vpack.c.b16 %v1440, %v1440
        %v1442 = vrot.slane %v1441, 2
        %v1444 = vsel %vm677, %v1442, 0
        %1446 = vmatpush.bf16.msra.mxu0 0
        %1447 = vmatpush.bf16.msra.mxu0 0
        %1448 = vmatpush.bf16.msra.mxu0 0
        %1449 = vmatpush.bf16.msra.mxu0 0
        %1450 = vmatpush.bf16.msra.mxu0 0
        %1451 = vmatpush.bf16.msra.mxu0 0
        %1452 = vmatpush.bf16.msra.mxu0 %v1407
        %1453 = vmatpush.bf16.msra.mxu0 %v1406
        %1454 = vmatmul.bf16.gmra.mxu0 %v1444
        %v1455 = vpop.f32.mrf.mxu0
        %v1456 = vadd.f32 0.0, %v1455
        %v1457 = vpop.f32.mrf.mxu0
        %1458 = vdwg.mxu0
        %v1459 = vadd.f32 %v1392, %v1456
        %s1460 = scalar_lea.vmem %s3, 160
        %v1461 = vld [vmem:[%s1460] sm:$0xf]
        %v1462 = vld [vmem:[%s1460 + $0x4] sm:$0xf]
        %v1463 = vld [vmem:[%s1460 + $0x8] sm:$0xf]
        %v1464 = vld [vmem:[%s1460 + $0xc] sm:$0xf]
        %v1469 = vunpack.c.l.b16 %v1461
        %v1470 = vunpack.c.l.b16 %v1462
        %v1471 = vunpack.c.l.b16 %v1463
        %v1472 = vunpack.c.l.b16 %v1464
        %v1473 = vpack.c.b16 %v1470, %v1469
        %v1474 = vpack.c.b16 %v1472, %v1471
        %1477 = vmatpush.bf16.msra.mxu0 0
        %1478 = vmatpush.bf16.msra.mxu0 0
        %1479 = vmatpush.bf16.msra.mxu0 0
        %1480 = vmatpush.bf16.msra.mxu0 0
        %1481 = vmatpush.bf16.msra.mxu0 0
        %1482 = vmatpush.bf16.msra.mxu0 0
        %1483 = vmatpush.bf16.msra.mxu0 %v1474
        %1484 = vmatpush.bf16.msra.mxu0 %v1473
        %1485 = vmatmul.bf16.gmra.mxu0 %v851
        %v1486 = vpop.f32.mrf.mxu0
        %v1487 = vadd.f32 0.0, %v1486
        %v1488 = vpop.f32.mrf.mxu0
        %1489 = vdwg.mxu0
        %v1490 = vadd.f32 %v1423, %v1487
        %1491 = vmatpush.bf16.msra.mxu0 0
        %1492 = vmatpush.bf16.msra.mxu0 0
        %1493 = vmatpush.bf16.msra.mxu0 0
        %1494 = vmatpush.bf16.msra.mxu0 0
        %1495 = vmatpush.bf16.msra.mxu0 0
        %1496 = vmatpush.bf16.msra.mxu0 0
        %1497 = vmatpush.bf16.msra.mxu0 %v1474
        %1498 = vmatpush.bf16.msra.mxu0 %v1473
        %1499 = vmatmul.bf16.gmra.mxu0 %v878
        %v1500 = vpop.f32.mrf.mxu0
        %v1501 = vadd.f32 0.0, %v1500
        %v1502 = vpop.f32.mrf.mxu0
        %1503 = vdwg.mxu0
        %v1504 = vadd.f32 %v1437, %v1501
        %v1506 = vunpack.c.l.b16 %v1375
        %v1507 = vpack.c.b16 %v1506, %v1506
        %v1509 = vshrl.u32 %v1507, 16
        %v1511 = vshll.u32 %v1507, 16
        %v1513 = vrot.slane %v1511, 1
        %v1514 = vor.u32 %v1509, %v1513
        %v1516 = vsel %vm677, %v1514, 0
        %1518 = vmatpush.bf16.msra.mxu0 0
        %1519 = vmatpush.bf16.msra.mxu0 0
        %1520 = vmatpush.bf16.msra.mxu0 0
        %1521 = vmatpush.bf16.msra.mxu0 0
        %1522 = vmatpush.bf16.msra.mxu0 0
        %1523 = vmatpush.bf16.msra.mxu0 0
        %1524 = vmatpush.bf16.msra.mxu0 %v1474
        %1525 = vmatpush.bf16.msra.mxu0 %v1473
        %1526 = vmatmul.bf16.gmra.mxu0 %v1516
        %v1527 = vpop.f32.mrf.mxu0
        %v1528 = vadd.f32 0.0, %v1527
        %v1529 = vpop.f32.mrf.mxu0
        %1530 = vdwg.mxu0
        %v1531 = vadd.f32 %v1459, %v1528
        %s1532 = scalar_lea.vmem %s3, 176
        %v1533 = vld [vmem:[%s1532] sm:$0xf]
        %v1534 = vld [vmem:[%s1532 + $0x4] sm:$0xf]
        %v1535 = vld [vmem:[%s1532 + $0x8] sm:$0xf]
        %v1536 = vld [vmem:[%s1532 + $0xc] sm:$0xf]
        %v1541 = vunpack.c.l.b16 %v1533
        %v1542 = vunpack.c.l.b16 %v1534
        %v1543 = vunpack.c.l.b16 %v1535
        %v1544 = vunpack.c.l.b16 %v1536
        %v1545 = vpack.c.b16 %v1542, %v1541
        %v1546 = vpack.c.b16 %v1544, %v1543
        %1549 = vmatpush.bf16.msra.mxu0 0
        %1550 = vmatpush.bf16.msra.mxu0 0
        %1551 = vmatpush.bf16.msra.mxu0 0
        %1552 = vmatpush.bf16.msra.mxu0 0
        %1553 = vmatpush.bf16.msra.mxu0 0
        %1554 = vmatpush.bf16.msra.mxu0 0
        %1555 = vmatpush.bf16.msra.mxu0 %v1546
        %1556 = vmatpush.bf16.msra.mxu0 %v1545
        %1557 = vmatmul.bf16.gmra.mxu0 %v945
        %v1558 = vpop.f32.mrf.mxu0
        %v1559 = vadd.f32 0.0, %v1558
        %v1560 = vpop.f32.mrf.mxu0
        %1561 = vdwg.mxu0
        %v1562 = vadd.f32 %v1490, %v1559
        %1563 = vmatpush.bf16.msra.mxu0 0
        %1564 = vmatpush.bf16.msra.mxu0 0
        %1565 = vmatpush.bf16.msra.mxu0 0
        %1566 = vmatpush.bf16.msra.mxu0 0
        %1567 = vmatpush.bf16.msra.mxu0 0
        %1568 = vmatpush.bf16.msra.mxu0 0
        %1569 = vmatpush.bf16.msra.mxu0 %v1546
        %1570 = vmatpush.bf16.msra.mxu0 %v1545
        %1571 = vmatmul.bf16.gmra.mxu0 %v970
        %v1572 = vpop.f32.mrf.mxu0
        %v1573 = vadd.f32 0.0, %v1572
        %v1574 = vpop.f32.mrf.mxu0
        %1575 = vdwg.mxu0
        %v1576 = vadd.f32 %v1504, %v1573
        %v1578 = vshrl.u32 %v1441, 16
        %v1580 = vrot.slane %v1578, 2
        %v1581 = vshll.u32 %v1441, 16
        %v1583 = vrot.slane %v1581, 3
        %v1584 = vor.u32 %v1580, %v1583
        %v1586 = vsel %vm677, %v1584, 0
        %1588 = vmatpush.bf16.msra.mxu0 0
        %1589 = vmatpush.bf16.msra.mxu0 0
        %1590 = vmatpush.bf16.msra.mxu0 0
        %1591 = vmatpush.bf16.msra.mxu0 0
        %1592 = vmatpush.bf16.msra.mxu0 0
        %1593 = vmatpush.bf16.msra.mxu0 0
        %1594 = vmatpush.bf16.msra.mxu0 %v1546
        %1595 = vmatpush.bf16.msra.mxu0 %v1545
        %1596 = vmatmul.bf16.gmra.mxu0 %v1586
        %v1597 = vpop.f32.mrf.mxu0
        %v1598 = vadd.f32 0.0, %v1597
        %v1599 = vpop.f32.mrf.mxu0
        %1600 = vdwg.mxu0
        %v1601 = vadd.f32 %v1531, %v1598
        %s1602 = scalar_lea.vmem %s3, 192
        %v1603 = vld [vmem:[%s1602] sm:$0xf]
        %v1604 = vld [vmem:[%s1602 + $0x4] sm:$0xf]
        %v1605 = vld [vmem:[%s1602 + $0x8] sm:$0xf]
        %v1606 = vld [vmem:[%s1602 + $0xc] sm:$0xf]
        %v1611 = vunpack.c.l.b16 %v1603
        %v1612 = vunpack.c.l.b16 %v1604
        %v1613 = vunpack.c.l.b16 %v1605
        %v1614 = vunpack.c.l.b16 %v1606
        %v1615 = vpack.c.b16 %v1612, %v1611
        %v1616 = vpack.c.b16 %v1614, %v1613
        %1619 = vmatpush.bf16.msra.mxu0 0
        %1620 = vmatpush.bf16.msra.mxu0 0
        %1621 = vmatpush.bf16.msra.mxu0 0
        %1622 = vmatpush.bf16.msra.mxu0 0
        %1623 = vmatpush.bf16.msra.mxu0 0
        %1624 = vmatpush.bf16.msra.mxu0 0
        %1625 = vmatpush.bf16.msra.mxu0 %v1616
        %1626 = vmatpush.bf16.msra.mxu0 %v1615
        %1627 = vmatmul.bf16.gmra.mxu0 %v1023
        %v1628 = vpop.f32.mrf.mxu0
        %v1629 = vadd.f32 0.0, %v1628
        %v1630 = vpop.f32.mrf.mxu0
        %1631 = vdwg.mxu0
        %v1632 = vadd.f32 %v1562, %v1629
        %1633 = vmatpush.bf16.msra.mxu0 0
        %1634 = vmatpush.bf16.msra.mxu0 0
        %1635 = vmatpush.bf16.msra.mxu0 0
        %1636 = vmatpush.bf16.msra.mxu0 0
        %1637 = vmatpush.bf16.msra.mxu0 0
        %1638 = vmatpush.bf16.msra.mxu0 0
        %1639 = vmatpush.bf16.msra.mxu0 %v1616
        %1640 = vmatpush.bf16.msra.mxu0 %v1615
        %1641 = vmatmul.bf16.gmra.mxu0 %v1041
        %v1642 = vpop.f32.mrf.mxu0
        %v1643 = vadd.f32 0.0, %v1642
        %v1644 = vpop.f32.mrf.mxu0
        %1645 = vdwg.mxu0
        %v1646 = vadd.f32 %v1576, %v1643
        %v1647 = vld [vmem:[#allocation2 + $0x1c] sm:$0x3]
        %v1649 = vsel %vm677, %v1647, 0
        %1651 = vmatpush.bf16.msra.mxu0 0
        %1652 = vmatpush.bf16.msra.mxu0 0
        %1653 = vmatpush.bf16.msra.mxu0 0
        %1654 = vmatpush.bf16.msra.mxu0 0
        %1655 = vmatpush.bf16.msra.mxu0 0
        %1656 = vmatpush.bf16.msra.mxu0 0
        %1657 = vmatpush.bf16.msra.mxu0 %v1616
        %1658 = vmatpush.bf16.msra.mxu0 %v1615
        %1659 = vmatmul.bf16.gmra.mxu0 %v1649
        %v1660 = vpop.f32.mrf.mxu0
        %v1661 = vadd.f32 0.0, %v1660
        %v1662 = vpop.f32.mrf.mxu0
        %1663 = vdwg.mxu0
        %v1664 = vadd.f32 %v1601, %v1661
        %s1665 = scalar_lea.vmem %s3, 208
        %v1666 = vld [vmem:[%s1665] sm:$0xf]
        %v1667 = vld [vmem:[%s1665 + $0x4] sm:$0xf]
        %v1668 = vld [vmem:[%s1665 + $0x8] sm:$0xf]
        %v1669 = vld [vmem:[%s1665 + $0xc] sm:$0xf]
        %v1674 = vunpack.c.l.b16 %v1666
        %v1675 = vunpack.c.l.b16 %v1667
        %v1676 = vunpack.c.l.b16 %v1668
        %v1677 = vunpack.c.l.b16 %v1669
        %v1678 = vpack.c.b16 %v1675, %v1674
        %v1679 = vpack.c.b16 %v1677, %v1676
        %1682 = vmatpush.bf16.msra.mxu0 0
        %1683 = vmatpush.bf16.msra.mxu0 0
        %1684 = vmatpush.bf16.msra.mxu0 0
        %1685 = vmatpush.bf16.msra.mxu0 0
        %1686 = vmatpush.bf16.msra.mxu0 0
        %1687 = vmatpush.bf16.msra.mxu0 0
        %1688 = vmatpush.bf16.msra.mxu0 %v1679
        %1689 = vmatpush.bf16.msra.mxu0 %v1678
        %1690 = vmatmul.bf16.gmra.mxu0 %v1102
        %v1691 = vpop.f32.mrf.mxu0
        %v1692 = vadd.f32 0.0, %v1691
        %v1693 = vpop.f32.mrf.mxu0
        %1694 = vdwg.mxu0
        %v1695 = vadd.f32 %v1632, %v1692
        %1696 = vmatpush.bf16.msra.mxu0 0
        %1697 = vmatpush.bf16.msra.mxu0 0
        %1698 = vmatpush.bf16.msra.mxu0 0
        %1699 = vmatpush.bf16.msra.mxu0 0
        %1700 = vmatpush.bf16.msra.mxu0 0
        %1701 = vmatpush.bf16.msra.mxu0 0
        %1702 = vmatpush.bf16.msra.mxu0 %v1679
        %1703 = vmatpush.bf16.msra.mxu0 %v1678
        %1704 = vmatmul.bf16.gmra.mxu0 %v1124
        %v1705 = vpop.f32.mrf.mxu0
        %v1706 = vadd.f32 0.0, %v1705
        %v1707 = vpop.f32.mrf.mxu0
        %1708 = vdwg.mxu0
        %v1709 = vadd.f32 %v1646, %v1706
        %v1710 = vld [vmem:[#allocation2 + $0x1c] sm:$0xc]
        %v1712 = vunpack.c.l.b16 %v1710
        %v1713 = vpack.c.b16 %v1712, %v1712
        %v1714 = vrot.slane %v1713, 2
        %v1716 = vsel %vm677, %v1714, 0
        %1718 = vmatpush.bf16.msra.mxu0 0
        %1719 = vmatpush.bf16.msra.mxu0 0
        %1720 = vmatpush.bf16.msra.mxu0 0
        %1721 = vmatpush.bf16.msra.mxu0 0
        %1722 = vmatpush.bf16.msra.mxu0 0
        %1723 = vmatpush.bf16.msra.mxu0 0
        %1724 = vmatpush.bf16.msra.mxu0 %v1679
        %1725 = vmatpush.bf16.msra.mxu0 %v1678
        %1726 = vmatmul.bf16.gmra.mxu0 %v1716
        %v1727 = vpop.f32.mrf.mxu0
        %v1728 = vadd.f32 0.0, %v1727
        %v1729 = vpop.f32.mrf.mxu0
        %1730 = vdwg.mxu0
        %v1731 = vadd.f32 %v1664, %v1728
        %s1732 = scalar_lea.vmem %s3, 224
        %v1733 = vld [vmem:[%s1732] sm:$0xf]
        %v1734 = vld [vmem:[%s1732 + $0x4] sm:$0xf]
        %v1735 = vld [vmem:[%s1732 + $0x8] sm:$0xf]
        %v1736 = vld [vmem:[%s1732 + $0xc] sm:$0xf]
        %v1741 = vunpack.c.l.b16 %v1733
        %v1742 = vunpack.c.l.b16 %v1734
        %v1743 = vunpack.c.l.b16 %v1735
        %v1744 = vunpack.c.l.b16 %v1736
        %v1745 = vpack.c.b16 %v1742, %v1741
        %v1746 = vpack.c.b16 %v1744, %v1743
        %1749 = vmatpush.bf16.msra.mxu0 0
        %1750 = vmatpush.bf16.msra.mxu0 0
        %1751 = vmatpush.bf16.msra.mxu0 0
        %1752 = vmatpush.bf16.msra.mxu0 0
        %1753 = vmatpush.bf16.msra.mxu0 0
        %1754 = vmatpush.bf16.msra.mxu0 0
        %1755 = vmatpush.bf16.msra.mxu0 %v1746
        %1756 = vmatpush.bf16.msra.mxu0 %v1745
        %1757 = vmatmul.bf16.gmra.mxu0 %v1195
        %v1758 = vpop.f32.mrf.mxu0
        %v1759 = vadd.f32 0.0, %v1758
        %v1760 = vpop.f32.mrf.mxu0
        %1761 = vdwg.mxu0
        %v1762 = vadd.f32 %v1695, %v1759
        %1763 = vmatpush.bf16.msra.mxu0 0
        %1764 = vmatpush.bf16.msra.mxu0 0
        %1765 = vmatpush.bf16.msra.mxu0 0
        %1766 = vmatpush.bf16.msra.mxu0 0
        %1767 = vmatpush.bf16.msra.mxu0 0
        %1768 = vmatpush.bf16.msra.mxu0 0
        %1769 = vmatpush.bf16.msra.mxu0 %v1746
        %1770 = vmatpush.bf16.msra.mxu0 %v1745
        %1771 = vmatmul.bf16.gmra.mxu0 %v1222
        %v1772 = vpop.f32.mrf.mxu0
        %v1773 = vadd.f32 0.0, %v1772
        %v1774 = vpop.f32.mrf.mxu0
        %1775 = vdwg.mxu0
        %v1776 = vadd.f32 %v1709, %v1773
        %v1778 = vunpack.c.l.b16 %v1647
        %v1779 = vpack.c.b16 %v1778, %v1778
        %v1781 = vshrl.u32 %v1779, 16
        %v1783 = vshll.u32 %v1779, 16
        %v1785 = vrot.slane %v1783, 1
        %v1786 = vor.u32 %v1781, %v1785
        %v1788 = vsel %vm677, %v1786, 0
        %1790 = vmatpush.bf16.msra.mxu0 0
        %1791 = vmatpush.bf16.msra.mxu0 0
        %1792 = vmatpush.bf16.msra.mxu0 0
        %1793 = vmatpush.bf16.msra.mxu0 0
        %1794 = vmatpush.bf16.msra.mxu0 0
        %1795 = vmatpush.bf16.msra.mxu0 0
        %1796 = vmatpush.bf16.msra.mxu0 %v1746
        %1797 = vmatpush.bf16.msra.mxu0 %v1745
        %1798 = vmatmul.bf16.gmra.mxu0 %v1788
        %v1799 = vpop.f32.mrf.mxu0
        %v1800 = vadd.f32 0.0, %v1799
        %v1801 = vpop.f32.mrf.mxu0
        %1802 = vdwg.mxu0
        %v1803 = vadd.f32 %v1731, %v1800
        %s1804 = scalar_lea.vmem %s3, 240
        %v1805 = vld [vmem:[%s1804] sm:$0xf]
        %v1806 = vld [vmem:[%s1804 + $0x4] sm:$0xf]
        %v1807 = vld [vmem:[%s1804 + $0x8] sm:$0xf]
        %v1808 = vld [vmem:[%s1804 + $0xc] sm:$0xf]
        %v1813 = vunpack.c.l.b16 %v1805
        %v1814 = vunpack.c.l.b16 %v1806
        %v1815 = vunpack.c.l.b16 %v1807
        %v1816 = vunpack.c.l.b16 %v1808
        %v1817 = vpack.c.b16 %v1814, %v1813
        %v1818 = vpack.c.b16 %v1816, %v1815
        %1821 = vmatpush.bf16.msra.mxu0 0
        %1822 = vmatpush.bf16.msra.mxu0 0
        %1823 = vmatpush.bf16.msra.mxu0 0
        %1824 = vmatpush.bf16.msra.mxu0 0
        %1825 = vmatpush.bf16.msra.mxu0 0
        %1826 = vmatpush.bf16.msra.mxu0 0
        %1827 = vmatpush.bf16.msra.mxu0 %v1818
        %1828 = vmatpush.bf16.msra.mxu0 %v1817
        %1829 = vmatmul.bf16.gmra.mxu0 %v1289
        %v1830 = vpop.f32.mrf.mxu0
        %v1831 = vadd.f32 0.0, %v1830
        %v1832 = vpop.f32.mrf.mxu0
        %1833 = vdwg.mxu0
        %v1834 = vadd.f32 %v1762, %v1831
        %1835 = vmatpush.bf16.msra.mxu0 0
        %1836 = vmatpush.bf16.msra.mxu0 0
        %1837 = vmatpush.bf16.msra.mxu0 0
        %1838 = vmatpush.bf16.msra.mxu0 0
        %1839 = vmatpush.bf16.msra.mxu0 0
        %1840 = vmatpush.bf16.msra.mxu0 0
        %1841 = vmatpush.bf16.msra.mxu0 %v1818
        %1842 = vmatpush.bf16.msra.mxu0 %v1817
        %1843 = vmatmul.bf16.gmra.mxu0 %v1314
        %v1844 = vpop.f32.mrf.mxu0
        %v1845 = vadd.f32 0.0, %v1844
        %v1846 = vpop.f32.mrf.mxu0
        %1847 = vdwg.mxu0
        %v1848 = vadd.f32 %v1776, %v1845
        %v1850 = vshrl.u32 %v1713, 16
        %v1852 = vrot.slane %v1850, 2
        %v1853 = vshll.u32 %v1713, 16
        %v1855 = vrot.slane %v1853, 3
        %v1856 = vor.u32 %v1852, %v1855
        %v1858 = vsel %vm677, %v1856, 0
        %1860 = vmatpush.bf16.msra.mxu0 0
        %1861 = vmatpush.bf16.msra.mxu0 0
        %1862 = vmatpush.bf16.msra.mxu0 0
        %1863 = vmatpush.bf16.msra.mxu0 0
        %1864 = vmatpush.bf16.msra.mxu0 0
        %1865 = vmatpush.bf16.msra.mxu0 0
        %1866 = vmatpush.bf16.msra.mxu0 %v1818
        %1867 = vmatpush.bf16.msra.mxu0 %v1817
        %1868 = vmatmul.bf16.gmra.mxu0 %v1858
        %v1869 = vpop.f32.mrf.mxu0
        %v1870 = vadd.f32 0.0, %v1869
        %v1871 = vpop.f32.mrf.mxu0
        %1872 = vdwg.mxu0
        %v1873 = vadd.f32 %v1803, %v1870
        %v1874 = vld [vmem:[%s4] sm:$0x1]
        %v1876 = vperm.slane %v1874, 0
        %v1878 = vadd.f32 %v1834, %v1876
        %v1879 = vmax.f32 %v1878, 0.0
        %v1880 = vpack.c.bf16 %v1879, %v1879
        %vm1881 = vcmask 517120
        %vm1882 = vsmask.f32 1280
        %vm1883 = vmand %vm1881, %vm1882
        %v1884 = vld [vmem:[#allocation3] sm:$0x3]
        %v1885 = vsel %vm1883, %v1880, %v1884
        %1886 = vst [vmem:[#allocation3] sm:$0x3] %v1885
        %v1887 = vld [vmem:[%s4] sm:$0x1]
        %v1889 = vperm.slane %v1887, 0
        %v1891 = vadd.f32 %v1848, %v1889
        %v1892 = vmax.f32 %v1891, 0.0
        %v1893 = vpack.c.bf16 %v1892, %v1892
        %v1895 = vshrl.u32 %v1893, 16
        %v1897 = vrot.slane %v1895, 6
        %v1898 = vshll.u32 %v1893, 16
        %v1900 = vrot.slane %v1898, 7
        %v1901 = vor.u32 %v1897, %v1900
        %vm1903 = vcmask 518145
        %vm1904 = vsmask.f32 7942
        %vm1905 = vmand %vm1903, %vm1904
        %v1906 = vld [vmem:[#allocation3] sm:$0x6]
        %v1907 = vsel %vm1905, %v1901, %v1906
        %1908 = vst [vmem:[#allocation3] sm:$0x6] %v1907
        %v1909 = vld [vmem:[%s4] sm:$0x1]
        %v1911 = vperm.slane %v1909, 0
        %v1913 = vadd.f32 %v1873, %v1911
        %v1914 = vmax.f32 %v1913, 0.0
        %v1915 = vpack.c.bf16 %v1914, %v1914
        %v1917 = vrot.slane %v1915, 5
        %v1918 = vrot.slane %v1917, 4
        %vm1921 = vcmask 519171
        %1922 = vst.msk [vmem:[#allocation3] sm:$0x8] %vm1921, %v1917
        %vm1923 = vcmask 516096
        %vm1924 = vsmask.f32 256
        %vm1925 = vmand %vm1923, %vm1924
        %v1926 = vld [vmem:[#allocation3 + $0x4] sm:$0x1]
        %v1927 = vsel %vm1925, %v1918, %v1926
        %1928 = vst [vmem:[#allocation3 + $0x4] sm:$0x1] %v1927
        %v1929 = vld [vmem:[#allocation3] sm:$0x1]
        %v1930 = vld [vmem:[%s5] sm:$0xf]
        %v1931 = vld [vmem:[%s5 + $0x4] sm:$0xf]
        %v1932 = vld [vmem:[%s5 + $0x8] sm:$0xf]
        %v1933 = vld [vmem:[%s5 + $0xc] sm:$0xf]
        %v1934 = vld [vmem:[%s5 + $0x10] sm:$0xf]
        %v1935 = vld [vmem:[%s5 + $0x14] sm:$0xf]
        %v1936 = vld [vmem:[%s5 + $0x18] sm:$0xf]
        %v1937 = vld [vmem:[%s5 + $0x1c] sm:$0xf]
        %s1938 = scalar_lea.vmem %s5, 32
        %v1939 = vld [vmem:[%s1938] sm:$0xf]
        %v1940 = vld [vmem:[%s1938 + $0x4] sm:$0xf]
        %v1941 = vld [vmem:[%s1938 + $0x8] sm:$0xf]
        %v1942 = vld [vmem:[%s1938 + $0xc] sm:$0xf]
        %v1943 = vld [vmem:[%s1938 + $0x10] sm:$0xf]
        %v1944 = vld [vmem:[%s1938 + $0x14] sm:$0xf]
        %v1945 = vld [vmem:[%s1938 + $0x18] sm:$0xf]
        %v1946 = vld [vmem:[%s1938 + $0x1c] sm:$0xf]
        %v1948 = vunpack.c.l.b16 %v1929
        %v1949 = vpack.c.b16 %v1948, %v1948
        %v1951 = vshrl.u32 %v1949, 16
        %v1961 = vunpack.c.l.b16 %v1939
        %v1962 = vunpack.c.l.b16 %v1940
        %v1963 = vunpack.c.l.b16 %v1941
        %v1964 = vunpack.c.l.b16 %v1942
        %v1965 = vunpack.c.l.b16 %v1943
        %v1966 = vunpack.c.l.b16 %v1944
        %v1967 = vunpack.c.l.b16 %v1945
        %v1968 = vunpack.c.l.b16 %v1946
        %v1969 = vpack.c.b16 %v1962, %v1961
        %v1970 = vpack.c.b16 %v1964, %v1963
        %v1971 = vpack.c.b16 %v1966, %v1965
        %v1972 = vpack.c.b16 %v1968, %v1967
        %vm1977 = vcmask 523264
        %v1979 = vsel %vm1977, %v1951, 0
        %1981 = vmatpush.bf16.msra.mxu0 0
        %1982 = vmatpush.bf16.msra.mxu0 0
        %1983 = vmatpush.bf16.msra.mxu0 0
        %1984 = vmatpush.bf16.msra.mxu0 0
        %1985 = vmatpush.bf16.msra.mxu0 %v1972
        %1986 = vmatpush.bf16.msra.mxu0 %v1971
        %1987 = vmatpush.bf16.msra.mxu0 %v1970
        %1988 = vmatpush.bf16.msra.mxu0 %v1969
        %1989 = vmatmul.bf16.gmra.mxu0 %v1979
        %v1990 = vpop.f32.mrf.mxu0
        %v1991 = vadd.f32 0.0, %v1990
        %v1992 = vpop.f32.mrf.mxu0
        %1993 = vdwg.mxu0
        %v2002 = vunpack.c.l.b16 %v1930
        %v2003 = vunpack.c.l.b16 %v1931
        %v2004 = vunpack.c.l.b16 %v1932
        %v2005 = vunpack.c.l.b16 %v1933
        %v2006 = vunpack.c.l.b16 %v1934
        %v2007 = vunpack.c.l.b16 %v1935
        %v2008 = vunpack.c.l.b16 %v1936
        %v2009 = vunpack.c.l.b16 %v1937
        %v2010 = vpack.c.b16 %v2003, %v2002
        %v2011 = vpack.c.b16 %v2005, %v2004
        %v2012 = vpack.c.b16 %v2007, %v2006
        %v2013 = vpack.c.b16 %v2009, %v2008
        %v2019 = vsel %vm1977, %v1929, 0
        %2021 = vmatpush.bf16.msra.mxu0 0
        %2022 = vmatpush.bf16.msra.mxu0 0
        %2023 = vmatpush.bf16.msra.mxu0 0
        %2024 = vmatpush.bf16.msra.mxu0 0
        %2025 = vmatpush.bf16.msra.mxu0 %v2013
        %2026 = vmatpush.bf16.msra.mxu0 %v2012
        %2027 = vmatpush.bf16.msra.mxu0 %v2011
        %2028 = vmatpush.bf16.msra.mxu0 %v2010
        %2029 = vmatmul.bf16.gmra.mxu0 %v2019
        %v2030 = vpop.f32.mrf.mxu0
        %v2031 = vadd.f32 %v1991, %v2030
        %v2032 = vpop.f32.mrf.mxu0
        %2033 = vdwg.mxu0
        %v2034 = vld [vmem:[#allocation3] sm:$0x2]
        %s2035 = scalar_lea.vmem %s5, 64
        %v2036 = vld [vmem:[%s2035] sm:$0xf]
        %v2037 = vld [vmem:[%s2035 + $0x4] sm:$0xf]
        %v2038 = vld [vmem:[%s2035 + $0x8] sm:$0xf]
        %v2039 = vld [vmem:[%s2035 + $0xc] sm:$0xf]
        %v2040 = vld [vmem:[%s2035 + $0x10] sm:$0xf]
        %v2041 = vld [vmem:[%s2035 + $0x14] sm:$0xf]
        %v2042 = vld [vmem:[%s2035 + $0x18] sm:$0xf]
        %v2043 = vld [vmem:[%s2035 + $0x1c] sm:$0xf]
        %v2045 = vunpack.c.l.b16 %v2034
        %v2046 = vpack.c.b16 %v2045, %v2045
        %v2047 = vrot.slane %v2046, 1
        %v2056 = vunpack.c.l.b16 %v2036
        %v2057 = vunpack.c.l.b16 %v2037
        %v2058 = vunpack.c.l.b16 %v2038
        %v2059 = vunpack.c.l.b16 %v2039
        %v2060 = vunpack.c.l.b16 %v2040
        %v2061 = vunpack.c.l.b16 %v2041
        %v2062 = vunpack.c.l.b16 %v2042
        %v2063 = vunpack.c.l.b16 %v2043
        %v2064 = vpack.c.b16 %v2057, %v2056
        %v2065 = vpack.c.b16 %v2059, %v2058
        %v2066 = vpack.c.b16 %v2061, %v2060
        %v2067 = vpack.c.b16 %v2063, %v2062
        %v2073 = vsel %vm1977, %v2047, 0
        %2075 = vmatpush.bf16.msra.mxu0 0
        %2076 = vmatpush.bf16.msra.mxu0 0
        %2077 = vmatpush.bf16.msra.mxu0 0
        %2078 = vmatpush.bf16.msra.mxu0 0
        %2079 = vmatpush.bf16.msra.mxu0 %v2067
        %2080 = vmatpush.bf16.msra.mxu0 %v2066
        %2081 = vmatpush.bf16.msra.mxu0 %v2065
        %2082 = vmatpush.bf16.msra.mxu0 %v2064
        %2083 = vmatmul.bf16.gmra.mxu0 %v2073
        %v2084 = vpop.f32.mrf.mxu0
        %v2085 = vadd.f32 0.0, %v2084
        %v2086 = vpop.f32.mrf.mxu0
        %2087 = vdwg.mxu0
        %v2088 = vadd.f32 %v2031, %v2085
        %s2089 = scalar_lea.vmem %s5, 96
        %v2090 = vld [vmem:[%s2089] sm:$0xf]
        %v2091 = vld [vmem:[%s2089 + $0x4] sm:$0xf]
        %v2092 = vld [vmem:[%s2089 + $0x8] sm:$0xf]
        %v2093 = vld [vmem:[%s2089 + $0xc] sm:$0xf]
        %v2094 = vld [vmem:[%s2089 + $0x10] sm:$0xf]
        %v2095 = vld [vmem:[%s2089 + $0x14] sm:$0xf]
        %v2096 = vld [vmem:[%s2089 + $0x18] sm:$0xf]
        %v2097 = vld [vmem:[%s2089 + $0x1c] sm:$0xf]
        %v2099 = vshrl.u32 %v2046, 16
        %v2101 = vrot.slane %v2099, 1
        %v2110 = vunpack.c.l.b16 %v2090
        %v2111 = vunpack.c.l.b16 %v2091
        %v2112 = vunpack.c.l.b16 %v2092
        %v2113 = vunpack.c.l.b16 %v2093
        %v2114 = vunpack.c.l.b16 %v2094
        %v2115 = vunpack.c.l.b16 %v2095
        %v2116 = vunpack.c.l.b16 %v2096
        %v2117 = vunpack.c.l.b16 %v2097
        %v2118 = vpack.c.b16 %v2111, %v2110
        %v2119 = vpack.c.b16 %v2113, %v2112
        %v2120 = vpack.c.b16 %v2115, %v2114
        %v2121 = vpack.c.b16 %v2117, %v2116
        %v2127 = vsel %vm1977, %v2101, 0
        %2129 = vmatpush.bf16.msra.mxu0 0
        %2130 = vmatpush.bf16.msra.mxu0 0
        %2131 = vmatpush.bf16.msra.mxu0 0
        %2132 = vmatpush.bf16.msra.mxu0 0
        %2133 = vmatpush.bf16.msra.mxu0 %v2121
        %2134 = vmatpush.bf16.msra.mxu0 %v2120
        %2135 = vmatpush.bf16.msra.mxu0 %v2119
        %2136 = vmatpush.bf16.msra.mxu0 %v2118
        %2137 = vmatmul.bf16.gmra.mxu0 %v2127
        %v2138 = vpop.f32.mrf.mxu0
        %v2139 = vadd.f32 0.0, %v2138
        %v2140 = vpop.f32.mrf.mxu0
        %2141 = vdwg.mxu0
        %v2142 = vadd.f32 %v2088, %v2139
        %v2143 = vld [vmem:[#allocation3] sm:$0x4]
        %s2144 = scalar_lea.vmem %s5, 128
        %v2145 = vld [vmem:[%s2144] sm:$0xf]
        %v2146 = vld [vmem:[%s2144 + $0x4] sm:$0xf]
        %v2147 = vld [vmem:[%s2144 + $0x8] sm:$0xf]
        %v2148 = vld [vmem:[%s2144 + $0xc] sm:$0xf]
        %v2149 = vld [vmem:[%s2144 + $0x10] sm:$0xf]
        %v2150 = vld [vmem:[%s2144 + $0x14] sm:$0xf]
        %v2151 = vld [vmem:[%s2144 + $0x18] sm:$0xf]
        %v2152 = vld [vmem:[%s2144 + $0x1c] sm:$0xf]
        %v2154 = vunpack.c.l.b16 %v2143
        %v2155 = vpack.c.b16 %v2154, %v2154
        %v2156 = vrot.slane %v2155, 2
        %v2165 = vunpack.c.l.b16 %v2145
        %v2166 = vunpack.c.l.b16 %v2146
        %v2167 = vunpack.c.l.b16 %v2147
        %v2168 = vunpack.c.l.b16 %v2148
        %v2169 = vunpack.c.l.b16 %v2149
        %v2170 = vunpack.c.l.b16 %v2150
        %v2171 = vunpack.c.l.b16 %v2151
        %v2172 = vunpack.c.l.b16 %v2152
        %v2173 = vpack.c.b16 %v2166, %v2165
        %v2174 = vpack.c.b16 %v2168, %v2167
        %v2175 = vpack.c.b16 %v2170, %v2169
        %v2176 = vpack.c.b16 %v2172, %v2171
        %v2182 = vsel %vm1977, %v2156, 0
        %2184 = vmatpush.bf16.msra.mxu0 0
        %2185 = vmatpush.bf16.msra.mxu0 0
        %2186 = vmatpush.bf16.msra.mxu0 0
        %2187 = vmatpush.bf16.msra.mxu0 0
        %2188 = vmatpush.bf16.msra.mxu0 %v2176
        %2189 = vmatpush.bf16.msra.mxu0 %v2175
        %2190 = vmatpush.bf16.msra.mxu0 %v2174
        %2191 = vmatpush.bf16.msra.mxu0 %v2173
        %2192 = vmatmul.bf16.gmra.mxu0 %v2182
        %v2193 = vpop.f32.mrf.mxu0
        %v2194 = vadd.f32 0.0, %v2193
        %v2195 = vpop.f32.mrf.mxu0
        %2196 = vdwg.mxu0
        %v2197 = vadd.f32 %v2142, %v2194
        %s2198 = scalar_lea.vmem %s5, 160
        %v2199 = vld [vmem:[%s2198] sm:$0xf]
        %v2200 = vld [vmem:[%s2198 + $0x4] sm:$0xf]
        %v2201 = vld [vmem:[%s2198 + $0x8] sm:$0xf]
        %v2202 = vld [vmem:[%s2198 + $0xc] sm:$0xf]
        %v2203 = vld [vmem:[%s2198 + $0x10] sm:$0xf]
        %v2204 = vld [vmem:[%s2198 + $0x14] sm:$0xf]
        %v2205 = vld [vmem:[%s2198 + $0x18] sm:$0xf]
        %v2206 = vld [vmem:[%s2198 + $0x1c] sm:$0xf]
        %v2208 = vshrl.u32 %v2155, 16
        %v2210 = vrot.slane %v2208, 2
        %v2219 = vunpack.c.l.b16 %v2199
        %v2220 = vunpack.c.l.b16 %v2200
        %v2221 = vunpack.c.l.b16 %v2201
        %v2222 = vunpack.c.l.b16 %v2202
        %v2223 = vunpack.c.l.b16 %v2203
        %v2224 = vunpack.c.l.b16 %v2204
        %v2225 = vunpack.c.l.b16 %v2205
        %v2226 = vunpack.c.l.b16 %v2206
        %v2227 = vpack.c.b16 %v2220, %v2219
        %v2228 = vpack.c.b16 %v2222, %v2221
        %v2229 = vpack.c.b16 %v2224, %v2223
        %v2230 = vpack.c.b16 %v2226, %v2225
        %v2236 = vsel %vm1977, %v2210, 0
        %2238 = vmatpush.bf16.msra.mxu0 0
        %2239 = vmatpush.bf16.msra.mxu0 0
        %2240 = vmatpush.bf16.msra.mxu0 0
        %2241 = vmatpush.bf16.msra.mxu0 0
        %2242 = vmatpush.bf16.msra.mxu0 %v2230
        %2243 = vmatpush.bf16.msra.mxu0 %v2229
        %2244 = vmatpush.bf16.msra.mxu0 %v2228
        %2245 = vmatpush.bf16.msra.mxu0 %v2227
        %2246 = vmatmul.bf16.gmra.mxu0 %v2236
        %v2247 = vpop.f32.mrf.mxu0
        %v2248 = vadd.f32 0.0, %v2247
        %v2249 = vpop.f32.mrf.mxu0
        %2250 = vdwg.mxu0
        %v2251 = vadd.f32 %v2197, %v2248
        %v2252 = vld [vmem:[#allocation3] sm:$0x8]
        %s2253 = scalar_lea.vmem %s5, 192
        %v2254 = vld [vmem:[%s2253] sm:$0xf]
        %v2255 = vld [vmem:[%s2253 + $0x4] sm:$0xf]
        %v2256 = vld [vmem:[%s2253 + $0x8] sm:$0xf]
        %v2257 = vld [vmem:[%s2253 + $0xc] sm:$0xf]
        %v2258 = vld [vmem:[%s2253 + $0x10] sm:$0xf]
        %v2259 = vld [vmem:[%s2253 + $0x14] sm:$0xf]
        %v2260 = vld [vmem:[%s2253 + $0x18] sm:$0xf]
        %v2261 = vld [vmem:[%s2253 + $0x1c] sm:$0xf]
        %v2263 = vunpack.c.l.b16 %v2252
        %v2264 = vpack.c.b16 %v2263, %v2263
        %v2265 = vrot.slane %v2264, 3
        %v2274 = vunpack.c.l.b16 %v2254
        %v2275 = vunpack.c.l.b16 %v2255
        %v2276 = vunpack.c.l.b16 %v2256
        %v2277 = vunpack.c.l.b16 %v2257
        %v2278 = vunpack.c.l.b16 %v2258
        %v2279 = vunpack.c.l.b16 %v2259
        %v2280 = vunpack.c.l.b16 %v2260
        %v2281 = vunpack.c.l.b16 %v2261
        %v2282 = vpack.c.b16 %v2275, %v2274
        %v2283 = vpack.c.b16 %v2277, %v2276
        %v2284 = vpack.c.b16 %v2279, %v2278
        %v2285 = vpack.c.b16 %v2281, %v2280
        %v2291 = vsel %vm1977, %v2265, 0
        %2293 = vmatpush.bf16.msra.mxu0 0
        %2294 = vmatpush.bf16.msra.mxu0 0
        %2295 = vmatpush.bf16.msra.mxu0 0
        %2296 = vmatpush.bf16.msra.mxu0 0
        %2297 = vmatpush.bf16.msra.mxu0 %v2285
        %2298 = vmatpush.bf16.msra.mxu0 %v2284
        %2299 = vmatpush.bf16.msra.mxu0 %v2283
        %2300 = vmatpush.bf16.msra.mxu0 %v2282
        %2301 = vmatmul.bf16.gmra.mxu0 %v2291
        %v2302 = vpop.f32.mrf.mxu0
        %v2303 = vadd.f32 0.0, %v2302
        %v2304 = vpop.f32.mrf.mxu0
        %2305 = vdwg.mxu0
        %v2306 = vadd.f32 %v2251, %v2303
        %s2307 = scalar_lea.vmem %s5, 224
        %v2308 = vld [vmem:[%s2307] sm:$0xf]
        %v2309 = vld [vmem:[%s2307 + $0x4] sm:$0xf]
        %v2310 = vld [vmem:[%s2307 + $0x8] sm:$0xf]
        %v2311 = vld [vmem:[%s2307 + $0xc] sm:$0xf]
        %v2312 = vld [vmem:[%s2307 + $0x10] sm:$0xf]
        %v2313 = vld [vmem:[%s2307 + $0x14] sm:$0xf]
        %v2314 = vld [vmem:[%s2307 + $0x18] sm:$0xf]
        %v2315 = vld [vmem:[%s2307 + $0x1c] sm:$0xf]
        %v2317 = vshrl.u32 %v2264, 16
        %v2319 = vrot.slane %v2317, 3
        %v2328 = vunpack.c.l.b16 %v2308
        %v2329 = vunpack.c.l.b16 %v2309
        %v2330 = vunpack.c.l.b16 %v2310
        %v2331 = vunpack.c.l.b16 %v2311
        %v2332 = vunpack.c.l.b16 %v2312
        %v2333 = vunpack.c.l.b16 %v2313
        %v2334 = vunpack.c.l.b16 %v2314
        %v2335 = vunpack.c.l.b16 %v2315
        %v2336 = vpack.c.b16 %v2329, %v2328
        %v2337 = vpack.c.b16 %v2331, %v2330
        %v2338 = vpack.c.b16 %v2333, %v2332
        %v2339 = vpack.c.b16 %v2335, %v2334
        %v2345 = vsel %vm1977, %v2319, 0
        %2347 = vmatpush.bf16.msra.mxu0 0
        %2348 = vmatpush.bf16.msra.mxu0 0
        %2349 = vmatpush.bf16.msra.mxu0 0
        %2350 = vmatpush.bf16.msra.mxu0 0
        %2351 = vmatpush.bf16.msra.mxu0 %v2339
        %2352 = vmatpush.bf16.msra.mxu0 %v2338
        %2353 = vmatpush.bf16.msra.mxu0 %v2337
        %2354 = vmatpush.bf16.msra.mxu0 %v2336
        %2355 = vmatmul.bf16.gmra.mxu0 %v2345
        %v2356 = vpop.f32.mrf.mxu0
        %v2357 = vadd.f32 0.0, %v2356
        %v2358 = vpop.f32.mrf.mxu0
        %2359 = vdwg.mxu0
        %v2360 = vadd.f32 %v2306, %v2357
        %v2361 = vld [vmem:[#allocation3 + $0x4] sm:$0x1]
        %s2362 = scalar_lea.vmem %s5, 256
        %v2363 = vld [vmem:[%s2362] sm:$0xf]
        %v2364 = vld [vmem:[%s2362 + $0x4] sm:$0xf]
        %v2365 = vld [vmem:[%s2362 + $0x8] sm:$0xf]
        %v2366 = vld [vmem:[%s2362 + $0xc] sm:$0xf]
        %v2367 = vld [vmem:[%s2362 + $0x10] sm:$0xf]
        %v2368 = vld [vmem:[%s2362 + $0x14] sm:$0xf]
        %v2369 = vld [vmem:[%s2362 + $0x18] sm:$0xf]
        %v2370 = vld [vmem:[%s2362 + $0x1c] sm:$0xf]
        %v2379 = vunpack.c.l.b16 %v2363
        %v2380 = vunpack.c.l.b16 %v2364
        %v2381 = vunpack.c.l.b16 %v2365
        %v2382 = vunpack.c.l.b16 %v2366
        %v2383 = vunpack.c.l.b16 %v2367
        %v2384 = vunpack.c.l.b16 %v2368
        %v2385 = vunpack.c.l.b16 %v2369
        %v2386 = vunpack.c.l.b16 %v2370
        %v2387 = vpack.c.b16 %v2380, %v2379
        %v2388 = vpack.c.b16 %v2382, %v2381
        %v2389 = vpack.c.b16 %v2384, %v2383
        %v2390 = vpack.c.b16 %v2386, %v2385
        %v2396 = vsel %vm1977, %v2361, 0
        %2398 = vmatpush.bf16.msra.mxu0 0
        %2399 = vmatpush.bf16.msra.mxu0 0
        %2400 = vmatpush.bf16.msra.mxu0 0
        %2401 = vmatpush.bf16.msra.mxu0 0
        %2402 = vmatpush.bf16.msra.mxu0 %v2390
        %2403 = vmatpush.bf16.msra.mxu0 %v2389
        %2404 = vmatpush.bf16.msra.mxu0 %v2388
        %2405 = vmatpush.bf16.msra.mxu0 %v2387
        %2406 = vmatmul.bf16.gmra.mxu0 %v2396
        %v2407 = vpop.f32.mrf.mxu0
        %v2408 = vadd.f32 0.0, %v2407
        %v2409 = vpop.f32.mrf.mxu0
        %2410 = vdwg.mxu0
        %v2411 = vadd.f32 %v2360, %v2408
        %v2412 = vld [vmem:[%s6] sm:$0x1]
        %v2413 = vadd.f32 %v2411, %v2412
        %v2414 = vmax.f32 %v2413, 0.0
        %v2415 = vpack.c.bf16 %v2414, %v2414
        %v2416 = vld [vmem:[%s7] sm:$0xff]
        %v2417 = vld [vmem:[%s7 + $0x8] sm:$0xff]
        %v2418 = vld [vmem:[%s7 + $0x10] sm:$0xff]
        %v2419 = vld [vmem:[%s7 + $0x18] sm:$0xff]
        %v2420 = vld [vmem:[%s7 + $0x20] sm:$0xff]
        %v2421 = vld [vmem:[%s7 + $0x28] sm:$0xff]
        %v2422 = vld [vmem:[%s7 + $0x30] sm:$0xff]
        %v2423 = vld [vmem:[%s7 + $0x38] sm:$0xff]
        %v2424 = vld [vmem:[%s7 + $0x40] sm:$0xff]
        %v2425 = vld [vmem:[%s7 + $0x48] sm:$0xff]
        %v2426 = vld [vmem:[%s7 + $0x50] sm:$0xff]
        %v2427 = vld [vmem:[%s7 + $0x58] sm:$0xff]
        %v2428 = vld [vmem:[%s7 + $0x60] sm:$0xff]
        %v2429 = vld [vmem:[%s7 + $0x68] sm:$0xff]
        %v2430 = vld [vmem:[%s7 + $0x70] sm:$0xff]
        %v2431 = vld [vmem:[%s7 + $0x78] sm:$0xff]
        %v2432 = vld [vmem:[%s8] sm:$0xf]
        %v2449 = vunpack.c.l.b16 %v2416
        %v2450 = vunpack.c.h.b16 %v2416
        %v2451 = vunpack.c.l.b16 %v2417
        %v2452 = vunpack.c.h.b16 %v2417
        %v2453 = vunpack.c.l.b16 %v2418
        %v2454 = vunpack.c.h.b16 %v2418
        %v2455 = vunpack.c.l.b16 %v2419
        %v2456 = vunpack.c.h.b16 %v2419
        %v2457 = vunpack.c.l.b16 %v2420
        %v2458 = vunpack.c.h.b16 %v2420
        %v2459 = vunpack.c.l.b16 %v2421
        %v2460 = vunpack.c.h.b16 %v2421
        %v2461 = vunpack.c.l.b16 %v2422
        %v2462 = vunpack.c.h.b16 %v2422
        %v2463 = vunpack.c.l.b16 %v2423
        %v2464 = vunpack.c.h.b16 %v2423
        %v2465 = vunpack.c.l.b16 %v2424
        %v2466 = vunpack.c.h.b16 %v2424
        %v2467 = vunpack.c.l.b16 %v2425
        %v2468 = vunpack.c.h.b16 %v2425
        %v2469 = vunpack.c.l.b16 %v2426
        %v2470 = vunpack.c.h.b16 %v2426
        %v2471 = vunpack.c.l.b16 %v2427
        %v2472 = vunpack.c.h.b16 %v2427
        %v2473 = vunpack.c.l.b16 %v2428
        %v2474 = vunpack.c.h.b16 %v2428
        %v2475 = vunpack.c.l.b16 %v2429
        %v2476 = vunpack.c.h.b16 %v2429
        %v2477 = vunpack.c.l.b16 %v2430
        %v2478 = vunpack.c.h.b16 %v2430
        %v2479 = vunpack.c.l.b16 %v2431
        %v2480 = vunpack.c.h.b16 %v2431
        %v2481 = vpack.c.b16 %v2453, %v2449
        %v2482 = vpack.c.b16 %v2454, %v2450
        %v2483 = vpack.c.b16 %v2455, %v2451
        %v2484 = vpack.c.b16 %v2456, %v2452
        %v2485 = vpack.c.b16 %v2461, %v2457
        %v2486 = vpack.c.b16 %v2462, %v2458
        %v2487 = vpack.c.b16 %v2463, %v2459
        %v2488 = vpack.c.b16 %v2464, %v2460
        %v2489 = vpack.c.b16 %v2469, %v2465
        %v2490 = vpack.c.b16 %v2470, %v2466
        %v2491 = vpack.c.b16 %v2471, %v2467
        %v2492 = vpack.c.b16 %v2472, %v2468
        %v2493 = vpack.c.b16 %v2477, %v2473
        %v2494 = vpack.c.b16 %v2478, %v2474
        %v2495 = vpack.c.b16 %v2479, %v2475
        %v2496 = vpack.c.b16 %v2480, %v2476
        %v2514 = vperm.slane %v2432, 0
        %v2515 = vperm.slane %v2432, 1
        %v2516 = vperm.slane %v2432, 2
        %v2517 = vperm.slane %v2432, 3
        %v2523 = vsel %vm1977, %v2415, 0
        %2525 = vmatpush.bf16.msra.mxu0 0
        %2526 = vmatpush.bf16.msra.mxu0 0
        %2527 = vmatpush.bf16.msra.mxu0 0
        %2528 = vmatpush.bf16.msra.mxu0 0
        %2529 = vmatpush.bf16.msra.mxu0 %v2493
        %2530 = vmatpush.bf16.msra.mxu0 %v2489
        %2531 = vmatpush.bf16.msra.mxu0 %v2485
        %2532 = vmatpush.bf16.msra.mxu0 %v2481
        %2533 = vmatmul.bf16.gmra.mxu0 %v2523
        %v2534 = vpop.f32.mrf.mxu0
        %v2535 = vadd.f32 %v2514, %v2534
        %v2536 = vpop.f32.mrf.mxu0
        %2537 = vdwg.mxu0
        %2538 = vmatpush.bf16.msra.mxu0 0
        %2539 = vmatpush.bf16.msra.mxu0 0
        %2540 = vmatpush.bf16.msra.mxu0 0
        %2541 = vmatpush.bf16.msra.mxu0 0
        %2542 = vmatpush.bf16.msra.mxu0 %v2494
        %2543 = vmatpush.bf16.msra.mxu0 %v2490
        %2544 = vmatpush.bf16.msra.mxu0 %v2486
        %2545 = vmatpush.bf16.msra.mxu0 %v2482
        %2546 = vmatmul.bf16.gmra.mxu0 %v2523
        %v2547 = vpop.f32.mrf.mxu0
        %v2548 = vadd.f32 %v2515, %v2547
        %v2549 = vpop.f32.mrf.mxu0
        %2550 = vdwg.mxu0
        %2551 = vmatpush.bf16.msra.mxu0 0
        %2552 = vmatpush.bf16.msra.mxu0 0
        %2553 = vmatpush.bf16.msra.mxu0 0
        %2554 = vmatpush.bf16.msra.mxu0 0
        %2555 = vmatpush.bf16.msra.mxu0 %v2495
        %2556 = vmatpush.bf16.msra.mxu0 %v2491
        %2557 = vmatpush.bf16.msra.mxu0 %v2487
        %2558 = vmatpush.bf16.msra.mxu0 %v2483
        %2559 = vmatmul.bf16.gmra.mxu0 %v2523
        %v2560 = vpop.f32.mrf.mxu0
        %v2561 = vadd.f32 %v2516, %v2560
        %v2562 = vpop.f32.mrf.mxu0
        %2563 = vdwg.mxu0
        %2564 = vmatpush.bf16.msra.mxu0 0
        %2565 = vmatpush.bf16.msra.mxu0 0
        %2566 = vmatpush.bf16.msra.mxu0 0
        %2567 = vmatpush.bf16.msra.mxu0 0
        %2568 = vmatpush.bf16.msra.mxu0 %v2496
        %2569 = vmatpush.bf16.msra.mxu0 %v2492
        %2570 = vmatpush.bf16.msra.mxu0 %v2488
        %2571 = vmatpush.bf16.msra.mxu0 %v2484
        %2572 = vmatmul.bf16.gmra.mxu0 %v2523
        %v2573 = vpop.f32.mrf.mxu0
        %v2574 = vadd.f32 %v2517, %v2573
        %v2575 = vpop.f32.mrf.mxu0
        %2576 = vdwg.mxu0
        %v2577 = vmax.f32 %v2535, 0.0
        %v2578 = vmax.f32 %v2548, 0.0
        %v2579 = vmax.f32 %v2561, 0.0
        %v2580 = vmax.f32 %v2574, 0.0
        %v2581 = vpack.c.bf16 %v2577, %v2577
        %v2582 = vpack.c.bf16 %v2578, %v2578
        %v2583 = vpack.c.bf16 %v2579, %v2579
        %v2584 = vpack.c.bf16 %v2580, %v2580
        %v2585 = vld [vmem:[%s9] sm:$0xf]
        %v2586 = vld [vmem:[%s9 + $0x4] sm:$0xf]
        %v2587 = vld [vmem:[%s9 + $0x8] sm:$0xf]
        %v2588 = vld [vmem:[%s9 + $0xc] sm:$0xf]
        %v2589 = vld [vmem:[%s9 + $0x10] sm:$0xf]
        %v2590 = vld [vmem:[%s9 + $0x14] sm:$0xf]
        %v2591 = vld [vmem:[%s9 + $0x18] sm:$0xf]
        %v2592 = vld [vmem:[%s9 + $0x1c] sm:$0xf]
        %v2593 = vld [vmem:[%s9 + $0x20] sm:$0xf]
        %v2594 = vld [vmem:[%s9 + $0x24] sm:$0xf]
        %v2595 = vld [vmem:[%s9 + $0x28] sm:$0xf]
        %v2596 = vld [vmem:[%s9 + $0x2c] sm:$0xf]
        %v2597 = vld [vmem:[%s9 + $0x30] sm:$0xf]
        %v2598 = vld [vmem:[%s9 + $0x34] sm:$0xf]
        %v2599 = vld [vmem:[%s9 + $0x38] sm:$0xf]
        %v2600 = vld [vmem:[%s9 + $0x3c] sm:$0xf]
        %v2601 = vld [vmem:[%s9 + $0x40] sm:$0xf]
        %v2602 = vld [vmem:[%s9 + $0x44] sm:$0xf]
        %v2603 = vld [vmem:[%s9 + $0x48] sm:$0xf]
        %v2604 = vld [vmem:[%s9 + $0x4c] sm:$0xf]
        %v2605 = vld [vmem:[%s9 + $0x50] sm:$0xf]
        %v2606 = vld [vmem:[%s9 + $0x54] sm:$0xf]
        %v2607 = vld [vmem:[%s9 + $0x58] sm:$0xf]
        %v2608 = vld [vmem:[%s9 + $0x5c] sm:$0xf]
        %v2609 = vld [vmem:[%s9 + $0x60] sm:$0xf]
        %v2610 = vld [vmem:[%s9 + $0x64] sm:$0xf]
        %v2611 = vld [vmem:[%s9 + $0x68] sm:$0xf]
        %v2612 = vld [vmem:[%s9 + $0x6c] sm:$0xf]
        %v2613 = vld [vmem:[%s9 + $0x70] sm:$0xf]
        %v2614 = vld [vmem:[%s9 + $0x74] sm:$0xf]
        %v2615 = vld [vmem:[%s9 + $0x78] sm:$0xf]
        %v2616 = vld [vmem:[%s9 + $0x7c] sm:$0xf]
        %v2617 = vld [vmem:[%s9 + $0x80] sm:$0xf]
        %v2618 = vld [vmem:[%s9 + $0x84] sm:$0xf]
        %v2619 = vld [vmem:[%s9 + $0x88] sm:$0xf]
        %v2620 = vld [vmem:[%s9 + $0x8c] sm:$0xf]
        %v2621 = vld [vmem:[%s9 + $0x90] sm:$0xf]
        %v2622 = vld [vmem:[%s9 + $0x94] sm:$0xf]
        %v2623 = vld [vmem:[%s9 + $0x98] sm:$0xf]
        %v2624 = vld [vmem:[%s9 + $0x9c] sm:$0xf]
        %v2625 = vld [vmem:[%s9 + $0xa0] sm:$0xf]
        %v2626 = vld [vmem:[%s9 + $0xa4] sm:$0xf]
        %v2627 = vld [vmem:[%s9 + $0xa8] sm:$0xf]
        %v2628 = vld [vmem:[%s9 + $0xac] sm:$0xf]
        %v2629 = vld [vmem:[%s9 + $0xb0] sm:$0xf]
        %v2630 = vld [vmem:[%s9 + $0xb4] sm:$0xf]
        %v2631 = vld [vmem:[%s9 + $0xb8] sm:$0xf]
        %v2632 = vld [vmem:[%s9 + $0xbc] sm:$0xf]
        %v2633 = vld [vmem:[%s9 + $0xc0] sm:$0xf]
        %v2634 = vld [vmem:[%s9 + $0xc4] sm:$0xf]
        %v2635 = vld [vmem:[%s9 + $0xc8] sm:$0xf]
        %v2636 = vld [vmem:[%s9 + $0xcc] sm:$0xf]
        %v2637 = vld [vmem:[%s9 + $0xd0] sm:$0xf]
        %v2638 = vld [vmem:[%s9 + $0xd4] sm:$0xf]
        %v2639 = vld [vmem:[%s9 + $0xd8] sm:$0xf]
        %v2640 = vld [vmem:[%s9 + $0xdc] sm:$0xf]
        %v2641 = vld [vmem:[%s9 + $0xe0] sm:$0xf]
        %v2642 = vld [vmem:[%s9 + $0xe4] sm:$0xf]
        %v2643 = vld [vmem:[%s9 + $0xe8] sm:$0xf]
        %v2644 = vld [vmem:[%s9 + $0xec] sm:$0xf]
        %v2645 = vld [vmem:[%s9 + $0xf0] sm:$0xf]
        %v2646 = vld [vmem:[%s9 + $0xf4] sm:$0xf]
        %v2647 = vld [vmem:[%s9 + $0xf8] sm:$0xf]
        %v2648 = vld [vmem:[%s9 + $0xfc] sm:$0xf]
        %v2649 = vld [vmem:[%s10] sm:$0x1]
        %v2714 = vunpack.c.l.b16 %v2585
        %v2715 = vunpack.c.l.b16 %v2586
        %v2716 = vunpack.c.l.b16 %v2587
        %v2717 = vunpack.c.l.b16 %v2588
        %v2718 = vunpack.c.l.b16 %v2589
        %v2719 = vunpack.c.l.b16 %v2590
        %v2720 = vunpack.c.l.b16 %v2591
        %v2721 = vunpack.c.l.b16 %v2592
        %v2722 = vunpack.c.l.b16 %v2593
        %v2723 = vunpack.c.l.b16 %v2594
        %v2724 = vunpack.c.l.b16 %v2595
        %v2725 = vunpack.c.l.b16 %v2596
        %v2726 = vunpack.c.l.b16 %v2597
        %v2727 = vunpack.c.l.b16 %v2598
        %v2728 = vunpack.c.l.b16 %v2599
        %v2729 = vunpack.c.l.b16 %v2600
        %v2730 = vunpack.c.l.b16 %v2601
        %v2731 = vunpack.c.l.b16 %v2602
        %v2732 = vunpack.c.l.b16 %v2603
        %v2733 = vunpack.c.l.b16 %v2604
        %v2734 = vunpack.c.l.b16 %v2605
        %v2735 = vunpack.c.l.b16 %v2606
        %v2736 = vunpack.c.l.b16 %v2607
        %v2737 = vunpack.c.l.b16 %v2608
        %v2738 = vunpack.c.l.b16 %v2609
        %v2739 = vunpack.c.l.b16 %v2610
        %v2740 = vunpack.c.l.b16 %v2611
        %v2741 = vunpack.c.l.b16 %v2612
        %v2742 = vunpack.c.l.b16 %v2613
        %v2743 = vunpack.c.l.b16 %v2614
        %v2744 = vunpack.c.l.b16 %v2615
        %v2745 = vunpack.c.l.b16 %v2616
        %v2746 = vunpack.c.l.b16 %v2617
        %v2747 = vunpack.c.l.b16 %v2618
        %v2748 = vunpack.c.l.b16 %v2619
        %v2749 = vunpack.c.l.b16 %v2620
        %v2750 = vunpack.c.l.b16 %v2621
        %v2751 = vunpack.c.l.b16 %v2622
        %v2752 = vunpack.c.l.b16 %v2623
        %v2753 = vunpack.c.l.b16 %v2624
        %v2754 = vunpack.c.l.b16 %v2625
        %v2755 = vunpack.c.l.b16 %v2626
        %v2756 = vunpack.c.l.b16 %v2627
        %v2757 = vunpack.c.l.b16 %v2628
        %v2758 = vunpack.c.l.b16 %v2629
        %v2759 = vunpack.c.l.b16 %v2630
        %v2760 = vunpack.c.l.b16 %v2631
        %v2761 = vunpack.c.l.b16 %v2632
        %v2762 = vunpack.c.l.b16 %v2633
        %v2763 = vunpack.c.l.b16 %v2634
        %v2764 = vunpack.c.l.b16 %v2635
        %v2765 = vunpack.c.l.b16 %v2636
        %v2766 = vunpack.c.l.b16 %v2637
        %v2767 = vunpack.c.l.b16 %v2638
        %v2768 = vunpack.c.l.b16 %v2639
        %v2769 = vunpack.c.l.b16 %v2640
        %v2770 = vunpack.c.l.b16 %v2641
        %v2771 = vunpack.c.l.b16 %v2642
        %v2772 = vunpack.c.l.b16 %v2643
        %v2773 = vunpack.c.l.b16 %v2644
        %v2774 = vunpack.c.l.b16 %v2645
        %v2775 = vunpack.c.l.b16 %v2646
        %v2776 = vunpack.c.l.b16 %v2647
        %v2777 = vunpack.c.l.b16 %v2648
        %v2778 = vpack.c.b16 %v2715, %v2714
        %v2779 = vpack.c.b16 %v2717, %v2716
        %v2780 = vpack.c.b16 %v2719, %v2718
        %v2781 = vpack.c.b16 %v2721, %v2720
        %v2782 = vpack.c.b16 %v2723, %v2722
        %v2783 = vpack.c.b16 %v2725, %v2724
        %v2784 = vpack.c.b16 %v2727, %v2726
        %v2785 = vpack.c.b16 %v2729, %v2728
        %v2786 = vpack.c.b16 %v2731, %v2730
        %v2787 = vpack.c.b16 %v2733, %v2732
        %v2788 = vpack.c.b16 %v2735, %v2734
        %v2789 = vpack.c.b16 %v2737, %v2736
        %v2790 = vpack.c.b16 %v2739, %v2738
        %v2791 = vpack.c.b16 %v2741, %v2740
        %v2792 = vpack.c.b16 %v2743, %v2742
        %v2793 = vpack.c.b16 %v2745, %v2744
        %v2794 = vpack.c.b16 %v2747, %v2746
        %v2795 = vpack.c.b16 %v2749, %v2748
        %v2796 = vpack.c.b16 %v2751, %v2750
        %v2797 = vpack.c.b16 %v2753, %v2752
        %v2798 = vpack.c.b16 %v2755, %v2754
        %v2799 = vpack.c.b16 %v2757, %v2756
        %v2800 = vpack.c.b16 %v2759, %v2758
        %v2801 = vpack.c.b16 %v2761, %v2760
        %v2802 = vpack.c.b16 %v2763, %v2762
        %v2803 = vpack.c.b16 %v2765, %v2764
        %v2804 = vpack.c.b16 %v2767, %v2766
        %v2805 = vpack.c.b16 %v2769, %v2768
        %v2806 = vpack.c.b16 %v2771, %v2770
        %v2807 = vpack.c.b16 %v2773, %v2772
        %v2808 = vpack.c.b16 %v2775, %v2774
        %v2809 = vpack.c.b16 %v2777, %v2776
        %2842 = vmatpush.bf16.msra.mxu0 %v2785
        %2843 = vmatpush.bf16.msra.mxu0 %v2784
        %2844 = vmatpush.bf16.msra.mxu0 %v2783
        %2845 = vmatpush.bf16.msra.mxu0 %v2782
        %2846 = vmatpush.bf16.msra.mxu0 %v2781
        %2847 = vmatpush.bf16.msra.mxu0 %v2780
        %2848 = vmatpush.bf16.msra.mxu0 %v2779
        %2849 = vmatpush.bf16.msra.mxu0 %v2778
        %2850 = vmatmul.bf16.gmra.mxu0 %v2581
        %v2851 = vpop.f32.mrf.mxu0
        %v2852 = vadd.f32 %v2649, %v2851
        %v2853 = vpop.f32.mrf.mxu0
        %2854 = vdwg.mxu0
        %2855 = vmatpush.bf16.msra.mxu0 %v2793
        %2856 = vmatpush.bf16.msra.mxu0 %v2792
        %2857 = vmatpush.bf16.msra.mxu0 %v2791
        %2858 = vmatpush.bf16.msra.mxu0 %v2790
        %2859 = vmatpush.bf16.msra.mxu0 %v2789
        %2860 = vmatpush.bf16.msra.mxu0 %v2788
        %2861 = vmatpush.bf16.msra.mxu0 %v2787
        %2862 = vmatpush.bf16.msra.mxu0 %v2786
        %2863 = vmatmul.bf16.gmra.mxu0 %v2582
        %v2864 = vpop.f32.mrf.mxu0
        %v2865 = vadd.f32 %v2852, %v2864
        %v2866 = vpop.f32.mrf.mxu0
        %2867 = vdwg.mxu0
        %2868 = vmatpush.bf16.msra.mxu0 %v2801
        %2869 = vmatpush.bf16.msra.mxu0 %v2800
        %2870 = vmatpush.bf16.msra.mxu0 %v2799
        %2871 = vmatpush.bf16.msra.mxu0 %v2798
        %2872 = vmatpush.bf16.msra.mxu0 %v2797
        %2873 = vmatpush.bf16.msra.mxu0 %v2796
        %2874 = vmatpush.bf16.msra.mxu0 %v2795
        %2875 = vmatpush.bf16.msra.mxu0 %v2794
        %2876 = vmatmul.bf16.gmra.mxu0 %v2583
        %v2877 = vpop.f32.mrf.mxu0
        %v2878 = vadd.f32 %v2865, %v2877
        %v2879 = vpop.f32.mrf.mxu0
        %2880 = vdwg.mxu0
        %2881 = vmatpush.bf16.msra.mxu0 %v2809
        %2882 = vmatpush.bf16.msra.mxu0 %v2808
        %2883 = vmatpush.bf16.msra.mxu0 %v2807
        %2884 = vmatpush.bf16.msra.mxu0 %v2806
        %2885 = vmatpush.bf16.msra.mxu0 %v2805
        %2886 = vmatpush.bf16.msra.mxu0 %v2804
        %2887 = vmatpush.bf16.msra.mxu0 %v2803
        %2888 = vmatpush.bf16.msra.mxu0 %v2802
        %2889 = vmatmul.bf16.gmra.mxu0 %v2584
        %v2890 = vpop.f32.mrf.mxu0
        %v2891 = vadd.f32 %v2878, %v2890
        %v2892 = vpop.f32.mrf.mxu0
        %2893 = vdwg.mxu0
        %2894 = vst [vmem:[%s378] sm:$0x1] %v2891
        %s2895 = sand.u32 %s269, 1
        %s2896 = scalar_lea.sflag [#allocation5], %s2895
        %s2897 = sand.u32 %s269, 1
        %s2898 = scalar_lea.vmem [#allocation4], %s2897
        // Predicated region
        $region65: #{cnn_forward.1} parent=63 // pred_check
          %p2899 = pneg %p279
        $region66: #{cnn_forward.1} parent=63 // pred_check_branch
          %2901 = sbr.rel (%p2899) target = $region68
        $region67: #{cnn_forward.1} parent=63 // pred_region
          %2903 = vsyncadd %s2896, 0
          %s2904 = scalar_lea.hbm %s11, %s25
          %s2906 = sshll.u32 %s2898, 4
          %s2907 = int_to_ptr.vmem [resolvable:$true] %s2906
          %s2908 = sshll.u32 %s2904, 4
          %s2909 = int_to_ptr.hbm [resolvable:$true] %s2908
          %2911 = dma.vmem_to_hbm [thread:$0]  %s2907, 16, %s2909, %s2896
        $region68: #{cnn_forward.1} parent=63 // pred_fallthru
          _
      $region64: #{cnn_forward.1} parent=5 // pred_fallthru
        _
      %p2912 = scmp.le.s32.totalorder 2, %s20
      // Predicated region
      $region69: #{cnn_forward.1} parent=5 // pred_check
        %p2913 = pneg %p2912
      $region70: #{cnn_forward.1} parent=5 // pred_check_branch
        %2915 = sbr.rel (%p2913) target = $region72
      $region71: #{cnn_forward.1} parent=5 // pred_region
        %s2916 = ssub.s32 %s20, 2
        // Predicated region
        $region73: #{cnn_forward.1} parent=71 // pred_check
          %p2917 = pneg %p285
        $region74: #{cnn_forward.1} parent=71 // pred_check_branch
          %2919 = sbr.rel (%p2917) target = $region76
        $region75: #{cnn_forward.1} parent=71 // pred_region
          %s2920 = sand.u32 %s270, 1
          %s2921 = scalar_lea.sflag [#allocation5], %s2920
          %s2922 = sand.u32 %s270, 1
          %s2923 = scalar_lea.vmem [#allocation4], %s2922
          %2925 = dma.done %s2921, 16
        $region76: #{cnn_forward.1} parent=71 // pred_fallthru
          _
      $region72: #{cnn_forward.1} parent=5 // pred_fallthru
        _
    $region6: #{cnn_forward.1} parent=1 // loop_footer
      %s24 = sadd.s32 1, %s20
    $region7: #{cnn_forward.1} parent=1 // loop_footer_branch
      %19 = sbr.rel target = $region3
    $region8: #{cnn_forward.1} parent=1 // loop_exit
      _
    %2926 = vsyncpa [#allocation5], 1
    %s2927 = scalar_lea.sflag [#allocation5], 1
    %2928 = vsyncpa %s2927, 1

</llo_original>
